<compile_context>
chip_gen: v6e
topology: v6e:2x2x1
jax: 0.10.0
libtpu: 0.0.40
codegen_flags: <defaults>
</compile_context>

<pallas_src>
import functools

import jax
import jax.numpy as jnp
from jax import lax
from jax.experimental import pallas as pl
from jax.experimental.pallas import tpu as pltpu

EPS = 1e-5


# ----------------------------------------------------------------------------
# Small helpers
# ----------------------------------------------------------------------------
def _round_up(v, m):
    return (v + m - 1) // m * m


def _pad1d(v, n):
    return jnp.pad(v, (0, n - v.shape[0]))


def _prep_w3x3_grouped(w_oihw, cinp, coutp):
    """(O, I, 3, 3) -> (3, 3*cinp, coutp) bf16, grouped by dy.

    K index = dx*cinp + c, matching the in-kernel packed operand
    concat([win(dy,0), win(dy,1), win(dy,2)], axis=-1).
    """
    o, i, kh, kw = w_oihw.shape
    w = jnp.transpose(w_oihw, (2, 3, 1, 0))                     # (kh, kw, I, O)
    w = jnp.pad(w, ((0, 0), (0, 0), (0, cinp - i), (0, coutp - o)))
    w = w.reshape(kh, kw * cinp, coutp)
    return w.astype(jnp.bfloat16)


def _prep_w1x1(w_oihw, cinp, coutp):
    """(O, I, 1, 1) -> (cinp, coutp), zero-padded, bf16."""
    o, i, _, _ = w_oihw.shape
    w = jnp.transpose(w_oihw, (2, 3, 1, 0)).reshape(i, o)
    w = jnp.pad(w, ((0, cinp - i), (0, coutp - o)))
    return w.astype(jnp.bfloat16)


def _vmem_limit_bytes():
    """Generation-aware VMEM cap (v7x has 64 MiB/TC vs 128 MiB on v5e/v6e)."""
    cap = 64 * 1024 * 1024
    try:
        cap = int(pltpu.get_tpu_info().vmem_capacity_bytes)
    except Exception:
        pass
    return int(min(48 * 1024 * 1024, cap * 5 // 8))


# ----------------------------------------------------------------------------
# Fused BN+ReLU -> 3x3 conv (+ optional fused shortcut) Pallas kernel
# ----------------------------------------------------------------------------
def _make_fused_kernel(*, stride, h, w, ho, wo, shortcut):
    """Kernel computing  conv3x3(relu(bn(x))) + bias [+ shortcut].

    Static config: stride (1 or 2), input spatial (h, w), output spatial
    (ho, wo), shortcut in {None, "identity", "conv"}.
    """
    hp, wp = h + 2, w + 2

    def kernel(*refs):
        if shortcut == "conv":
            (x_ref, w_ref, scale_ref, shift_ref, bias_ref,
             xs_ref, wsc_ref, o_ref, a_ref) = refs
        elif shortcut == "identity":
            (x_ref, w_ref, scale_ref, shift_ref, bias_ref,
             xs_ref, o_ref, a_ref) = refs
            wsc_ref = None
        else:
            (x_ref, w_ref, scale_ref, shift_ref, bias_ref,
             o_ref, a_ref) = refs
            xs_ref = wsc_ref = None

        cin = a_ref.shape[-1]
        tn = o_ref.shape[-1]

        # ---- BN + ReLU + zero halo, computed ONCE per image (j == 0 only).
        #      a_ref persists across the out-channel tiles (axis 1 is
        #      "arbitrary", so it is never split across cores). ----
        @pl.when(pl.program_id(1) == 0)
        def _():
            a_ref[...] = jnp.zeros_like(a_ref)                  # zero incl. halo
            a = x_ref[...].astype(jnp.float32) * scale_ref[...] + shift_ref[...]
            a_ref[1:1 + h, 1:1 + w, :] = jnp.maximum(a, 0.0).astype(a_ref.dtype)

        # ---- 3x3 conv as 3 grouped matmuls (K = 3*cin per dy), f32 accumulate
        #      in values (no scratch-accumulator round trips). ----
        def tap_group(dy):
            if stride == 1:
                parts = [a_ref[dy:dy + ho, dx:dx + wo, :].astype(jnp.bfloat16)
                         for dx in range(3)]
            else:
                parts = [a_ref[pl.ds(dy, ho, stride=stride),
                               pl.ds(dx, wo, stride=stride), :].astype(jnp.bfloat16)
                         for dx in range(3)]
            packed = jnp.concatenate(parts, axis=-1).reshape(ho * wo, 3 * cin)
            return jnp.dot(packed, w_ref[dy],
                           preferred_element_type=jnp.float32)

        acc = tap_group(0) + bias_ref[...]          # bias folded into first group
        acc = acc + tap_group(1)
        acc = acc + tap_group(2)

        # ---- fused shortcut (reads the raw, un-padded shortcut input) ----
        if shortcut == "conv":
            csc = xs_ref.shape[-1]
            if stride == 1:
                xw = xs_ref[...]
            else:
                xw = xs_ref[pl.ds(0, ho, stride=stride),
                            pl.ds(0, wo, stride=stride), :]
            xw = xw.reshape(ho * wo, csc).astype(jnp.bfloat16)
            acc = acc + jnp.dot(xw, wsc_ref[...],
                                preferred_element_type=jnp.float32)
        elif shortcut == "identity":
            acc = acc + xs_ref[...].reshape(ho * wo, tn).astype(jnp.float32)

        o_ref[...] = acc.astype(o_ref.dtype)

    return kernel


def fused_bn_conv3x3(x, w3, scale, shift, bias, *, stride,
                     shortcut=None, xs=None, wsc=None,
                     out_dtype=jnp.float32):
    """out = conv3x3_pad1(relu(bn(x))) + bias [+ fused shortcut].

    x     : (N, H, W, Cin_p)       -- un-padded input (f32 or bf16), channel-padded
    w3    : (3, 3*Cin_p, Cout_p)   -- bf16 conv weights grouped by dy
    scale : (Cin_p,) f32  shift : (Cin_p,) f32  -- folded BN affine
    bias  : (Cout_p,) f32                       -- conv bias (+ shortcut bias)
    xs    : (N, H, W, Cs_p)        -- un-padded shortcut input (raw x)
    wsc   : (Cs_p, Cout_p) bf16    -- 1x1 shortcut weight (shortcut == "conv")
    Returns (N, Ho*Wo, Cout_p) in out_dtype.
    """
    n, h, w, cinp = x.shape
    coutp = w3.shape[-1]
    ho = (h - 1) // stride + 1
    wo = (w - 1) // stride + 1
    tn = 256 if coutp % 256 == 0 else 128
    nj = coutp // tn

    in_specs = [
        pl.BlockSpec((None, h, w, cinp), lambda i, j: (i, 0, 0, 0)),
        pl.BlockSpec((3, 3 * cinp, tn), lambda i, j: (0, 0, j)),
        pl.BlockSpec((1, cinp), lambda i, j: (0, 0)),
        pl.BlockSpec((1, cinp), lambda i, j: (0, 0)),
        pl.BlockSpec((1, tn), lambda i, j: (0, j)),
    ]
    args = [x, w3, scale.reshape(1, cinp), shift.reshape(1, cinp),
            bias.reshape(1, coutp)]

    if shortcut == "conv":
        _, hs, ws, csp = xs.shape
        in_specs += [
            pl.BlockSpec((None, hs, ws, csp), lambda i, j: (i, 0, 0, 0)),
            pl.BlockSpec((csp, tn), lambda i, j: (0, j)),
        ]
        args += [xs, wsc]
    elif shortcut == "identity":
        _, hs, ws, csp = xs.shape
        in_specs += [pl.BlockSpec((None, hs, ws, tn), lambda i, j: (i, 0, 0, j))]
        args += [xs]

    kernel = _make_fused_kernel(stride=stride, h=h, w=w, ho=ho, wo=wo,
                                shortcut=shortcut)
    return pl.pallas_call(
        kernel,
        out_shape=jax.ShapeDtypeStruct((n, ho * wo, coutp), out_dtype),
        grid=(n, nj),
        in_specs=in_specs,
        out_specs=pl.BlockSpec((None, ho * wo, tn), lambda i, j: (i, 0, j)),
        scratch_shapes=[
            # BN'd / ReLU'd / zero-haloed activation, filled once per image.
            pltpu.VMEM((h + 2, w + 2, cinp), jnp.float32),
        ],
        compiler_params=pltpu.CompilerParams(
            # j must be "arbitrary": a_ref is filled only at j == 0.
            dimension_semantics=("parallel", "arbitrary"),
            vmem_limit_bytes=_vmem_limit_bytes()),
    )(*args)


# ----------------------------------------------------------------------------
# WideBasic forward
# ----------------------------------------------------------------------------
def wide_basic_forward(x_nchw, params, *, stride):
    p = params
    x = jnp.transpose(x_nchw, (0, 2, 3, 1))                 # NCHW -> NHWC
    n, h, w, cin = x.shape
    planes = p["conv1_w"].shape[0]
    cin_p = _round_up(cin, 128)                             # lane-dense channels
    pl_p = _round_up(planes, 128)

    # Channel pad only (no spatial pad anywhere); shared by conv1 & shortcut.
    xc = jnp.pad(x, ((0, 0), (0, 0), (0, 0), (0, cin_p - cin)))

    # bn1 folded to per-channel affine.
    s1 = p["bn1_gamma"] / jnp.sqrt(p["bn1_var"] + EPS)
    t1 = p["bn1_beta"] - p["bn1_mean"] * s1
    w1 = _prep_w3x3_grouped(p["conv1_w"], cin_p, pl_p)

    # conv1(relu(bn1(x))) + b1   [dropout is identity in eval mode]
    # Intermediate written back in bf16 (half the HBM traffic).
    out1 = fused_bn_conv3x3(
        xc, w1, _pad1d(s1, cin_p), _pad1d(t1, cin_p), _pad1d(p["conv1_b"], pl_p),
        stride=1, shortcut=None, out_dtype=jnp.bfloat16)
    out1 = out1.reshape(n, h, w, pl_p)                       # free reshape

    # bn2 folded affine.
    s2 = p["bn2_gamma"] / jnp.sqrt(p["bn2_var"] + EPS)
    t2 = p["bn2_beta"] - p["bn2_mean"] * s2
    w2 = _prep_w3x3_grouped(p["conv2_w"], pl_p, pl_p)

    ho = (h - 1) // stride + 1
    wo = (w - 1) // stride + 1

    # conv2(relu(bn2(out1))) + b2 + shortcut(x)   -- shortcut fused in-kernel.
    if stride != 1 or cin != planes:
        wsc = _prep_w1x1(p["sc_w"], cin_p, pl_p)
        bias2 = _pad1d(p["conv2_b"] + p["sc_b"], pl_p)       # fold both biases
        out2 = fused_bn_conv3x3(
            out1, w2, _pad1d(s2, pl_p), _pad1d(t2, pl_p), bias2,
            stride=stride, shortcut="conv", xs=xc, wsc=wsc)
    else:
        bias2 = _pad1d(p["conv2_b"], pl_p)
        out2 = fused_bn_conv3x3(
            out1, w2, _pad1d(s2, pl_p), _pad1d(t2, pl_p), bias2,
            stride=1, shortcut="identity", xs=xc)

    out = out2.reshape(n, ho, wo, pl_p)[..., :planes]
    return jnp.transpose(out, (0, 3, 1, 2))                 # NHWC -> NCHW


# ----------------------------------------------------------------------------
# Pure-JAX reference (matches PyTorch semantics incl. identity shortcut)
# ----------------------------------------------------------------------------
def _ref_forward(x, p, *, stride):
    def bn(y, g, b, m, v):
        return (y - m[None, :, None, None]) / jnp.sqrt(v[None, :, None, None] + EPS) \
               * g[None, :, None, None] + b[None, :, None, None]

    dn = ("NCHW", "OIHW", "NCHW")
    cin = x.shape[1]
    planes = p["conv1_w"].shape[0]
    h1 = jax.nn.relu(bn(x, p["bn1_gamma"], p["bn1_beta"], p["bn1_mean"], p["bn1_var"]))
    c1 = lax.conv_general_dilated(h1, p["conv1_w"], (1, 1), ((1, 1), (1, 1)),
                                  dimension_numbers=dn) + p["conv1_b"][None, :, None, None]
    h2 = jax.nn.relu(bn(c1, p["bn2_gamma"], p["bn2_beta"], p["bn2_mean"], p["bn2_var"]))
    c2 = lax.conv_general_dilated(h2, p["conv2_w"], (stride, stride), ((1, 1), (1, 1)),
                                  dimension_numbers=dn) + p["conv2_b"][None, :, None, None]
    if stride != 1 or cin != planes:
        sc = lax.conv_general_dilated(x, p["sc_w"], (stride, stride), "VALID",
                                      dimension_numbers=dn) + p["sc_b"][None, :, None, None]
    else:
        sc = x
    return c2 + sc


# ----------------------------------------------------------------------------
def make_params(key, in_planes, planes):
    ks = jax.random.split(key, 12)
    f32 = jnp.float32
    return {
        "bn1_gamma": 1.0 + 0.1 * jax.random.normal(ks[0], (in_planes,), f32),
        "bn1_beta": 0.1 * jax.random.normal(ks[1], (in_planes,), f32),
        "bn1_mean": 0.1 * jax.random.normal(ks[2], (in_planes,), f32),
        "bn1_var": 1.0 + 0.1 * jax.random.uniform(ks[3], (in_planes,), f32),
        "conv1_w": 0.2 * jax.random.normal(ks[4], (planes, in_planes, 3, 3), f32),
        "conv1_b": 0.1 * jax.random.normal(ks[5], (planes,), f32),
        "bn2_gamma": 1.0 + 0.1 * jax.random.normal(ks[6], (planes,), f32),
        "bn2_beta": 0.1 * jax.random.normal(ks[7], (planes,), f32),
        "bn2_mean": 0.1 * jax.random.normal(ks[8], (planes,), f32),
        "bn2_var": 1.0 + 0.1 * jax.random.uniform(ks[9], (planes,), f32),
        "conv2_w": 0.2 * jax.random.normal(ks[10], (planes, planes, 3, 3), f32),
        "conv2_b": 0.1 * jax.random.normal(ks[11], (planes,), f32),
        "sc_w": 0.2 * jax.random.normal(jax.random.fold_in(key, 99),
                                        (planes, in_planes, 1, 1), f32),
        "sc_b": 0.1 * jax.random.normal(jax.random.fold_in(key, 100), (planes,), f32),
    }


if __name__ == "__main__":
    key = jax.random.PRNGKey(0)
    kx, kp = jax.random.split(key)

    # Case 1: stride=2, cin != planes  -> fused 1x1-conv shortcut path.
    N, CIN, PLANES, H, W, STRIDE = 2, 4, 8, 16, 16, 2
    x = jax.random.normal(kx, (N, CIN, H, W), jnp.float32)      # NCHW, like PyTorch
    params = make_params(kp, CIN, PLANES)
    fwd = jax.jit(functools.partial(wide_basic_forward, stride=STRIDE))
    out = jax.block_until_ready(fwd(x, params))
    ref = jax.block_until_ready(_ref_forward(x, params, stride=STRIDE))
    assert out.shape == (N, PLANES, H // STRIDE, W // STRIDE), out.shape
    err = float(jnp.max(jnp.abs(out - ref)))
    assert jnp.allclose(out, ref, atol=4e-2, rtol=4e-2), err    # bf16 MXU tolerance

    # Case 2: stride=1, cin == planes  -> fused identity shortcut path.
    x2 = jax.random.normal(jax.random.fold_in(kx, 1), (N, PLANES, H, W), jnp.float32)
    params2 = make_params(jax.random.fold_in(kp, 1), PLANES, PLANES)
    fwd1 = jax.jit(functools.partial(wide_basic_forward, stride=1))
    out2 = jax.block_until_ready(fwd1(x2, params2))
    ref2 = jax.block_until_ready(_ref_forward(x2, params2, stride=1))
    assert out2.shape == (N, PLANES, H, W), out2.shape
    err2 = float(jnp.max(jnp.abs(out2 - ref2)))
    assert jnp.allclose(out2, ref2, atol=4e-2, rtol=4e-2), err2

    print("KERNEL_OK")
</pallas_src>

<mosaic_0001>
module attributes {stable_mosaic.version = 11 : i64} {
  func.func @kernel(%arg0: i32, %arg1: i32, %arg2: memref<1x16x16x128xf32, #tpu.memory_space<vmem>>, %arg3: memref<3x384x128xbf16, #tpu.memory_space<vmem>>, %arg4: memref<1x128xf32, #tpu.memory_space<vmem>>, %arg5: memref<1x128xf32, #tpu.memory_space<vmem>>, %arg6: memref<1x128xf32, #tpu.memory_space<vmem>>, %arg7: memref<1x256x128xbf16, #tpu.memory_space<vmem>>, %arg8: memref<18x18x128xf32, #tpu.memory_space<vmem>>) attributes {dimension_semantics = [#tpu.dimension_semantics<parallel>, #tpu.dimension_semantics<arbitrary>], iteration_bounds = array<i64: 2, 1>, scalar_prefetch = 0 : i64, scratch_operands = 1 : i64, tpu.core_type = #tpu.core_type<tc>, window_params = [{transform_indices = @transform_0, window_bounds = array<i64: 1, 16, 16, 128>}, {transform_indices = @transform_1, window_bounds = array<i64: 3, 384, 128>}, {pipeline_mode = #tpu.pipeline_mode<synchronous>, transform_indices = @transform_2, window_bounds = array<i64: 1, 128>}, {pipeline_mode = #tpu.pipeline_mode<synchronous>, transform_indices = @transform_3, window_bounds = array<i64: 1, 128>}, {transform_indices = @transform_4, window_bounds = array<i64: 1, 128>}, {transform_indices = @transform_5, window_bounds = array<i64: 1, 256, 128>}]} {
    %c0_i32 = arith.constant 0 : i32
    %0 = arith.cmpi eq, %arg1, %c0_i32 : i32
    %1 = arith.extui %0 : i1 to i32
    %c0_i32_0 = arith.constant 0 : i32
    %2 = arith.cmpi ne, %1, %c0_i32_0 : i32
    scf.if %2 {
      %cst_41 = arith.constant 0.000000e+00 : f32
      %45 = vector.broadcast %cst_41 : f32 to vector<18x18x128xf32>
      %c0_42 = arith.constant 0 : index
      %c0_43 = arith.constant 0 : index
      %c0_44 = arith.constant 0 : index
      %46 = vector.load %arg8[%c0_42, %c0_43, %c0_44] : memref<18x18x128xf32, #tpu.memory_space<vmem>>, vector<18x18x128xf32>
      tpu.vector_store %arg8[%c0_42, %c0_43, %c0_44], %45 {strides = array<i32>} : memref<18x18x128xf32, #tpu.memory_space<vmem>>, vector<18x18x128xf32>,
      %c0_45 = arith.constant 0 : index
      %c0_46 = arith.constant 0 : index
      %c0_47 = arith.constant 0 : index
      %c0_48 = arith.constant 0 : index
      %47 = vector.load %arg2[%c0_45, %c0_46, %c0_47, %c0_48] : memref<1x16x16x128xf32, #tpu.memory_space<vmem>>, vector<1x16x16x128xf32>
      %48 = vector.shape_cast %47 : vector<1x16x16x128xf32> to vector<16x16x128xf32>
      %c0_49 = arith.constant 0 : index
      %c0_50 = arith.constant 0 : index
      %49 = vector.load %arg4[%c0_49, %c0_50] : memref<1x128xf32, #tpu.memory_space<vmem>>, vector<1x128xf32>
      %50 = vector.shape_cast %49 : vector<1x128xf32> to vector<1x1x128xf32>
      %51 = vector.broadcast %50 : vector<1x1x128xf32> to vector<16x16x128xf32>
      %52 = arith.mulf %48, %51 : vector<16x16x128xf32>
      %c0_51 = arith.constant 0 : index
      %c0_52 = arith.constant 0 : index
      %53 = vector.load %arg5[%c0_51, %c0_52] : memref<1x128xf32, #tpu.memory_space<vmem>>, vector<1x128xf32>
      %54 = vector.shape_cast %53 : vector<1x128xf32> to vector<1x1x128xf32>
      %55 = vector.broadcast %54 : vector<1x1x128xf32> to vector<16x16x128xf32>
      %56 = arith.addf %52, %55 : vector<16x16x128xf32>
      %cst_53 = arith.constant 0.000000e+00 : f32
      %57 = vector.broadcast %cst_53 : f32 to vector<16x16x128xf32>
      %58 = arith.maximumf %56, %57 : vector<16x16x128xf32>
      %c1_54 = arith.constant 1 : index
      %c1_55 = arith.constant 1 : index
      %c0_56 = arith.constant 0 : index
      %59 = vector.load %arg8[%c1_54, %c1_55, %c0_56] : memref<18x18x128xf32, #tpu.memory_space<vmem>>, vector<16x16x128xf32>
      tpu.vector_store %arg8[%c1_54, %c1_55, %c0_56], %58 {strides = array<i32>} : memref<18x18x128xf32, #tpu.memory_space<vmem>>, vector<16x16x128xf32>,
    } else {
    }
    %c0 = arith.constant 0 : index
    %c0_1 = arith.constant 0 : index
    %c0_2 = arith.constant 0 : index
    %3 = vector.load %arg8[%c0, %c0_1, %c0_2] : memref<18x18x128xf32, #tpu.memory_space<vmem>>, vector<16x16x128xf32>
    %4 = arith.truncf %3 : vector<16x16x128xf32> to vector<16x16x128xbf16>
    %c0_3 = arith.constant 0 : index
    %c1 = arith.constant 1 : index
    %c0_4 = arith.constant 0 : index
    %5 = vector.load %arg8[%c0_3, %c1, %c0_4] : memref<18x18x128xf32, #tpu.memory_space<vmem>>, vector<16x16x128xf32>
    %6 = arith.truncf %5 : vector<16x16x128xf32> to vector<16x16x128xbf16>
    %c0_5 = arith.constant 0 : index
    %c2 = arith.constant 2 : index
    %c0_6 = arith.constant 0 : index
    %7 = vector.load %arg8[%c0_5, %c2, %c0_6] : memref<18x18x128xf32, #tpu.memory_space<vmem>>, vector<16x16x128xf32>
    %8 = arith.truncf %7 : vector<16x16x128xf32> to vector<16x16x128xbf16>
    %9 = tpu.concatenate %4, %6, %8 in 2 : vector<16x16x128xbf16>, vector<16x16x128xbf16>, vector<16x16x128xbf16> -> vector<16x16x384xbf16>
    %10 = vector.shape_cast %9 : vector<16x16x384xbf16> to vector<256x384xbf16>
    %c0_7 = arith.constant 0 : index
    %c0_8 = arith.constant 0 : index
    %c0_9 = arith.constant 0 : index
    %11 = vector.load %arg3[%c0_7, %c0_8, %c0_9] : memref<3x384x128xbf16, #tpu.memory_space<vmem>>, vector<1x384x128xbf16>
    %12 = vector.shape_cast %11 : vector<1x384x128xbf16> to vector<384x128xbf16>
    %cst = arith.constant dense<0.000000e+00> : vector<256x128xf32>
    %13 = tpu.matmul %10, %12, %cst {dimension_numbers = #tpu.dot_dimension_numbers<[1], [0], [0], [1], [0, 0, 1, 1], [], []>} : vector<256x384xbf16>, vector<384x128xbf16>, vector<256x128xf32> -> vector<256x128xf32>
    %c0_10 = arith.constant 0 : index
    %c0_11 = arith.constant 0 : index
    %14 = vector.load %arg6[%c0_10, %c0_11] : memref<1x128xf32, #tpu.memory_space<vmem>>, vector<1x128xf32>
    %15 = vector.broadcast %14 : vector<1x128xf32> to vector<256x128xf32>
    %16 = arith.addf %13, %15 : vector<256x128xf32>
    %c1_12 = arith.constant 1 : index
    %c0_13 = arith.constant 0 : index
    %c0_14 = arith.constant 0 : index
    %17 = vector.load %arg8[%c1_12, %c0_13, %c0_14] : memref<18x18x128xf32, #tpu.memory_space<vmem>>, vector<16x16x128xf32>
    %18 = arith.truncf %17 : vector<16x16x128xf32> to vector<16x16x128xbf16>
    %c1_15 = arith.constant 1 : index
    %c1_16 = arith.constant 1 : index
    %c0_17 = arith.constant 0 : index
    %19 = vector.load %arg8[%c1_15, %c1_16, %c0_17] : memref<18x18x128xf32, #tpu.memory_space<vmem>>, vector<16x16x128xf32>
    %20 = arith.truncf %19 : vector<16x16x128xf32> to vector<16x16x128xbf16>
    %c1_18 = arith.constant 1 : index
    %c2_19 = arith.constant 2 : index
    %c0_20 = arith.constant 0 : index
    %21 = vector.load %arg8[%c1_18, %c2_19, %c0_20] : memref<18x18x128xf32, #tpu.memory_space<vmem>>, vector<16x16x128xf32>
    %22 = arith.truncf %21 : vector<16x16x128xf32> to vector<16x16x128xbf16>
    %23 = tpu.concatenate %18, %20, %22 in 2 : vector<16x16x128xbf16>, vector<16x16x128xbf16>, vector<16x16x128xbf16> -> vector<16x16x384xbf16>
    %24 = vector.shape_cast %23 : vector<16x16x384xbf16> to vector<256x384xbf16>
    %c1_21 = arith.constant 1 : index
    %c0_22 = arith.constant 0 : index
    %c0_23 = arith.constant 0 : index
    %25 = vector.load %arg3[%c1_21, %c0_22, %c0_23] : memref<3x384x128xbf16, #tpu.memory_space<vmem>>, vector<1x384x128xbf16>
    %26 = vector.shape_cast %25 : vector<1x384x128xbf16> to vector<384x128xbf16>
    %cst_24 = arith.constant dense<0.000000e+00> : vector<256x128xf32>
    %27 = tpu.matmul %24, %26, %cst_24 {dimension_numbers = #tpu.dot_dimension_numbers<[1], [0], [0], [1], [0, 0, 1, 1], [], []>} : vector<256x384xbf16>, vector<384x128xbf16>, vector<256x128xf32> -> vector<256x128xf32>
    %28 = arith.addf %16, %27 : vector<256x128xf32>
    %c2_25 = arith.constant 2 : index
    %c0_26 = arith.constant 0 : index
    %c0_27 = arith.constant 0 : index
    %29 = vector.load %arg8[%c2_25, %c0_26, %c0_27] : memref<18x18x128xf32, #tpu.memory_space<vmem>>, vector<16x16x128xf32>
    %30 = arith.truncf %29 : vector<16x16x128xf32> to vector<16x16x128xbf16>
    %c2_28 = arith.constant 2 : index
    %c1_29 = arith.constant 1 : index
    %c0_30 = arith.constant 0 : index
    %31 = vector.load %arg8[%c2_28, %c1_29, %c0_30] : memref<18x18x128xf32, #tpu.memory_space<vmem>>, vector<16x16x128xf32>
    %32 = arith.truncf %31 : vector<16x16x128xf32> to vector<16x16x128xbf16>
    %c2_31 = arith.constant 2 : index
    %c2_32 = arith.constant 2 : index
    %c0_33 = arith.constant 0 : index
    %33 = vector.load %arg8[%c2_31, %c2_32, %c0_33] : memref<18x18x128xf32, #tpu.memory_space<vmem>>, vector<16x16x128xf32>
    %34 = arith.truncf %33 : vector<16x16x128xf32> to vector<16x16x128xbf16>
    %35 = tpu.concatenate %30, %32, %34 in 2 : vector<16x16x128xbf16>, vector<16x16x128xbf16>, vector<16x16x128xbf16> -> vector<16x16x384xbf16>
    %36 = vector.shape_cast %35 : vector<16x16x384xbf16> to vector<256x384xbf16>
    %c2_34 = arith.constant 2 : index
    %c0_35 = arith.constant 0 : index
    %c0_36 = arith.constant 0 : index
    %37 = vector.load %arg3[%c2_34, %c0_35, %c0_36] : memref<3x384x128xbf16, #tpu.memory_space<vmem>>, vector<1x384x128xbf16>
    %38 = vector.shape_cast %37 : vector<1x384x128xbf16> to vector<384x128xbf16>
    %cst_37 = arith.constant dense<0.000000e+00> : vector<256x128xf32>
    %39 = tpu.matmul %36, %38, %cst_37 {dimension_numbers = #tpu.dot_dimension_numbers<[1], [0], [0], [1], [0, 0, 1, 1], [], []>} : vector<256x384xbf16>, vector<384x128xbf16>, vector<256x128xf32> -> vector<256x128xf32>
    %40 = arith.addf %28, %39 : vector<256x128xf32>
    %41 = arith.truncf %40 : vector<256x128xf32> to vector<256x128xbf16>
    %c0_38 = arith.constant 0 : index
    %c0_39 = arith.constant 0 : index
    %c0_40 = arith.constant 0 : index
    %42 = vector.load %arg7[%c0_38, %c0_39, %c0_40] : memref<1x256x128xbf16, #tpu.memory_space<vmem>>, vector<1x256x128xbf16>
    %43 = vector.shape_cast %42 : vector<1x256x128xbf16> to vector<256x128xbf16>
    %44 = vector.shape_cast %41 : vector<256x128xbf16> to vector<1x256x128xbf16>
    tpu.vector_store %arg7[%c0_38, %c0_39, %c0_40], %44 {strides = array<i32>} : memref<1x256x128xbf16, #tpu.memory_space<vmem>>, vector<1x256x128xbf16>,
    return
  }
  func.func @transform_0(%arg0: i32, %arg1: i32) -> (i32, i32, i32, i32) {
    %c0_i32 = arith.constant 0 : i32
    %c0_i32_0 = arith.constant 0 : i32
    %c0_i32_1 = arith.constant 0 : i32
    %c0_i32_2 = arith.constant 0 : i32
    return %arg0, %c0_i32, %c0_i32_0, %c0_i32_1 : i32, i32, i32, i32
  }
  func.func @transform_1(%arg0: i32, %arg1: i32) -> (i32, i32, i32) {
    %c0_i32 = arith.constant 0 : i32
    %c0_i32_0 = arith.constant 0 : i32
    %c0_i32_1 = arith.constant 0 : i32
    return %c0_i32, %c0_i32_0, %arg1 : i32, i32, i32
  }
  func.func @transform_2(%arg0: i32, %arg1: i32) -> (i32, i32) {
    %c0_i32 = arith.constant 0 : i32
    %c0_i32_0 = arith.constant 0 : i32
    %c0_i32_1 = arith.constant 0 : i32
    return %c0_i32, %c0_i32_0 : i32, i32
  }
  func.func @transform_3(%arg0: i32, %arg1: i32) -> (i32, i32) {
    %c0_i32 = arith.constant 0 : i32
    %c0_i32_0 = arith.constant 0 : i32
    %c0_i32_1 = arith.constant 0 : i32
    return %c0_i32, %c0_i32_0 : i32, i32
  }
  func.func @transform_4(%arg0: i32, %arg1: i32) -> (i32, i32) {
    %c0_i32 = arith.constant 0 : i32
    %c0_i32_0 = arith.constant 0 : i32
    return %c0_i32, %arg1 : i32, i32
  }
  func.func @transform_5(%arg0: i32, %arg1: i32) -> (i32, i32, i32) {
    %c0_i32 = arith.constant 0 : i32
    %c0_i32_0 = arith.constant 0 : i32
    return %arg0, %c0_i32, %arg1 : i32, i32, i32
  }
}

module attributes {stable_mosaic.version = 11 : i64} {
  func.func @kernel(%arg0: i32, %arg1: i32, %arg2: memref<1x16x16x128xbf16, #tpu.memory_space<vmem>>, %arg3: memref<3x384x128xbf16, #tpu.memory_space<vmem>>, %arg4: memref<1x128xf32, #tpu.memory_space<vmem>>, %arg5: memref<1x128xf32, #tpu.memory_space<vmem>>, %arg6: memref<1x128xf32, #tpu.memory_space<vmem>>, %arg7: memref<1x16x16x128xf32, #tpu.memory_space<vmem>>, %arg8: memref<128x128xbf16, #tpu.memory_space<vmem>>, %arg9: memref<1x64x128xf32, #tpu.memory_space<vmem>>, %arg10: memref<18x18x128xf32, #tpu.memory_space<vmem>>) attributes {dimension_semantics = [#tpu.dimension_semantics<parallel>, #tpu.dimension_semantics<arbitrary>], iteration_bounds = array<i64: 2, 1>, scalar_prefetch = 0 : i64, scratch_operands = 1 : i64, tpu.core_type = #tpu.core_type<tc>, window_params = [{transform_indices = @transform_0, window_bounds = array<i64: 1, 16, 16, 128>}, {transform_indices = @transform_1, window_bounds = array<i64: 3, 384, 128>}, {pipeline_mode = #tpu.pipeline_mode<synchronous>, transform_indices = @transform_2, window_bounds = array<i64: 1, 128>}, {pipeline_mode = #tpu.pipeline_mode<synchronous>, transform_indices = @transform_3, window_bounds = array<i64: 1, 128>}, {transform_indices = @transform_4, window_bounds = array<i64: 1, 128>}, {transform_indices = @transform_5, window_bounds = array<i64: 1, 16, 16, 128>}, {transform_indices = @transform_6, window_bounds = array<i64: 128, 128>}, {transform_indices = @transform_7, window_bounds = array<i64: 1, 64, 128>}]} {
    %c0_i32 = arith.constant 0 : i32
    %0 = arith.cmpi eq, %arg1, %c0_i32 : i32
    %1 = arith.extui %0 : i1 to i32
    %c0_i32_0 = arith.constant 0 : i32
    %2 = arith.cmpi ne, %1, %c0_i32_0 : i32
    scf.if %2 {
      %cst_48 = arith.constant 0.000000e+00 : f32
      %51 = vector.broadcast %cst_48 : f32 to vector<18x18x128xf32>
      %c0_49 = arith.constant 0 : index
      %c0_50 = arith.constant 0 : index
      %c0_51 = arith.constant 0 : index
      %52 = vector.load %arg10[%c0_49, %c0_50, %c0_51] : memref<18x18x128xf32, #tpu.memory_space<vmem>>, vector<18x18x128xf32>
      tpu.vector_store %arg10[%c0_49, %c0_50, %c0_51], %51 {strides = array<i32>} : memref<18x18x128xf32, #tpu.memory_space<vmem>>, vector<18x18x128xf32>,
      %c0_52 = arith.constant 0 : index
      %c0_53 = arith.constant 0 : index
      %c0_54 = arith.constant 0 : index
      %c0_55 = arith.constant 0 : index
      %53 = vector.load %arg2[%c0_52, %c0_53, %c0_54, %c0_55] : memref<1x16x16x128xbf16, #tpu.memory_space<vmem>>, vector<1x16x16x128xbf16>
      %54 = vector.shape_cast %53 : vector<1x16x16x128xbf16> to vector<16x16x128xbf16>
      %55 = arith.extf %54 : vector<16x16x128xbf16> to vector<16x16x128xf32>
      %c0_56 = arith.constant 0 : index
      %c0_57 = arith.constant 0 : index
      %56 = vector.load %arg4[%c0_56, %c0_57] : memref<1x128xf32, #tpu.memory_space<vmem>>, vector<1x128xf32>
      %57 = vector.shape_cast %56 : vector<1x128xf32> to vector<1x1x128xf32>
      %58 = vector.broadcast %57 : vector<1x1x128xf32> to vector<16x16x128xf32>
      %59 = arith.mulf %55, %58 : vector<16x16x128xf32>
      %c0_58 = arith.constant 0 : index
      %c0_59 = arith.constant 0 : index
      %60 = vector.load %arg5[%c0_58, %c0_59] : memref<1x128xf32, #tpu.memory_space<vmem>>, vector<1x128xf32>
      %61 = vector.shape_cast %60 : vector<1x128xf32> to vector<1x1x128xf32>
      %62 = vector.broadcast %61 : vector<1x1x128xf32> to vector<16x16x128xf32>
      %63 = arith.addf %59, %62 : vector<16x16x128xf32>
      %cst_60 = arith.constant 0.000000e+00 : f32
      %64 = vector.broadcast %cst_60 : f32 to vector<16x16x128xf32>
      %65 = arith.maximumf %63, %64 : vector<16x16x128xf32>
      %c1_61 = arith.constant 1 : index
      %c1_62 = arith.constant 1 : index
      %c0_63 = arith.constant 0 : index
      %66 = vector.load %arg10[%c1_61, %c1_62, %c0_63] : memref<18x18x128xf32, #tpu.memory_space<vmem>>, vector<16x16x128xf32>
      tpu.vector_store %arg10[%c1_61, %c1_62, %c0_63], %65 {strides = array<i32>} : memref<18x18x128xf32, #tpu.memory_space<vmem>>, vector<16x16x128xf32>,
    } else {
    }
    %c0 = arith.constant 0 : index
    %c0_1 = arith.constant 0 : index
    %c0_2 = arith.constant 0 : index
    %3 = tpu.strided_load %arg10[%c0, %c0_1, %c0_2] {strides = array<i32: 2, 2, 1>} : memref<18x18x128xf32, #tpu.memory_space<vmem>>, vector<8x8x128xf32>
    %4 = arith.truncf %3 : vector<8x8x128xf32> to vector<8x8x128xbf16>
    %c0_3 = arith.constant 0 : index
    %c1 = arith.constant 1 : index
    %c0_4 = arith.constant 0 : index
    %5 = tpu.strided_load %arg10[%c0_3, %c1, %c0_4] {strides = array<i32: 2, 2, 1>} : memref<18x18x128xf32, #tpu.memory_space<vmem>>, vector<8x8x128xf32>
    %6 = arith.truncf %5 : vector<8x8x128xf32> to vector<8x8x128xbf16>
    %c0_5 = arith.constant 0 : index
    %c2 = arith.constant 2 : index
    %c0_6 = arith.constant 0 : index
    %7 = tpu.strided_load %arg10[%c0_5, %c2, %c0_6] {strides = array<i32: 2, 2, 1>} : memref<18x18x128xf32, #tpu.memory_space<vmem>>, vector<8x8x128xf32>
    %8 = arith.truncf %7 : vector<8x8x128xf32> to vector<8x8x128xbf16>
    %9 = tpu.concatenate %4, %6, %8 in 2 : vector<8x8x128xbf16>, vector<8x8x128xbf16>, vector<8x8x128xbf16> -> vector<8x8x384xbf16>
    %10 = vector.shape_cast %9 : vector<8x8x384xbf16> to vector<64x384xbf16>
    %c0_7 = arith.constant 0 : index
    %c0_8 = arith.constant 0 : index
    %c0_9 = arith.constant 0 : index
    %11 = vector.load %arg3[%c0_7, %c0_8, %c0_9] : memref<3x384x128xbf16, #tpu.memory_space<vmem>>, vector<1x384x128xbf16>
    %12 = vector.shape_cast %11 : vector<1x384x128xbf16> to vector<384x128xbf16>
    %cst = arith.constant dense<0.000000e+00> : vector<64x128xf32>
    %13 = tpu.matmul %10, %12, %cst {dimension_numbers = #tpu.dot_dimension_numbers<[1], [0], [0], [1], [0, 0, 1, 1], [], []>} : vector<64x384xbf16>, vector<384x128xbf16>, vector<64x128xf32> -> vector<64x128xf32>
    %c0_10 = arith.constant 0 : index
    %c0_11 = arith.constant 0 : index
    %14 = vector.load %arg6[%c0_10, %c0_11] : memref<1x128xf32, #tpu.memory_space<vmem>>, vector<1x128xf32>
    %15 = vector.broadcast %14 : vector<1x128xf32> to vector<64x128xf32>
    %16 = arith.addf %13, %15 : vector<64x128xf32>
    %c1_12 = arith.constant 1 : index
    %c0_13 = arith.constant 0 : index
    %c0_14 = arith.constant 0 : index
    %17 = tpu.strided_load %arg10[%c1_12, %c0_13, %c0_14] {strides = array<i32: 2, 2, 1>} : memref<18x18x128xf32, #tpu.memory_space<vmem>>, vector<8x8x128xf32>
    %18 = arith.truncf %17 : vector<8x8x128xf32> to vector<8x8x128xbf16>
    %c1_15 = arith.constant 1 : index
    %c1_16 = arith.constant 1 : index
    %c0_17 = arith.constant 0 : index
    %19 = tpu.strided_load %arg10[%c1_15, %c1_16, %c0_17] {strides = array<i32: 2, 2, 1>} : memref<18x18x128xf32, #tpu.memory_space<vmem>>, vector<8x8x128xf32>
    %20 = arith.truncf %19 : vector<8x8x128xf32> to vector<8x8x128xbf16>
    %c1_18 = arith.constant 1 : index
    %c2_19 = arith.constant 2 : index
    %c0_20 = arith.constant 0 : index
    %21 = tpu.strided_load %arg10[%c1_18, %c2_19, %c0_20] {strides = array<i32: 2, 2, 1>} : memref<18x18x128xf32, #tpu.memory_space<vmem>>, vector<8x8x128xf32>
    %22 = arith.truncf %21 : vector<8x8x128xf32> to vector<8x8x128xbf16>
    %23 = tpu.concatenate %18, %20, %22 in 2 : vector<8x8x128xbf16>, vector<8x8x128xbf16>, vector<8x8x128xbf16> -> vector<8x8x384xbf16>
    %24 = vector.shape_cast %23 : vector<8x8x384xbf16> to vector<64x384xbf16>
    %c1_21 = arith.constant 1 : index
    %c0_22 = arith.constant 0 : index
    %c0_23 = arith.constant 0 : index
    %25 = vector.load %arg3[%c1_21, %c0_22, %c0_23] : memref<3x384x128xbf16, #tpu.memory_space<vmem>>, vector<1x384x128xbf16>
    %26 = vector.shape_cast %25 : vector<1x384x128xbf16> to vector<384x128xbf16>
    %cst_24 = arith.constant dense<0.000000e+00> : vector<64x128xf32>
    %27 = tpu.matmul %24, %26, %cst_24 {dimension_numbers = #tpu.dot_dimension_numbers<[1], [0], [0], [1], [0, 0, 1, 1], [], []>} : vector<64x384xbf16>, vector<384x128xbf16>, vector<64x128xf32> -> vector<64x128xf32>
    %28 = arith.addf %16, %27 : vector<64x128xf32>
    %c2_25 = arith.constant 2 : index
    %c0_26 = arith.constant 0 : index
    %c0_27 = arith.constant 0 : index
    %29 = tpu.strided_load %arg10[%c2_25, %c0_26, %c0_27] {strides = array<i32: 2, 2, 1>} : memref<18x18x128xf32, #tpu.memory_space<vmem>>, vector<8x8x128xf32>
    %30 = arith.truncf %29 : vector<8x8x128xf32> to vector<8x8x128xbf16>
    %c2_28 = arith.constant 2 : index
    %c1_29 = arith.constant 1 : index
    %c0_30 = arith.constant 0 : index
    %31 = tpu.strided_load %arg10[%c2_28, %c1_29, %c0_30] {strides = array<i32: 2, 2, 1>} : memref<18x18x128xf32, #tpu.memory_space<vmem>>, vector<8x8x128xf32>
    %32 = arith.truncf %31 : vector<8x8x128xf32> to vector<8x8x128xbf16>
    %c2_31 = arith.constant 2 : index
    %c2_32 = arith.constant 2 : index
    %c0_33 = arith.constant 0 : index
    %33 = tpu.strided_load %arg10[%c2_31, %c2_32, %c0_33] {strides = array<i32: 2, 2, 1>} : memref<18x18x128xf32, #tpu.memory_space<vmem>>, vector<8x8x128xf32>
    %34 = arith.truncf %33 : vector<8x8x128xf32> to vector<8x8x128xbf16>
    %35 = tpu.concatenate %30, %32, %34 in 2 : vector<8x8x128xbf16>, vector<8x8x128xbf16>, vector<8x8x128xbf16> -> vector<8x8x384xbf16>
    %36 = vector.shape_cast %35 : vector<8x8x384xbf16> to vector<64x384xbf16>
    %c2_34 = arith.constant 2 : index
    %c0_35 = arith.constant 0 : index
    %c0_36 = arith.constant 0 : index
    %37 = vector.load %arg3[%c2_34, %c0_35, %c0_36] : memref<3x384x128xbf16, #tpu.memory_space<vmem>>, vector<1x384x128xbf16>
    %38 = vector.shape_cast %37 : vector<1x384x128xbf16> to vector<384x128xbf16>
    %cst_37 = arith.constant dense<0.000000e+00> : vector<64x128xf32>
    %39 = tpu.matmul %36, %38, %cst_37 {dimension_numbers = #tpu.dot_dimension_numbers<[1], [0], [0], [1], [0, 0, 1, 1], [], []>} : vector<64x384xbf16>, vector<384x128xbf16>, vector<64x128xf32> -> vector<64x128xf32>
    %40 = arith.addf %28, %39 : vector<64x128xf32>
    %c0_38 = arith.constant 0 : index
    %c0_39 = arith.constant 0 : index
    %c0_40 = arith.constant 0 : index
    %c0_41 = arith.constant 0 : index
    %41 = tpu.strided_load %arg7[%c0_38, %c0_39, %c0_40, %c0_41] {strides = array<i32: 1, 2, 2, 1>} : memref<1x16x16x128xf32, #tpu.memory_space<vmem>>, vector<1x8x8x128xf32>
    %42 = vector.shape_cast %41 : vector<1x8x8x128xf32> to vector<8x8x128xf32>
    %43 = vector.shape_cast %42 : vector<8x8x128xf32> to vector<64x128xf32>
    %44 = arith.truncf %43 : vector<64x128xf32> to vector<64x128xbf16>
    %c0_42 = arith.constant 0 : index
    %c0_43 = arith.constant 0 : index
    %45 = vector.load %arg8[%c0_42, %c0_43] : memref<128x128xbf16, #tpu.memory_space<vmem>>, vector<128x128xbf16>
    %cst_44 = arith.constant dense<0.000000e+00> : vector<64x128xf32>
    %46 = tpu.matmul %44, %45, %cst_44 {dimension_numbers = #tpu.dot_dimension_numbers<[1], [0], [0], [1], [0, 0, 1, 1], [], []>} : vector<64x128xbf16>, vector<128x128xbf16>, vector<64x128xf32> -> vector<64x128xf32>
    %47 = arith.addf %40, %46 : vector<64x128xf32>
    %c0_45 = arith.constant 0 : index
    %c0_46 = arith.constant 0 : index
    %c0_47 = arith.constant 0 : index
    %48 = vector.load %arg9[%c0_45, %c0_46, %c0_47] : memref<1x64x128xf32, #tpu.memory_space<vmem>>, vector<1x64x128xf32>
    %49 = vector.shape_cast %48 : vector<1x64x128xf32> to vector<64x128xf32>
    %50 = vector.shape_cast %47 : vector<64x128xf32> to vector<1x64x128xf32>
    tpu.vector_store %arg9[%c0_45, %c0_46, %c0_47], %50 {strides = array<i32>} : memref<1x64x128xf32, #tpu.memory_space<vmem>>, vector<1x64x128xf32>,
    return
  }
  func.func @transform_0(%arg0: i32, %arg1: i32) -> (i32, i32, i32, i32) {
    %c0_i32 = arith.constant 0 : i32
    %c0_i32_0 = arith.constant 0 : i32
    %c0_i32_1 = arith.constant 0 : i32
    %c0_i32_2 = arith.constant 0 : i32
    return %arg0, %c0_i32, %c0_i32_0, %c0_i32_1 : i32, i32, i32, i32
  }
  func.func @transform_1(%arg0: i32, %arg1: i32) -> (i32, i32, i32) {
    %c0_i32 = arith.constant 0 : i32
    %c0_i32_0 = arith.constant 0 : i32
    %c0_i32_1 = arith.constant 0 : i32
    return %c0_i32, %c0_i32_0, %arg1 : i32, i32, i32
  }
  func.func @transform_2(%arg0: i32, %arg1: i32) -> (i32, i32) {
    %c0_i32 = arith.constant 0 : i32
    %c0_i32_0 = arith.constant 0 : i32
    %c0_i32_1 = arith.constant 0 : i32
    return %c0_i32, %c0_i32_0 : i32, i32
  }
  func.func @transform_3(%arg0: i32, %arg1: i32) -> (i32, i32) {
    %c0_i32 = arith.constant 0 : i32
    %c0_i32_0 = arith.constant 0 : i32
    %c0_i32_1 = arith.constant 0 : i32
    return %c0_i32, %c0_i32_0 : i32, i32
  }
  func.func @transform_4(%arg0: i32, %arg1: i32) -> (i32, i32) {
    %c0_i32 = arith.constant 0 : i32
    %c0_i32_0 = arith.constant 0 : i32
    return %c0_i32, %arg1 : i32, i32
  }
  func.func @transform_5(%arg0: i32, %arg1: i32) -> (i32, i32, i32, i32) {
    %c0_i32 = arith.constant 0 : i32
    %c0_i32_0 = arith.constant 0 : i32
    %c0_i32_1 = arith.constant 0 : i32
    %c0_i32_2 = arith.constant 0 : i32
    return %arg0, %c0_i32, %c0_i32_0, %c0_i32_1 : i32, i32, i32, i32
  }
  func.func @transform_6(%arg0: i32, %arg1: i32) -> (i32, i32) {
    %c0_i32 = arith.constant 0 : i32
    %c0_i32_0 = arith.constant 0 : i32
    return %c0_i32, %arg1 : i32, i32
  }
  func.func @transform_7(%arg0: i32, %arg1: i32) -> (i32, i32, i32) {
    %c0_i32 = arith.constant 0 : i32
    %c0_i32_0 = arith.constant 0 : i32
    return %arg0, %c0_i32, %arg1 : i32, i32, i32
  }
}

</mosaic_0001>

<llo_original>
// kernel: wide_basic_forward.3
$region0: #{wide_basic_forward.3}
  #allocation0 [shape = 'u32[]', space=smem, size = 0x4, offset = 0x4, fixed_abs, tag = 'smem constant byte address 0x4 - core index']
  #allocation1 [shape = 'u32[144,128]{1,0:T(1,128)}', space=vmem, size = 0x12000, scoped, tag = 'internal scratch']
  #allocation2 [shape = 'f32[18,18,128]{2,1,0:T(8,128)}', space=vmem, size = 0x36000, scoped, tag = 'scratch operand']
  %s0 = inlined_call_operand.vmem [shape: bf16[2,16,16,128], index: 0, kind: input, shape index: {}]
  %s1 = inlined_call_operand.vmem [shape: bf16[3,384,128], index: 1, kind: input, shape index: {}]
  %s2 = inlined_call_operand.vmem [shape: f32[1,128], index: 2, kind: input, shape index: {}]
  %s3 = inlined_call_operand.vmem [shape: f32[1,128], index: 3, kind: input, shape index: {}]
  %s4 = inlined_call_operand.vmem [shape: f32[1,128], index: 4, kind: input, shape index: {}]
  %s5 = inlined_call_operand.vmem [shape: f32[2,16,16,128], index: 5, kind: input, shape index: {}]
  %s6 = inlined_call_operand.vmem [shape: bf16[128,128], index: 6, kind: input, shape index: {}]
  %s7 = inlined_call_operand.vmem [shape: f32[2,64,128], index: 7, kind: output, shape index: {}]
  %s8 = sld [smem:[#allocation0]]
  $region65: #{wide_basic_forward.3} parent=0
    _
  %s10 = ssub.s32 1, %s8
  %s11 = scalar_select 0, %s10, %s8
  loop: start=0, step=1, limit=4
  $region2: #{wide_basic_forward.3} parent=0 // loop_pre_header
    _
  $region3: #{wide_basic_forward.3} parent=0 // loop_header
    %s13 = sphi 0, %s17
    %p14 = scmp.ge.s32.totalorder %s13, 4
    %s20 = sphi 0, %s32
    %s21 = sphi 0, %s28
    %s22 = sphi 0, %s20
    %s23 = sphi 0, %s21
    %s24 = sphi 0, %s22
    %s25 = sphi 0, %s23
    %s35 = sphi 0, %s37
    %s38 = sphi 0, %s35
    %s39 = sphi 0, %s38
    %s55 = sphi 0, %s39
    %s61 = sphi 0, %s63
    %s64 = sphi 0, %s61
    %s65 = sphi 0, %s64
    %s81 = sphi 0, %s65
    %s85 = sphi 0, %s85
    %s87 = sphi 0, %s85
    %s88 = sphi 0, %s87
    %s102 = sphi 0, %s88
    %s106 = sphi 0, %s106
    %s108 = sphi 0, %s106
    %s109 = sphi 0, %s108
    %s123 = sphi 0, %s109
    %s129 = sphi 0, %s131
    %s132 = sphi 0, %s129
    %s133 = sphi 0, %s132
    %s149 = sphi 0, %s133
    %s155 = sphi 0, %s157
    %s158 = sphi 0, %s155
    %s159 = sphi 0, %s158
    %s175 = sphi 0, %s159
    %s181 = sphi 0, %s183
    %s184 = sphi 0, %s181
    %s185 = sphi 0, %s184
    %s201 = sphi 0, %s185
    %s209 = sphi 0, %s211
    %s212 = sphi 0, %s209
    %s213 = sphi 0, %s212
    %s229 = sphi 0, %s213
  $region4: #{wide_basic_forward.3} parent=0 // loop_header_branch
    %16 = sbr.rel (%p14) target = $region8
  $region5: #{wide_basic_forward.3} parent=0 // loop_body
    %s18 = ssub.s32 %s13, 1
    %s19 = ssub.s32 %s13, 2
    %s26 = sadd.s32 1, %s21
    %p27 = scmp.ge.s32.totalorder %s26, 1
    %s28 = scalar_select %p27, 0, %s26
    %s29 = sadd.s32 1, %s20
    %s30 = scalar_select %p27, %s29, %s20
    %p31 = scmp.ge.s32.totalorder %s30, 2
    %s32 = scalar_select %p31, 0, %s30
    %s33 = ssub.s32 %s20, %s32
    %p34 = scmp.eq.s32.totalorder %s33, 0
    %s36 = sadd.s32 %s35, 1
    %s37 = scalar_select %p34, %s35, %s36
    %p40 = pneg %p34
    %p41 = scmp.eq.s32.totalorder %s13, 1
    %p42 = por %p40, %p41
    %p43 = scmp.ne.s32.totalorder %s35, %s38
    %p44 = scmp.eq.s32.totalorder %s13, 0
    %p45 = por %p43, %p44
    %p46 = scmp.ne.s32.totalorder %s35, %s38
    %p47 = scmp.eq.s32.totalorder %s18, 1
    %p48 = por %p46, %p47
    %p49 = scmp.ne.s32.totalorder %s38, %s39
    %p50 = scmp.eq.s32.totalorder %s18, 0
    %p51 = por %p49, %p50
    %p52 = scmp.ne.s32.totalorder %s38, %s39
    %p53 = scmp.eq.s32.totalorder %s19, 1
    %p54 = por %p52, %p53
    %p56 = scmp.ne.s32.totalorder %s39, %s55
    %p57 = scmp.eq.s32.totalorder %s19, 0
    %p58 = por %p56, %p57
    %s59 = ssub.s32 %s21, %s28
    %p60 = scmp.eq.s32.totalorder %s59, 0
    %s62 = sadd.s32 %s61, 1
    %s63 = scalar_select %p60, %s61, %s62
    %p66 = pneg %p60
    %p67 = scmp.eq.s32.totalorder %s13, 1
    %p68 = por %p66, %p67
    %p69 = scmp.ne.s32.totalorder %s61, %s64
    %p70 = scmp.eq.s32.totalorder %s13, 0
    %p71 = por %p69, %p70
    %p72 = scmp.ne.s32.totalorder %s61, %s64
    %p73 = scmp.eq.s32.totalorder %s18, 1
    %p74 = por %p72, %p73
    %p75 = scmp.ne.s32.totalorder %s64, %s65
    %p76 = scmp.eq.s32.totalorder %s18, 0
    %p77 = por %p75, %p76
    %p78 = scmp.ne.s32.totalorder %s64, %s65
    %p79 = scmp.eq.s32.totalorder %s19, 1
    %p80 = por %p78, %p79
    %p82 = scmp.ne.s32.totalorder %s65, %s81
    %p83 = scmp.eq.s32.totalorder %s19, 0
    %p84 = por %p82, %p83
    %s86 = sadd.s32 %s85, 1
    %p89 = scmp.eq.s32.totalorder %s13, 1
    %p90 = scmp.ne.s32.totalorder %s85, %s87
    %p91 = scmp.eq.s32.totalorder %s13, 0
    %p92 = por %p90, %p91
    %p93 = scmp.ne.s32.totalorder %s85, %s87
    %p94 = scmp.eq.s32.totalorder %s18, 1
    %p95 = por %p93, %p94
    %p96 = scmp.ne.s32.totalorder %s87, %s88
    %p97 = scmp.eq.s32.totalorder %s18, 0
    %p98 = por %p96, %p97
    %p99 = scmp.ne.s32.totalorder %s87, %s88
    %p100 = scmp.eq.s32.totalorder %s19, 1
    %p101 = por %p99, %p100
    %p103 = scmp.ne.s32.totalorder %s88, %s102
    %p104 = scmp.eq.s32.totalorder %s19, 0
    %p105 = por %p103, %p104
    %s107 = sadd.s32 %s106, 1
    %p110 = scmp.eq.s32.totalorder %s13, 1
    %p111 = scmp.ne.s32.totalorder %s106, %s108
    %p112 = scmp.eq.s32.totalorder %s13, 0
    %p113 = por %p111, %p112
    %p114 = scmp.ne.s32.totalorder %s106, %s108
    %p115 = scmp.eq.s32.totalorder %s18, 1
    %p116 = por %p114, %p115
    %p117 = scmp.ne.s32.totalorder %s108, %s109
    %p118 = scmp.eq.s32.totalorder %s18, 0
    %p119 = por %p117, %p118
    %p120 = scmp.ne.s32.totalorder %s108, %s109
    %p121 = scmp.eq.s32.totalorder %s19, 1
    %p122 = por %p120, %p121
    %p124 = scmp.ne.s32.totalorder %s109, %s123
    %p125 = scmp.eq.s32.totalorder %s19, 0
    %p126 = por %p124, %p125
    %s127 = ssub.s32 %s21, %s28
    %p128 = scmp.eq.s32.totalorder %s127, 0
    %s130 = sadd.s32 %s129, 1
    %s131 = scalar_select %p128, %s129, %s130
    %p134 = pneg %p128
    %p135 = scmp.eq.s32.totalorder %s13, 1
    %p136 = por %p134, %p135
    %p137 = scmp.ne.s32.totalorder %s129, %s132
    %p138 = scmp.eq.s32.totalorder %s13, 0
    %p139 = por %p137, %p138
    %p140 = scmp.ne.s32.totalorder %s129, %s132
    %p141 = scmp.eq.s32.totalorder %s18, 1
    %p142 = por %p140, %p141
    %p143 = scmp.ne.s32.totalorder %s132, %s133
    %p144 = scmp.eq.s32.totalorder %s18, 0
    %p145 = por %p143, %p144
    %p146 = scmp.ne.s32.totalorder %s132, %s133
    %p147 = scmp.eq.s32.totalorder %s19, 1
    %p148 = por %p146, %p147
    %p150 = scmp.ne.s32.totalorder %s133, %s149
    %p151 = scmp.eq.s32.totalorder %s19, 0
    %p152 = por %p150, %p151
    %s153 = ssub.s32 %s20, %s32
    %p154 = scmp.eq.s32.totalorder %s153, 0
    %s156 = sadd.s32 %s155, 1
    %s157 = scalar_select %p154, %s155, %s156
    %p160 = pneg %p154
    %p161 = scmp.eq.s32.totalorder %s13, 1
    %p162 = por %p160, %p161
    %p163 = scmp.ne.s32.totalorder %s155, %s158
    %p164 = scmp.eq.s32.totalorder %s13, 0
    %p165 = por %p163, %p164
    %p166 = scmp.ne.s32.totalorder %s155, %s158
    %p167 = scmp.eq.s32.totalorder %s18, 1
    %p168 = por %p166, %p167
    %p169 = scmp.ne.s32.totalorder %s158, %s159
    %p170 = scmp.eq.s32.totalorder %s18, 0
    %p171 = por %p169, %p170
    %p172 = scmp.ne.s32.totalorder %s158, %s159
    %p173 = scmp.eq.s32.totalorder %s19, 1
    %p174 = por %p172, %p173
    %p176 = scmp.ne.s32.totalorder %s159, %s175
    %p177 = scmp.eq.s32.totalorder %s19, 0
    %p178 = por %p176, %p177
    %s179 = ssub.s32 %s21, %s28
    %p180 = scmp.eq.s32.totalorder %s179, 0
    %s182 = sadd.s32 %s181, 1
    %s183 = scalar_select %p180, %s181, %s182
    %p186 = pneg %p180
    %p187 = scmp.eq.s32.totalorder %s13, 1
    %p188 = por %p186, %p187
    %p189 = scmp.ne.s32.totalorder %s181, %s184
    %p190 = scmp.eq.s32.totalorder %s13, 0
    %p191 = por %p189, %p190
    %p192 = scmp.ne.s32.totalorder %s181, %s184
    %p193 = scmp.eq.s32.totalorder %s18, 1
    %p194 = por %p192, %p193
    %p195 = scmp.ne.s32.totalorder %s184, %s185
    %p196 = scmp.eq.s32.totalorder %s18, 0
    %p197 = por %p195, %p196
    %p198 = scmp.ne.s32.totalorder %s184, %s185
    %p199 = scmp.eq.s32.totalorder %s19, 1
    %p200 = por %p198, %p199
    %p202 = scmp.ne.s32.totalorder %s185, %s201
    %p203 = scmp.eq.s32.totalorder %s19, 0
    %p204 = por %p202, %p203
    %s205 = ssub.s32 %s20, %s32
    %s206 = ssub.s32 %s21, %s28
    %s207 = sor.u32 %s205, %s206
    %p208 = scmp.eq.s32.totalorder %s207, 0
    %s210 = sadd.s32 %s209, 1
    %s211 = scalar_select %p208, %s209, %s210
    %p214 = pneg %p208
    %p215 = scmp.eq.s32.totalorder %s13, 1
    %p216 = por %p214, %p215
    %p217 = scmp.ne.s32.totalorder %s209, %s212
    %p218 = scmp.eq.s32.totalorder %s13, 0
    %p219 = por %p217, %p218
    %p220 = scmp.ne.s32.totalorder %s209, %s212
    %p221 = scmp.eq.s32.totalorder %s18, 1
    %p222 = por %p220, %p221
    %p223 = scmp.ne.s32.totalorder %s212, %s213
    %p224 = scmp.eq.s32.totalorder %s18, 0
    %p225 = por %p223, %p224
    %p226 = scmp.ne.s32.totalorder %s212, %s213
    %p227 = scmp.eq.s32.totalorder %s19, 1
    %p228 = por %p226, %p227
    %p230 = scmp.ne.s32.totalorder %s213, %s229
    %p231 = scmp.eq.s32.totalorder %s19, 0
    %p232 = por %p230, %p231
    %p233 = scmp.le.s32.totalorder 1, %s13
    %p234 = scmp.lt.s32.totalorder %s13, 3
    %p235 = pnand %p233, %p234
    %p236 = pneg %p235
    // Predicated region
    $region9: #{wide_basic_forward.3} parent=5 // pred_check
      _
    $region10: #{wide_basic_forward.3} parent=5 // pred_check_branch
      %238 = sbr.rel (%p235) target = $region12
    $region11: #{wide_basic_forward.3} parent=5 // pred_region
      %s239 = ssub.s32 %s13, 1
      // Predicated region
      $region13: #{wide_basic_forward.3} parent=11 // pred_check
        %p240 = pneg %p77
      $region14: #{wide_basic_forward.3} parent=11 // pred_check_branch
        %242 = sbr.rel (%p240) target = $region16
      $region15: #{wide_basic_forward.3} parent=11 // pred_region
        %p243 = scmp.lt.s32.totalorder %s23, 0
        %s244 = scalar_select %p243, %s23, 0
        %s245 = smul.addr %s244, 4
        %s246 = scalar_lea.vmem %s1, %s245
      $region16: #{wide_basic_forward.3} parent=11 // pred_fallthru
        _
      // Predicated region
      $region17: #{wide_basic_forward.3} parent=11 // pred_check
        %p247 = pneg %p98
      $region18: #{wide_basic_forward.3} parent=11 // pred_check_branch
        %249 = sbr.rel (%p247) target = $region20
      $region19: #{wide_basic_forward.3} parent=11 // pred_region
        _
      $region20: #{wide_basic_forward.3} parent=11 // pred_fallthru
        _
      // Predicated region
      $region21: #{wide_basic_forward.3} parent=11 // pred_check
        %p250 = pneg %p119
      $region22: #{wide_basic_forward.3} parent=11 // pred_check_branch
        %252 = sbr.rel (%p250) target = $region24
      $region23: #{wide_basic_forward.3} parent=11 // pred_region
        _
      $region24: #{wide_basic_forward.3} parent=11 // pred_fallthru
        _
      // Predicated region
      $region25: #{wide_basic_forward.3} parent=11 // pred_check
        %p253 = pneg %p145
      $region26: #{wide_basic_forward.3} parent=11 // pred_check_branch
        %255 = sbr.rel (%p253) target = $region28
      $region27: #{wide_basic_forward.3} parent=11 // pred_region
        %p256 = scmp.lt.s32.totalorder %s23, 0
        %s257 = scalar_select %p256, %s23, 0
        %s258 = scalar_lea.vmem %s4, %s257
      $region28: #{wide_basic_forward.3} parent=11 // pred_fallthru
        _
      // Predicated region
      $region29: #{wide_basic_forward.3} parent=11 // pred_check
        %p259 = pneg %p197
      $region30: #{wide_basic_forward.3} parent=11 // pred_check_branch
        %261 = sbr.rel (%p259) target = $region32
      $region31: #{wide_basic_forward.3} parent=11 // pred_region
        %p262 = scmp.lt.s32.totalorder %s23, 0
        %s263 = scalar_select %p262, %s23, 0
        %s264 = smul.addr %s263, 4
        %s265 = scalar_lea.vmem %s6, %s264
      $region32: #{wide_basic_forward.3} parent=11 // pred_fallthru
        _
    $region12: #{wide_basic_forward.3} parent=5 // pred_fallthru
      _
    %p266 = scmp.lt.s32.totalorder %s13, 2
    // Predicated region
    $region33: #{wide_basic_forward.3} parent=5 // pred_check
      %p267 = pneg %p266
    $region34: #{wide_basic_forward.3} parent=5 // pred_check_branch
      %269 = sbr.rel (%p267) target = $region36
    $region35: #{wide_basic_forward.3} parent=5 // pred_region
      // Predicated region
      $region37: #{wide_basic_forward.3} parent=35 // pred_check
        %p270 = pneg %p45
      $region38: #{wide_basic_forward.3} parent=35 // pred_check_branch
        %272 = sbr.rel (%p270) target = $region40
      $region39: #{wide_basic_forward.3} parent=35 // pred_region
        %p273 = scmp.lt.s32.totalorder %s20, 1
        %s274 = scalar_select %p273, %s20, 1
        %s275 = smul.addr %s274, 32
        %s276 = smul.addr %s275, 4
        %s277 = scalar_lea.vmem %s0, %s276
      $region40: #{wide_basic_forward.3} parent=35 // pred_fallthru
        _
      // Predicated region
      $region41: #{wide_basic_forward.3} parent=35 // pred_check
        %p278 = pneg %p165
      $region42: #{wide_basic_forward.3} parent=35 // pred_check_branch
        %280 = sbr.rel (%p278) target = $region44
      $region43: #{wide_basic_forward.3} parent=35 // pred_region
        %p281 = scmp.lt.s32.totalorder %s20, 1
        %s282 = scalar_select %p281, %s20, 1
        %s283 = smul.addr %s282, 32
        %s284 = smul.addr %s283, 8
        %s285 = scalar_lea.vmem %s5, %s284
      $region44: #{wide_basic_forward.3} parent=35 // pred_fallthru
        _
    $region36: #{wide_basic_forward.3} parent=5 // pred_fallthru
      _
    %p286 = scmp.le.s32.totalorder 1, %s13
    %p287 = scmp.lt.s32.totalorder %s13, 3
    %p288 = pnand %p286, %p287
    %p289 = pneg %p288
    // Predicated region
    $region45: #{wide_basic_forward.3} parent=5 // pred_check
      _
    $region46: #{wide_basic_forward.3} parent=5 // pred_check_branch
      %291 = sbr.rel (%p288) target = $region48
    $region47: #{wide_basic_forward.3} parent=5 // pred_region
      %s292 = ssub.s32 %s13, 1
      %p293 = scmp.lt.s32.totalorder %s22, 1
      %s294 = scalar_select %p293, %s22, 1
      %s295 = smul.addr %s294, 32
      %s296 = smul.addr %s295, 4
      %s297 = scalar_lea.vmem %s0, %s296
      %p298 = pneg %p51
      %p299 = pneg %p48
      %p300 = scmp.lt.s32.totalorder %s23, 0
      %s301 = scalar_select %p300, %s23, 0
      %s302 = smul.addr %s301, 4
      %s303 = scalar_lea.vmem %s1, %s302
      %p304 = pneg %p77
      %p305 = pneg %p74
      %p306 = pneg %p98
      %p307 = pneg %p95
      %p308 = pneg %p119
      %p309 = pneg %p116
      %p310 = scmp.lt.s32.totalorder %s23, 0
      %s311 = scalar_select %p310, %s23, 0
      %s312 = scalar_lea.vmem %s4, %s311
      %p313 = pneg %p145
      %p314 = pneg %p142
      %p315 = scmp.lt.s32.totalorder %s22, 1
      %s316 = scalar_select %p315, %s22, 1
      %s317 = smul.addr %s316, 32
      %s318 = smul.addr %s317, 8
      %s319 = scalar_lea.vmem %s5, %s318
      %p320 = pneg %p171
      %p321 = pneg %p168
      %p322 = scmp.lt.s32.totalorder %s23, 0
      %s323 = scalar_select %p322, %s23, 0
      %s324 = smul.addr %s323, 4
      %s325 = scalar_lea.vmem %s6, %s324
      %p326 = pneg %p197
      %p327 = pneg %p194
      %p328 = pneg %p225
      %p329 = pneg %p222
      %p330 = scmp.lt.s32.totalorder %s22, 1
      %s331 = scalar_select %p330, %s22, 1
      %p332 = scmp.lt.s32.totalorder %s23, 0
      %s333 = scalar_select %p332, %s23, 0
      %s334 = smul.addr %s331, 8
      %s335 = sadd.s32 %s333, %s334
      %s336 = smul.addr %s335, 8
      %s337 = scalar_lea.vmem %s7, %s336
      %p338 = scmp.lt.s32.totalorder %s22, 1
      %s339 = scalar_select %p338, %s22, 1
      %s340 = smul.addr %s339, 32
      %s341 = smul.addr %s340, 4
      %s342 = scalar_lea.vmem %s0, %s341
      %p343 = scmp.lt.s32.totalorder %s23, 0
      %s344 = scalar_select %p343, %s23, 0
      %s345 = smul.addr %s344, 4
      %s346 = scalar_lea.vmem %s1, %s345
      %p347 = scmp.lt.s32.totalorder %s23, 0
      %s348 = scalar_select %p347, %s23, 0
      %s349 = scalar_lea.vmem %s4, %s348
      %p350 = scmp.lt.s32.totalorder %s22, 1
      %s351 = scalar_select %p350, %s22, 1
      %s352 = smul.addr %s351, 32
      %s353 = smul.addr %s352, 8
      %s354 = scalar_lea.vmem %s5, %s353
      %p355 = scmp.lt.s32.totalorder %s23, 0
      %s356 = scalar_select %p355, %s23, 0
      %s357 = smul.addr %s356, 4
      %s358 = scalar_lea.vmem %s6, %s357
      %p359 = scmp.lt.s32.totalorder %s22, 1
      %s360 = scalar_select %p359, %s22, 1
      %p361 = scmp.lt.s32.totalorder %s23, 0
      %s362 = scalar_select %p361, %s23, 0
      %s363 = smul.addr %s360, 8
      %s364 = sadd.s32 %s362, %s363
      %s365 = smul.addr %s364, 8
      %s366 = scalar_lea.vmem %s7, %s365
      %p368 = scmp.eq.s32.totalorder %s23, 0
      // Predicated region
      $region49: #{wide_basic_forward.3} parent=47 // pred_check
        %p369 = pneg %p368
      $region50: #{wide_basic_forward.3} parent=47 // pred_check_branch
        %371 = sbr.rel (%p369) target = $region52
      $region51: #{wide_basic_forward.3} parent=47 // pred_region
        %372 = vst [vmem:[#allocation2] sm:$0xff] 0.0
        %373 = vst [vmem:[#allocation2 + $0x8] sm:$0xff] 0.0
        %374 = vst [vmem:[#allocation2 + $0x10] sm:$0x3] 0.0
        %375 = vst [vmem:[#allocation2 + $0x18] sm:$0xff] 0.0
        %376 = vst [vmem:[#allocation2 + $0x20] sm:$0xff] 0.0
        %377 = vst [vmem:[#allocation2 + $0x28] sm:$0x3] 0.0
        %378 = vst [vmem:[#allocation2 + $0x30] sm:$0xff] 0.0
        %379 = vst [vmem:[#allocation2 + $0x38] sm:$0xff] 0.0
        %380 = vst [vmem:[#allocation2 + $0x40] sm:$0x3] 0.0
        %381 = vst [vmem:[#allocation2 + $0x48] sm:$0xff] 0.0
        %382 = vst [vmem:[#allocation2 + $0x50] sm:$0xff] 0.0
        %383 = vst [vmem:[#allocation2 + $0x58] sm:$0x3] 0.0
        %384 = vst [vmem:[#allocation2 + $0x60] sm:$0xff] 0.0
        %385 = vst [vmem:[#allocation2 + $0x68] sm:$0xff] 0.0
        %386 = vst [vmem:[#allocation2 + $0x70] sm:$0x3] 0.0
        %387 = vst [vmem:[#allocation2 + $0x78] sm:$0xff] 0.0
        %388 = vst [vmem:[#allocation2 + $0x80] sm:$0xff] 0.0
        %389 = vst [vmem:[#allocation2 + $0x88] sm:$0x3] 0.0
        %390 = vst [vmem:[#allocation2 + $0x90] sm:$0xff] 0.0
        %391 = vst [vmem:[#allocation2 + $0x98] sm:$0xff] 0.0
        %392 = vst [vmem:[#allocation2 + $0xa0] sm:$0x3] 0.0
        %393 = vst [vmem:[#allocation2 + $0xa8] sm:$0xff] 0.0
        %394 = vst [vmem:[#allocation2 + $0xb0] sm:$0xff] 0.0
        %395 = vst [vmem:[#allocation2 + $0xb8] sm:$0x3] 0.0
        %396 = vst [vmem:[#allocation2 + $0xc0] sm:$0xff] 0.0
        %397 = vst [vmem:[#allocation2 + $0xc8] sm:$0xff] 0.0
        %398 = vst [vmem:[#allocation2 + $0xd0] sm:$0x3] 0.0
        %399 = vst [vmem:[#allocation2 + $0xd8] sm:$0xff] 0.0
        %400 = vst [vmem:[#allocation2 + $0xe0] sm:$0xff] 0.0
        %401 = vst [vmem:[#allocation2 + $0xe8] sm:$0x3] 0.0
        %402 = vst [vmem:[#allocation2 + $0xf0] sm:$0xff] 0.0
        %403 = vst [vmem:[#allocation2 + $0xf8] sm:$0xff] 0.0
        %404 = vst [vmem:[#allocation2 + $0x100] sm:$0x3] 0.0
        %405 = vst [vmem:[#allocation2 + $0x108] sm:$0xff] 0.0
        %406 = vst [vmem:[#allocation2 + $0x110] sm:$0xff] 0.0
        %407 = vst [vmem:[#allocation2 + $0x118] sm:$0x3] 0.0
        %408 = vst [vmem:[#allocation2 + $0x120] sm:$0xff] 0.0
        %409 = vst [vmem:[#allocation2 + $0x128] sm:$0xff] 0.0
        %410 = vst [vmem:[#allocation2 + $0x130] sm:$0x3] 0.0
        %411 = vst [vmem:[#allocation2 + $0x138] sm:$0xff] 0.0
        %412 = vst [vmem:[#allocation2 + $0x140] sm:$0xff] 0.0
        %413 = vst [vmem:[#allocation2 + $0x148] sm:$0x3] 0.0
        %414 = vst [vmem:[#allocation2 + $0x150] sm:$0xff] 0.0
        %415 = vst [vmem:[#allocation2 + $0x158] sm:$0xff] 0.0
        %416 = vst [vmem:[#allocation2 + $0x160] sm:$0x3] 0.0
        %417 = vst [vmem:[#allocation2 + $0x168] sm:$0xff] 0.0
        %418 = vst [vmem:[#allocation2 + $0x170] sm:$0xff] 0.0
        %419 = vst [vmem:[#allocation2 + $0x178] sm:$0x3] 0.0
        %420 = vst [vmem:[#allocation2 + $0x180] sm:$0xff] 0.0
        %421 = vst [vmem:[#allocation2 + $0x188] sm:$0xff] 0.0
        %422 = vst [vmem:[#allocation2 + $0x190] sm:$0x3] 0.0
        %423 = vst [vmem:[#allocation2 + $0x198] sm:$0xff] 0.0
        %424 = vst [vmem:[#allocation2 + $0x1a0] sm:$0xff] 0.0
        %425 = vst [vmem:[#allocation2 + $0x1a8] sm:$0x3] 0.0
        %v426 = vld [vmem:[%s342] sm:$0xf]
        %v427 = vld [vmem:[%s342 + $0x4] sm:$0xf]
        %v428 = vld [vmem:[%s342 + $0x8] sm:$0xf]
        %v429 = vld [vmem:[%s342 + $0xc] sm:$0xf]
        %v430 = vld [vmem:[%s342 + $0x10] sm:$0xf]
        %v431 = vld [vmem:[%s342 + $0x14] sm:$0xf]
        %v432 = vld [vmem:[%s342 + $0x18] sm:$0xf]
        %v433 = vld [vmem:[%s342 + $0x1c] sm:$0xf]
        %v434 = vld [vmem:[%s342 + $0x20] sm:$0xf]
        %v435 = vld [vmem:[%s342 + $0x24] sm:$0xf]
        %v436 = vld [vmem:[%s342 + $0x28] sm:$0xf]
        %v437 = vld [vmem:[%s342 + $0x2c] sm:$0xf]
        %v438 = vld [vmem:[%s342 + $0x30] sm:$0xf]
        %v439 = vld [vmem:[%s342 + $0x34] sm:$0xf]
        %v440 = vld [vmem:[%s342 + $0x38] sm:$0xf]
        %v441 = vld [vmem:[%s342 + $0x3c] sm:$0xf]
        %v442 = vld [vmem:[%s342 + $0x40] sm:$0xf]
        %v443 = vld [vmem:[%s342 + $0x44] sm:$0xf]
        %v444 = vld [vmem:[%s342 + $0x48] sm:$0xf]
        %v445 = vld [vmem:[%s342 + $0x4c] sm:$0xf]
        %v446 = vld [vmem:[%s342 + $0x50] sm:$0xf]
        %v447 = vld [vmem:[%s342 + $0x54] sm:$0xf]
        %v448 = vld [vmem:[%s342 + $0x58] sm:$0xf]
        %v449 = vld [vmem:[%s342 + $0x5c] sm:$0xf]
        %v450 = vld [vmem:[%s342 + $0x60] sm:$0xf]
        %v451 = vld [vmem:[%s342 + $0x64] sm:$0xf]
        %v452 = vld [vmem:[%s342 + $0x68] sm:$0xf]
        %v453 = vld [vmem:[%s342 + $0x6c] sm:$0xf]
        %v454 = vld [vmem:[%s342 + $0x70] sm:$0xf]
        %v455 = vld [vmem:[%s342 + $0x74] sm:$0xf]
        %v456 = vld [vmem:[%s342 + $0x78] sm:$0xf]
        %v457 = vld [vmem:[%s342 + $0x7c] sm:$0xf]
        %v458 = vunpack.c.l.bf16 %v426
        %v459 = vunpack.c.l.bf16 %v427
        %v460 = vunpack.c.l.bf16 %v428
        %v461 = vunpack.c.l.bf16 %v429
        %v462 = vunpack.c.l.bf16 %v430
        %v463 = vunpack.c.l.bf16 %v431
        %v464 = vunpack.c.l.bf16 %v432
        %v465 = vunpack.c.l.bf16 %v433
        %v466 = vunpack.c.l.bf16 %v434
        %v467 = vunpack.c.l.bf16 %v435
        %v468 = vunpack.c.l.bf16 %v436
        %v469 = vunpack.c.l.bf16 %v437
        %v470 = vunpack.c.l.bf16 %v438
        %v471 = vunpack.c.l.bf16 %v439
        %v472 = vunpack.c.l.bf16 %v440
        %v473 = vunpack.c.l.bf16 %v441
        %v474 = vunpack.c.l.bf16 %v442
        %v475 = vunpack.c.l.bf16 %v443
        %v476 = vunpack.c.l.bf16 %v444
        %v477 = vunpack.c.l.bf16 %v445
        %v478 = vunpack.c.l.bf16 %v446
        %v479 = vunpack.c.l.bf16 %v447
        %v480 = vunpack.c.l.bf16 %v448
        %v481 = vunpack.c.l.bf16 %v449
        %v482 = vunpack.c.l.bf16 %v450
        %v483 = vunpack.c.l.bf16 %v451
        %v484 = vunpack.c.l.bf16 %v452
        %v485 = vunpack.c.l.bf16 %v453
        %v486 = vunpack.c.l.bf16 %v454
        %v487 = vunpack.c.l.bf16 %v455
        %v488 = vunpack.c.l.bf16 %v456
        %v489 = vunpack.c.l.bf16 %v457
        %v490 = vld [vmem:[%s2] sm:$0x1]
        %v492 = vlaneseq
        %v493 = vshrl.u32 %v492, 7
        %v494 = vsub.s32 0, %v493
        %v495 = vrot.slane %v490, %v494
        %v497 = vmul.f32 %v458, %v495
        %v498 = vmul.f32 %v459, %v495
        %v499 = vmul.f32 %v460, %v495
        %v500 = vmul.f32 %v461, %v495
        %v501 = vmul.f32 %v462, %v495
        %v502 = vmul.f32 %v463, %v495
        %v503 = vmul.f32 %v464, %v495
        %v504 = vmul.f32 %v465, %v495
        %v505 = vmul.f32 %v466, %v495
        %v506 = vmul.f32 %v467, %v495
        %v507 = vmul.f32 %v468, %v495
        %v508 = vmul.f32 %v469, %v495
        %v509 = vmul.f32 %v470, %v495
        %v510 = vmul.f32 %v471, %v495
        %v511 = vmul.f32 %v472, %v495
        %v512 = vmul.f32 %v473, %v495
        %v513 = vmul.f32 %v474, %v495
        %v514 = vmul.f32 %v475, %v495
        %v515 = vmul.f32 %v476, %v495
        %v516 = vmul.f32 %v477, %v495
        %v517 = vmul.f32 %v478, %v495
        %v518 = vmul.f32 %v479, %v495
        %v519 = vmul.f32 %v480, %v495
        %v520 = vmul.f32 %v481, %v495
        %v521 = vmul.f32 %v482, %v495
        %v522 = vmul.f32 %v483, %v495
        %v523 = vmul.f32 %v484, %v495
        %v524 = vmul.f32 %v485, %v495
        %v525 = vmul.f32 %v486, %v495
        %v526 = vmul.f32 %v487, %v495
        %v527 = vmul.f32 %v488, %v495
        %v528 = vmul.f32 %v489, %v495
        %v529 = vld [vmem:[%s3] sm:$0x1]
        %v531 = vlaneseq
        %v532 = vshrl.u32 %v531, 7
        %v533 = vsub.s32 0, %v532
        %v534 = vrot.slane %v529, %v533
        %v536 = vadd.f32 %v497, %v534
        %v537 = vadd.f32 %v498, %v534
        %v538 = vadd.f32 %v499, %v534
        %v539 = vadd.f32 %v500, %v534
        %v540 = vadd.f32 %v501, %v534
        %v541 = vadd.f32 %v502, %v534
        %v542 = vadd.f32 %v503, %v534
        %v543 = vadd.f32 %v504, %v534
        %v544 = vadd.f32 %v505, %v534
        %v545 = vadd.f32 %v506, %v534
        %v546 = vadd.f32 %v507, %v534
        %v547 = vadd.f32 %v508, %v534
        %v548 = vadd.f32 %v509, %v534
        %v549 = vadd.f32 %v510, %v534
        %v550 = vadd.f32 %v511, %v534
        %v551 = vadd.f32 %v512, %v534
        %v552 = vadd.f32 %v513, %v534
        %v553 = vadd.f32 %v514, %v534
        %v554 = vadd.f32 %v515, %v534
        %v555 = vadd.f32 %v516, %v534
        %v556 = vadd.f32 %v517, %v534
        %v557 = vadd.f32 %v518, %v534
        %v558 = vadd.f32 %v519, %v534
        %v559 = vadd.f32 %v520, %v534
        %v560 = vadd.f32 %v521, %v534
        %v561 = vadd.f32 %v522, %v534
        %v562 = vadd.f32 %v523, %v534
        %v563 = vadd.f32 %v524, %v534
        %v564 = vadd.f32 %v525, %v534
        %v565 = vadd.f32 %v526, %v534
        %v566 = vadd.f32 %v527, %v534
        %v567 = vadd.f32 %v528, %v534
        %v568 = vmax.f32 %v536, 0.0
        %v569 = vmax.f32 %v537, 0.0
        %v570 = vmax.f32 %v538, 0.0
        %v571 = vmax.f32 %v539, 0.0
        %v572 = vmax.f32 %v540, 0.0
        %v573 = vmax.f32 %v541, 0.0
        %v574 = vmax.f32 %v542, 0.0
        %v575 = vmax.f32 %v543, 0.0
        %v576 = vmax.f32 %v544, 0.0
        %v577 = vmax.f32 %v545, 0.0
        %v578 = vmax.f32 %v546, 0.0
        %v579 = vmax.f32 %v547, 0.0
        %v580 = vmax.f32 %v548, 0.0
        %v581 = vmax.f32 %v549, 0.0
        %v582 = vmax.f32 %v550, 0.0
        %v583 = vmax.f32 %v551, 0.0
        %v584 = vmax.f32 %v552, 0.0
        %v585 = vmax.f32 %v553, 0.0
        %v586 = vmax.f32 %v554, 0.0
        %v587 = vmax.f32 %v555, 0.0
        %v588 = vmax.f32 %v556, 0.0
        %v589 = vmax.f32 %v557, 0.0
        %v590 = vmax.f32 %v558, 0.0
        %v591 = vmax.f32 %v559, 0.0
        %v592 = vmax.f32 %v560, 0.0
        %v593 = vmax.f32 %v561, 0.0
        %v594 = vmax.f32 %v562, 0.0
        %v595 = vmax.f32 %v563, 0.0
        %v596 = vmax.f32 %v564, 0.0
        %v597 = vmax.f32 %v565, 0.0
        %v598 = vmax.f32 %v566, 0.0
        %v599 = vmax.f32 %v567, 0.0
        %s600 = scalar_lea.vmem [#allocation2], 24
        %601 = vst [vmem:[%s600 + $0x1] sm:$0xff] %v568
        %602 = vst [vmem:[%s600 + $0x9] sm:$0xff] %v569
        %603 = vst [vmem:[%s600 + $0x19] sm:$0xff] %v570
        %604 = vst [vmem:[%s600 + $0x21] sm:$0xff] %v571
        %605 = vst [vmem:[%s600 + $0x31] sm:$0xff] %v572
        %606 = vst [vmem:[%s600 + $0x39] sm:$0xff] %v573
        %607 = vst [vmem:[%s600 + $0x49] sm:$0xff] %v574
        %608 = vst [vmem:[%s600 + $0x51] sm:$0xff] %v575
        %609 = vst [vmem:[%s600 + $0x61] sm:$0xff] %v576
        %610 = vst [vmem:[%s600 + $0x69] sm:$0xff] %v577
        %611 = vst [vmem:[%s600 + $0x79] sm:$0xff] %v578
        %612 = vst [vmem:[%s600 + $0x81] sm:$0xff] %v579
        %613 = vst [vmem:[%s600 + $0x91] sm:$0xff] %v580
        %614 = vst [vmem:[%s600 + $0x99] sm:$0xff] %v581
        %615 = vst [vmem:[%s600 + $0xa9] sm:$0xff] %v582
        %616 = vst [vmem:[%s600 + $0xb1] sm:$0xff] %v583
        %617 = vst [vmem:[%s600 + $0xc1] sm:$0xff] %v584
        %618 = vst [vmem:[%s600 + $0xc9] sm:$0xff] %v585
        %619 = vst [vmem:[%s600 + $0xd9] sm:$0xff] %v586
        %620 = vst [vmem:[%s600 + $0xe1] sm:$0xff] %v587
        %621 = vst [vmem:[%s600 + $0xf1] sm:$0xff] %v588
        %622 = vst [vmem:[%s600 + $0xf9] sm:$0xff] %v589
        %623 = vst [vmem:[%s600 + $0x109] sm:$0xff] %v590
        %624 = vst [vmem:[%s600 + $0x111] sm:$0xff] %v591
        %625 = vst [vmem:[%s600 + $0x121] sm:$0xff] %v592
        %626 = vst [vmem:[%s600 + $0x129] sm:$0xff] %v593
        %627 = vst [vmem:[%s600 + $0x139] sm:$0xff] %v594
        %628 = vst [vmem:[%s600 + $0x141] sm:$0xff] %v595
        %629 = vst [vmem:[%s600 + $0x151] sm:$0xff] %v596
        %630 = vst [vmem:[%s600 + $0x159] sm:$0xff] %v597
        %631 = vst [vmem:[%s600 + $0x169] sm:$0xff] %v598
        %632 = vst [vmem:[%s600 + $0x171] sm:$0xff] %v599
      $region52: #{wide_basic_forward.3} parent=47 // pred_fallthru
        _
      %v633 = vld [vmem:[#allocation2] ss:$2 sm:$0xff]
      %s634 = scalar_lea.vmem [#allocation2], 48
      %v635 = vld [vmem:[%s634] ss:$2 sm:$0xff]
      %s636 = scalar_lea.vmem [#allocation2], 96
      %v637 = vld [vmem:[%s636] ss:$2 sm:$0xff]
      %s638 = scalar_lea.vmem [#allocation2], 144
      %v639 = vld [vmem:[%s638] ss:$2 sm:$0xff]
      %s640 = scalar_lea.vmem [#allocation2], 192
      %v641 = vld [vmem:[%s640] ss:$2 sm:$0xff]
      %s642 = scalar_lea.vmem [#allocation2], 240
      %v643 = vld [vmem:[%s642] ss:$2 sm:$0xff]
      %s644 = scalar_lea.vmem [#allocation2], 288
      %v645 = vld [vmem:[%s644] ss:$2 sm:$0xff]
      %s646 = scalar_lea.vmem [#allocation2], 336
      %v647 = vld [vmem:[%s646] ss:$2 sm:$0xff]
      %v648 = vpack.c.bf16 %v633, %v633
      %v649 = vpack.c.bf16 %v635, %v635
      %v650 = vpack.c.bf16 %v637, %v637
      %v651 = vpack.c.bf16 %v639, %v639
      %v652 = vpack.c.bf16 %v641, %v641
      %v653 = vpack.c.bf16 %v643, %v643
      %v654 = vpack.c.bf16 %v645, %v645
      %v655 = vpack.c.bf16 %v647, %v647
      %s656 = scalar_lea.vmem [#allocation2], 1
      %v657 = vld [vmem:[%s656] ss:$2 sm:$0xff]
      %s658 = scalar_lea.vmem [#allocation2], 49
      %v659 = vld [vmem:[%s658] ss:$2 sm:$0xff]
      %s660 = scalar_lea.vmem [#allocation2], 97
      %v661 = vld [vmem:[%s660] ss:$2 sm:$0xff]
      %s662 = scalar_lea.vmem [#allocation2], 145
      %v663 = vld [vmem:[%s662] ss:$2 sm:$0xff]
      %s664 = scalar_lea.vmem [#allocation2], 193
      %v665 = vld [vmem:[%s664] ss:$2 sm:$0xff]
      %s666 = scalar_lea.vmem [#allocation2], 241
      %v667 = vld [vmem:[%s666] ss:$2 sm:$0xff]
      %s668 = scalar_lea.vmem [#allocation2], 289
      %v669 = vld [vmem:[%s668] ss:$2 sm:$0xff]
      %s670 = scalar_lea.vmem [#allocation2], 337
      %v671 = vld [vmem:[%s670] ss:$2 sm:$0xff]
      %v672 = vpack.c.bf16 %v657, %v657
      %v673 = vpack.c.bf16 %v659, %v659
      %v674 = vpack.c.bf16 %v661, %v661
      %v675 = vpack.c.bf16 %v663, %v663
      %v676 = vpack.c.bf16 %v665, %v665
      %v677 = vpack.c.bf16 %v667, %v667
      %v678 = vpack.c.bf16 %v669, %v669
      %v679 = vpack.c.bf16 %v671, %v671
      %s680 = scalar_lea.vmem [#allocation2], 2
      %v681 = vld [vmem:[%s680] ss:$2 sm:$0xff]
      %s682 = scalar_lea.vmem [#allocation2], 50
      %v683 = vld [vmem:[%s682] ss:$2 sm:$0xff]
      %s684 = scalar_lea.vmem [#allocation2], 98
      %v685 = vld [vmem:[%s684] ss:$2 sm:$0xff]
      %s686 = scalar_lea.vmem [#allocation2], 146
      %v687 = vld [vmem:[%s686] ss:$2 sm:$0xff]
      %s688 = scalar_lea.vmem [#allocation2], 194
      %v689 = vld [vmem:[%s688] ss:$2 sm:$0xff]
      %s690 = scalar_lea.vmem [#allocation2], 242
      %v691 = vld [vmem:[%s690] ss:$2 sm:$0xff]
      %s692 = scalar_lea.vmem [#allocation2], 290
      %v693 = vld [vmem:[%s692] ss:$2 sm:$0xff]
      %s694 = scalar_lea.vmem [#allocation2], 338
      %v695 = vld [vmem:[%s694] ss:$2 sm:$0xff]
      %v696 = vpack.c.bf16 %v681, %v681
      %v697 = vpack.c.bf16 %v683, %v683
      %v698 = vpack.c.bf16 %v685, %v685
      %v699 = vpack.c.bf16 %v687, %v687
      %v700 = vpack.c.bf16 %v689, %v689
      %v701 = vpack.c.bf16 %v691, %v691
      %v702 = vpack.c.bf16 %v693, %v693
      %v703 = vpack.c.bf16 %v695, %v695
      %v728 = vunpack.c.l.b16 %v648
      %v729 = vunpack.c.l.b16 %v672
      %v730 = vunpack.c.l.b16 %v696
      %v731 = vunpack.c.l.b16 %v649
      %v732 = vunpack.c.l.b16 %v673
      %v733 = vunpack.c.l.b16 %v697
      %v734 = vunpack.c.l.b16 %v650
      %v735 = vunpack.c.l.b16 %v674
      %v736 = vunpack.c.l.b16 %v698
      %v737 = vunpack.c.l.b16 %v651
      %v738 = vunpack.c.l.b16 %v675
      %v739 = vunpack.c.l.b16 %v699
      %v740 = vunpack.c.l.b16 %v652
      %v741 = vunpack.c.l.b16 %v676
      %v742 = vunpack.c.l.b16 %v700
      %v743 = vunpack.c.l.b16 %v653
      %v744 = vunpack.c.l.b16 %v677
      %v745 = vunpack.c.l.b16 %v701
      %v746 = vunpack.c.l.b16 %v654
      %v747 = vunpack.c.l.b16 %v678
      %v748 = vunpack.c.l.b16 %v702
      %v749 = vunpack.c.l.b16 %v655
      %v750 = vunpack.c.l.b16 %v679
      %v751 = vunpack.c.l.b16 %v703
      %v752 = vld [vmem:[%s346] sm:$0xf]
      %v753 = vld [vmem:[%s346 + $0x4] sm:$0xf]
      %v754 = vld [vmem:[%s346 + $0x8] sm:$0xf]
      %v755 = vld [vmem:[%s346 + $0xc] sm:$0xf]
      %v756 = vld [vmem:[%s346 + $0x10] sm:$0xf]
      %v757 = vld [vmem:[%s346 + $0x14] sm:$0xf]
      %v758 = vld [vmem:[%s346 + $0x18] sm:$0xf]
      %v759 = vld [vmem:[%s346 + $0x1c] sm:$0xf]
      %v760 = vld [vmem:[%s346 + $0x20] sm:$0xf]
      %v761 = vld [vmem:[%s346 + $0x24] sm:$0xf]
      %v762 = vld [vmem:[%s346 + $0x28] sm:$0xf]
      %v763 = vld [vmem:[%s346 + $0x2c] sm:$0xf]
      %v764 = vld [vmem:[%s346 + $0x30] sm:$0xf]
      %v765 = vld [vmem:[%s346 + $0x34] sm:$0xf]
      %v766 = vld [vmem:[%s346 + $0x38] sm:$0xf]
      %v767 = vld [vmem:[%s346 + $0x3c] sm:$0xf]
      %v768 = vld [vmem:[%s346 + $0x40] sm:$0xf]
      %v769 = vld [vmem:[%s346 + $0x44] sm:$0xf]
      %v770 = vld [vmem:[%s346 + $0x48] sm:$0xf]
      %v771 = vld [vmem:[%s346 + $0x4c] sm:$0xf]
      %v772 = vld [vmem:[%s346 + $0x50] sm:$0xf]
      %v773 = vld [vmem:[%s346 + $0x54] sm:$0xf]
      %v774 = vld [vmem:[%s346 + $0x58] sm:$0xf]
      %v775 = vld [vmem:[%s346 + $0x5c] sm:$0xf]
      %v776 = vld [vmem:[%s346 + $0x60] sm:$0xf]
      %v777 = vld [vmem:[%s346 + $0x64] sm:$0xf]
      %v778 = vld [vmem:[%s346 + $0x68] sm:$0xf]
      %v779 = vld [vmem:[%s346 + $0x6c] sm:$0xf]
      %v780 = vld [vmem:[%s346 + $0x70] sm:$0xf]
      %v781 = vld [vmem:[%s346 + $0x74] sm:$0xf]
      %v782 = vld [vmem:[%s346 + $0x78] sm:$0xf]
      %v783 = vld [vmem:[%s346 + $0x7c] sm:$0xf]
      %v784 = vld [vmem:[%s346 + $0x80] sm:$0xf]
      %v785 = vld [vmem:[%s346 + $0x84] sm:$0xf]
      %v786 = vld [vmem:[%s346 + $0x88] sm:$0xf]
      %v787 = vld [vmem:[%s346 + $0x8c] sm:$0xf]
      %v788 = vld [vmem:[%s346 + $0x90] sm:$0xf]
      %v789 = vld [vmem:[%s346 + $0x94] sm:$0xf]
      %v790 = vld [vmem:[%s346 + $0x98] sm:$0xf]
      %v791 = vld [vmem:[%s346 + $0x9c] sm:$0xf]
      %v792 = vld [vmem:[%s346 + $0xa0] sm:$0xf]
      %v793 = vld [vmem:[%s346 + $0xa4] sm:$0xf]
      %v794 = vld [vmem:[%s346 + $0xa8] sm:$0xf]
      %v795 = vld [vmem:[%s346 + $0xac] sm:$0xf]
      %v796 = vld [vmem:[%s346 + $0xb0] sm:$0xf]
      %v797 = vld [vmem:[%s346 + $0xb4] sm:$0xf]
      %v798 = vld [vmem:[%s346 + $0xb8] sm:$0xf]
      %v799 = vld [vmem:[%s346 + $0xbc] sm:$0xf]
      %v800 = vld [vmem:[%s349] sm:$0x1]
      %v802 = vlaneseq
      %v803 = vshrl.u32 %v802, 7
      %v804 = vsub.s32 0, %v803
      %v805 = vrot.slane %v800, %v804
      %v807 = vpack.c.b16 %v731, %v728
      %v808 = vpack.c.b16 %v732, %v729
      %v809 = vpack.c.b16 %v733, %v730
      %v810 = vpack.c.b16 %v737, %v734
      %v811 = vpack.c.b16 %v738, %v735
      %v812 = vpack.c.b16 %v739, %v736
      %v813 = vpack.c.b16 %v743, %v740
      %v814 = vpack.c.b16 %v744, %v741
      %v815 = vpack.c.b16 %v745, %v742
      %v816 = vpack.c.b16 %v749, %v746
      %v817 = vpack.c.b16 %v750, %v747
      %v818 = vpack.c.b16 %v751, %v748
      %v879 = vunpack.c.l.b16 %v752
      %v880 = vunpack.c.l.b16 %v753
      %v881 = vunpack.c.l.b16 %v754
      %v882 = vunpack.c.l.b16 %v755
      %v883 = vunpack.c.l.b16 %v756
      %v884 = vunpack.c.l.b16 %v757
      %v885 = vunpack.c.l.b16 %v758
      %v886 = vunpack.c.l.b16 %v759
      %v887 = vunpack.c.l.b16 %v760
      %v888 = vunpack.c.l.b16 %v761
      %v889 = vunpack.c.l.b16 %v762
      %v890 = vunpack.c.l.b16 %v763
      %v891 = vunpack.c.l.b16 %v764
      %v892 = vunpack.c.l.b16 %v765
      %v893 = vunpack.c.l.b16 %v766
      %v894 = vunpack.c.l.b16 %v767
      %v895 = vunpack.c.l.b16 %v768
      %v896 = vunpack.c.l.b16 %v769
      %v897 = vunpack.c.l.b16 %v770
      %v898 = vunpack.c.l.b16 %v771
      %v899 = vunpack.c.l.b16 %v772
      %v900 = vunpack.c.l.b16 %v773
      %v901 = vunpack.c.l.b16 %v774
      %v902 = vunpack.c.l.b16 %v775
      %v903 = vunpack.c.l.b16 %v776
      %v904 = vunpack.c.l.b16 %v777
      %v905 = vunpack.c.l.b16 %v778
      %v906 = vunpack.c.l.b16 %v779
      %v907 = vunpack.c.l.b16 %v780
      %v908 = vunpack.c.l.b16 %v781
      %v909 = vunpack.c.l.b16 %v782
      %v910 = vunpack.c.l.b16 %v783
      %v911 = vunpack.c.l.b16 %v784
      %v912 = vunpack.c.l.b16 %v785
      %v913 = vunpack.c.l.b16 %v786
      %v914 = vunpack.c.l.b16 %v787
      %v915 = vunpack.c.l.b16 %v788
      %v916 = vunpack.c.l.b16 %v789
      %v917 = vunpack.c.l.b16 %v790
      %v918 = vunpack.c.l.b16 %v791
      %v919 = vunpack.c.l.b16 %v792
      %v920 = vunpack.c.l.b16 %v793
      %v921 = vunpack.c.l.b16 %v794
      %v922 = vunpack.c.l.b16 %v795
      %v923 = vunpack.c.l.b16 %v796
      %v924 = vunpack.c.l.b16 %v797
      %v925 = vunpack.c.l.b16 %v798
      %v926 = vunpack.c.l.b16 %v799
      %v927 = vpack.c.b16 %v880, %v879
      %v928 = vpack.c.b16 %v882, %v881
      %v929 = vpack.c.b16 %v884, %v883
      %v930 = vpack.c.b16 %v886, %v885
      %v931 = vpack.c.b16 %v888, %v887
      %v932 = vpack.c.b16 %v890, %v889
      %v933 = vpack.c.b16 %v892, %v891
      %v934 = vpack.c.b16 %v894, %v893
      %v935 = vpack.c.b16 %v896, %v895
      %v936 = vpack.c.b16 %v898, %v897
      %v937 = vpack.c.b16 %v900, %v899
      %v938 = vpack.c.b16 %v902, %v901
      %v939 = vpack.c.b16 %v904, %v903
      %v940 = vpack.c.b16 %v906, %v905
      %v941 = vpack.c.b16 %v908, %v907
      %v942 = vpack.c.b16 %v910, %v909
      %v943 = vpack.c.b16 %v912, %v911
      %v944 = vpack.c.b16 %v914, %v913
      %v945 = vpack.c.b16 %v916, %v915
      %v946 = vpack.c.b16 %v918, %v917
      %v947 = vpack.c.b16 %v920, %v919
      %v948 = vpack.c.b16 %v922, %v921
      %v949 = vpack.c.b16 %v924, %v923
      %v950 = vpack.c.b16 %v926, %v925
      %975 = vmatprep.subr.bf16.mxu0 0
      %976 = vmatpush1.bf16.msra.mxu0 %v934
      %977 = vmatprep.subr.bf16.mxu0 0
      %978 = vmatpush1.bf16.msra.mxu0 %v933
      %979 = vmatprep.subr.bf16.mxu0 0
      %980 = vmatpush1.bf16.msra.mxu0 %v932
      %981 = vmatprep.subr.bf16.mxu0 0
      %982 = vmatpush1.bf16.msra.mxu0 %v931
      %983 = vmatprep.subr.bf16.mxu0 0
      %984 = vmatpush1.bf16.msra.mxu0 %v930
      %985 = vmatprep.subr.bf16.mxu0 0
      %986 = vmatpush1.bf16.msra.mxu0 %v929
      %987 = vmatprep.subr.bf16.mxu0 0
      %988 = vmatpush1.bf16.msra.mxu0 %v928
      %989 = vmatprep.subr.bf16.mxu0 0
      %990 = vmatpush1.bf16.msra.mxu0 %v927
      %991 = vmatprep.subr.bf16.mxu0 0
      %992 = vmatpush2.bf16.msra.mxu0 %v942
      %993 = vmatprep.subr.bf16.mxu0 0
      %994 = vmatpush2.bf16.msra.mxu0 %v941
      %995 = vmatprep.subr.bf16.mxu0 0
      %996 = vmatpush2.bf16.msra.mxu0 %v940
      %997 = vmatprep.subr.bf16.mxu0 0
      %998 = vmatpush2.bf16.msra.mxu0 %v939
      %999 = vmatprep.subr.bf16.mxu0 0
      %1000 = vmatpush2.bf16.msra.mxu0 %v938
      %1001 = vmatprep.subr.bf16.mxu0 0
      %1002 = vmatpush2.bf16.msra.mxu0 %v937
      %1003 = vmatprep.subr.bf16.mxu0 0
      %1004 = vmatpush2.bf16.msra.mxu0 %v936
      %1005 = vmatprep.subr.bf16.mxu0 0
      %1006 = vmatpush2.bf16.msra.mxu0 %v935
      %1007 = vmatprep.mubr.bf16.mxu0 %v808
      %1008 = vmatmul.mubr.bf16.gmra.mxu0 %v807
      %v1009 = vpop.f32.mrf.mxu0
      %v1010 = vadd.f32 %v805, %v1009
      %v1011 = vpop.f32.mrf.mxu0
      %v1012 = vpop.f32.mrf.mxu0
      %v1013 = vadd.f32 %v805, %v1012
      %v1014 = vpop.f32.mrf.mxu0
      %1015 = vmatprep.mubr.bf16.mxu0 %v811
      %1016 = vmatmul.mubr.bf16.gmra.mxu0 %v810
      %v1017 = vpop.f32.mrf.mxu0
      %v1018 = vadd.f32 %v805, %v1017
      %v1019 = vpop.f32.mrf.mxu0
      %v1020 = vpop.f32.mrf.mxu0
      %v1021 = vadd.f32 %v805, %v1020
      %v1022 = vpop.f32.mrf.mxu0
      %1023 = vmatprep.mubr.bf16.mxu0 %v814
      %1024 = vmatmul.mubr.bf16.gmra.mxu0 %v813
      %v1025 = vpop.f32.mrf.mxu0
      %v1026 = vadd.f32 %v805, %v1025
      %v1027 = vpop.f32.mrf.mxu0
      %v1028 = vpop.f32.mrf.mxu0
      %v1029 = vadd.f32 %v805, %v1028
      %v1030 = vpop.f32.mrf.mxu0
      %1031 = vmatprep.mubr.bf16.mxu0 %v817
      %1032 = vmatmul.mubr.bf16.gmra.mxu0 %v816
      %v1033 = vpop.f32.mrf.mxu0
      %v1034 = vadd.f32 %v805, %v1033
      %v1035 = vpop.f32.mrf.mxu0
      %v1036 = vpop.f32.mrf.mxu0
      %v1037 = vadd.f32 %v805, %v1036
      %v1038 = vpop.f32.mrf.mxu0
      %1039 = vdwg.mxu0
      %1040 = vmatprep.subr.bf16.mxu0 0
      %1041 = vmatpush1.bf16.msra.mxu0 %v950
      %1042 = vmatprep.subr.bf16.mxu0 0
      %1043 = vmatpush1.bf16.msra.mxu0 %v949
      %1044 = vmatprep.subr.bf16.mxu0 0
      %1045 = vmatpush1.bf16.msra.mxu0 %v948
      %1046 = vmatprep.subr.bf16.mxu0 0
      %1047 = vmatpush1.bf16.msra.mxu0 %v947
      %1048 = vmatprep.subr.bf16.mxu0 0
      %1049 = vmatpush1.bf16.msra.mxu0 %v946
      %1050 = vmatprep.subr.bf16.mxu0 0
      %1051 = vmatpush1.bf16.msra.mxu0 %v945
      %1052 = vmatprep.subr.bf16.mxu0 0
      %1053 = vmatpush1.bf16.msra.mxu0 %v944
      %1054 = vmatprep.subr.bf16.mxu0 0
      %1055 = vmatpush1.bf16.msra.mxu0 %v943
      %1056 = vmatprep.subr.bf16.mxu0 0
      %1057 = vmatpush2.bf16.msra.mxu0 0
      %1058 = vmatprep.subr.bf16.mxu0 0
      %1059 = vmatpush2.bf16.msra.mxu0 0
      %1060 = vmatprep.subr.bf16.mxu0 0
      %1061 = vmatpush2.bf16.msra.mxu0 0
      %1062 = vmatprep.subr.bf16.mxu0 0
      %1063 = vmatpush2.bf16.msra.mxu0 0
      %1064 = vmatprep.subr.bf16.mxu0 0
      %1065 = vmatpush2.bf16.msra.mxu0 0
      %1066 = vmatprep.subr.bf16.mxu0 0
      %1067 = vmatpush2.bf16.msra.mxu0 0
      %1068 = vmatprep.subr.bf16.mxu0 0
      %1069 = vmatpush2.bf16.msra.mxu0 0
      %1070 = vmatprep.subr.bf16.mxu0 0
      %1071 = vmatpush2.bf16.msra.mxu0 0
      %1072 = vmatprep.mubr.bf16.mxu0 0
      %1073 = vmatmul.mubr.bf16.gmra.mxu0 %v809
      %v1074 = vpop.f32.mrf.mxu0
      %v1075 = vadd.f32 %v1010, %v1074
      %v1076 = vpop.f32.mrf.mxu0
      %v1077 = vpop.f32.mrf.mxu0
      %v1078 = vadd.f32 %v1013, %v1077
      %v1079 = vpop.f32.mrf.mxu0
      %1080 = vmatprep.mubr.bf16.mxu0 0
      %1081 = vmatmul.mubr.bf16.gmra.mxu0 %v812
      %v1082 = vpop.f32.mrf.mxu0
      %v1083 = vadd.f32 %v1018, %v1082
      %v1084 = vpop.f32.mrf.mxu0
      %v1085 = vpop.f32.mrf.mxu0
      %v1086 = vadd.f32 %v1021, %v1085
      %v1087 = vpop.f32.mrf.mxu0
      %1088 = vmatprep.mubr.bf16.mxu0 0
      %1089 = vmatmul.mubr.bf16.gmra.mxu0 %v815
      %v1090 = vpop.f32.mrf.mxu0
      %v1091 = vadd.f32 %v1026, %v1090
      %v1092 = vpop.f32.mrf.mxu0
      %v1093 = vpop.f32.mrf.mxu0
      %v1094 = vadd.f32 %v1029, %v1093
      %v1095 = vpop.f32.mrf.mxu0
      %1096 = vmatprep.mubr.bf16.mxu0 0
      %1097 = vmatmul.mubr.bf16.gmra.mxu0 %v818
      %v1098 = vpop.f32.mrf.mxu0
      %v1099 = vadd.f32 %v1034, %v1098
      %v1100 = vpop.f32.mrf.mxu0
      %v1101 = vpop.f32.mrf.mxu0
      %v1102 = vadd.f32 %v1037, %v1101
      %v1103 = vpop.f32.mrf.mxu0
      %1104 = vdwg.mxu0
      %s1105 = scalar_lea.vmem [#allocation2], 24
      %v1106 = vld [vmem:[%s1105] ss:$2 sm:$0xff]
      %s1107 = scalar_lea.vmem %s1105, 48 [#allocation2]
      %v1108 = vld [vmem:[%s1107] ss:$2 sm:$0xff]
      %s1109 = scalar_lea.vmem %s1105, 96 [#allocation2]
      %v1110 = vld [vmem:[%s1109] ss:$2 sm:$0xff]
      %s1111 = scalar_lea.vmem %s1105, 144 [#allocation2]
      %v1112 = vld [vmem:[%s1111] ss:$2 sm:$0xff]
      %s1113 = scalar_lea.vmem %s1105, 192 [#allocation2]
      %v1114 = vld [vmem:[%s1113] ss:$2 sm:$0xff]
      %s1115 = scalar_lea.vmem %s1105, 240 [#allocation2]
      %v1116 = vld [vmem:[%s1115] ss:$2 sm:$0xff]
      %s1117 = scalar_lea.vmem %s1105, 288 [#allocation2]
      %v1118 = vld [vmem:[%s1117] ss:$2 sm:$0xff]
      %s1119 = scalar_lea.vmem %s1105, 336 [#allocation2]
      %v1120 = vld [vmem:[%s1119] ss:$2 sm:$0xff]
      %v1121 = vpack.c.bf16 %v1106, %v1106
      %v1122 = vpack.c.bf16 %v1108, %v1108
      %v1123 = vpack.c.bf16 %v1110, %v1110
      %v1124 = vpack.c.bf16 %v1112, %v1112
      %v1125 = vpack.c.bf16 %v1114, %v1114
      %v1126 = vpack.c.bf16 %v1116, %v1116
      %v1127 = vpack.c.bf16 %v1118, %v1118
      %v1128 = vpack.c.bf16 %v1120, %v1120
      %s1129 = scalar_lea.vmem %s1105, 1 [#allocation2]
      %v1130 = vld [vmem:[%s1129] ss:$2 sm:$0xff]
      %s1131 = scalar_lea.vmem %s1105, 49 [#allocation2]
      %v1132 = vld [vmem:[%s1131] ss:$2 sm:$0xff]
      %s1133 = scalar_lea.vmem %s1105, 97 [#allocation2]
      %v1134 = vld [vmem:[%s1133] ss:$2 sm:$0xff]
      %s1135 = scalar_lea.vmem %s1105, 145 [#allocation2]
      %v1136 = vld [vmem:[%s1135] ss:$2 sm:$0xff]
      %s1137 = scalar_lea.vmem %s1105, 193 [#allocation2]
      %v1138 = vld [vmem:[%s1137] ss:$2 sm:$0xff]
      %s1139 = scalar_lea.vmem %s1105, 241 [#allocation2]
      %v1140 = vld [vmem:[%s1139] ss:$2 sm:$0xff]
      %s1141 = scalar_lea.vmem %s1105, 289 [#allocation2]
      %v1142 = vld [vmem:[%s1141] ss:$2 sm:$0xff]
      %s1143 = scalar_lea.vmem %s1105, 337 [#allocation2]
      %v1144 = vld [vmem:[%s1143] ss:$2 sm:$0xff]
      %v1145 = vpack.c.bf16 %v1130, %v1130
      %v1146 = vpack.c.bf16 %v1132, %v1132
      %v1147 = vpack.c.bf16 %v1134, %v1134
      %v1148 = vpack.c.bf16 %v1136, %v1136
      %v1149 = vpack.c.bf16 %v1138, %v1138
      %v1150 = vpack.c.bf16 %v1140, %v1140
      %v1151 = vpack.c.bf16 %v1142, %v1142
      %v1152 = vpack.c.bf16 %v1144, %v1144
      %s1153 = scalar_lea.vmem %s1105, 2 [#allocation2]
      %v1154 = vld [vmem:[%s1153] ss:$2 sm:$0xff]
      %s1155 = scalar_lea.vmem %s1105, 50 [#allocation2]
      %v1156 = vld [vmem:[%s1155] ss:$2 sm:$0xff]
      %s1157 = scalar_lea.vmem %s1105, 98 [#allocation2]
      %v1158 = vld [vmem:[%s1157] ss:$2 sm:$0xff]
      %s1159 = scalar_lea.vmem %s1105, 146 [#allocation2]
      %v1160 = vld [vmem:[%s1159] ss:$2 sm:$0xff]
      %s1161 = scalar_lea.vmem %s1105, 194 [#allocation2]
      %v1162 = vld [vmem:[%s1161] ss:$2 sm:$0xff]
      %s1163 = scalar_lea.vmem %s1105, 242 [#allocation2]
      %v1164 = vld [vmem:[%s1163] ss:$2 sm:$0xff]
      %s1165 = scalar_lea.vmem %s1105, 290 [#allocation2]
      %v1166 = vld [vmem:[%s1165] ss:$2 sm:$0xff]
      %s1167 = scalar_lea.vmem %s1105, 338 [#allocation2]
      %v1168 = vld [vmem:[%s1167] ss:$2 sm:$0xff]
      %v1169 = vpack.c.bf16 %v1154, %v1154
      %v1170 = vpack.c.bf16 %v1156, %v1156
      %v1171 = vpack.c.bf16 %v1158, %v1158
      %v1172 = vpack.c.bf16 %v1160, %v1160
      %v1173 = vpack.c.bf16 %v1162, %v1162
      %v1174 = vpack.c.bf16 %v1164, %v1164
      %v1175 = vpack.c.bf16 %v1166, %v1166
      %v1176 = vpack.c.bf16 %v1168, %v1168
      %v1201 = vunpack.c.l.b16 %v1121
      %v1202 = vunpack.c.l.b16 %v1145
      %v1203 = vunpack.c.l.b16 %v1169
      %v1204 = vunpack.c.l.b16 %v1122
      %v1205 = vunpack.c.l.b16 %v1146
      %v1206 = vunpack.c.l.b16 %v1170
      %v1207 = vunpack.c.l.b16 %v1123
      %v1208 = vunpack.c.l.b16 %v1147
      %v1209 = vunpack.c.l.b16 %v1171
      %v1210 = vunpack.c.l.b16 %v1124
      %v1211 = vunpack.c.l.b16 %v1148
      %v1212 = vunpack.c.l.b16 %v1172
      %v1213 = vunpack.c.l.b16 %v1125
      %v1214 = vunpack.c.l.b16 %v1149
      %v1215 = vunpack.c.l.b16 %v1173
      %v1216 = vunpack.c.l.b16 %v1126
      %v1217 = vunpack.c.l.b16 %v1150
      %v1218 = vunpack.c.l.b16 %v1174
      %v1219 = vunpack.c.l.b16 %v1127
      %v1220 = vunpack.c.l.b16 %v1151
      %v1221 = vunpack.c.l.b16 %v1175
      %v1222 = vunpack.c.l.b16 %v1128
      %v1223 = vunpack.c.l.b16 %v1152
      %v1224 = vunpack.c.l.b16 %v1176
      %s1225 = scalar_lea.vmem %s346, 192
      %v1226 = vld [vmem:[%s1225] sm:$0xf]
      %v1227 = vld [vmem:[%s1225 + $0x4] sm:$0xf]
      %v1228 = vld [vmem:[%s1225 + $0x8] sm:$0xf]
      %v1229 = vld [vmem:[%s1225 + $0xc] sm:$0xf]
      %v1230 = vld [vmem:[%s1225 + $0x10] sm:$0xf]
      %v1231 = vld [vmem:[%s1225 + $0x14] sm:$0xf]
      %v1232 = vld [vmem:[%s1225 + $0x18] sm:$0xf]
      %v1233 = vld [vmem:[%s1225 + $0x1c] sm:$0xf]
      %v1234 = vld [vmem:[%s1225 + $0x20] sm:$0xf]
      %v1235 = vld [vmem:[%s1225 + $0x24] sm:$0xf]
      %v1236 = vld [vmem:[%s1225 + $0x28] sm:$0xf]
      %v1237 = vld [vmem:[%s1225 + $0x2c] sm:$0xf]
      %v1238 = vld [vmem:[%s1225 + $0x30] sm:$0xf]
      %v1239 = vld [vmem:[%s1225 + $0x34] sm:$0xf]
      %v1240 = vld [vmem:[%s1225 + $0x38] sm:$0xf]
      %v1241 = vld [vmem:[%s1225 + $0x3c] sm:$0xf]
      %v1242 = vld [vmem:[%s1225 + $0x40] sm:$0xf]
      %v1243 = vld [vmem:[%s1225 + $0x44] sm:$0xf]
      %v1244 = vld [vmem:[%s1225 + $0x48] sm:$0xf]
      %v1245 = vld [vmem:[%s1225 + $0x4c] sm:$0xf]
      %v1246 = vld [vmem:[%s1225 + $0x50] sm:$0xf]
      %v1247 = vld [vmem:[%s1225 + $0x54] sm:$0xf]
      %v1248 = vld [vmem:[%s1225 + $0x58] sm:$0xf]
      %v1249 = vld [vmem:[%s1225 + $0x5c] sm:$0xf]
      %v1250 = vld [vmem:[%s1225 + $0x60] sm:$0xf]
      %v1251 = vld [vmem:[%s1225 + $0x64] sm:$0xf]
      %v1252 = vld [vmem:[%s1225 + $0x68] sm:$0xf]
      %v1253 = vld [vmem:[%s1225 + $0x6c] sm:$0xf]
      %v1254 = vld [vmem:[%s1225 + $0x70] sm:$0xf]
      %v1255 = vld [vmem:[%s1225 + $0x74] sm:$0xf]
      %v1256 = vld [vmem:[%s1225 + $0x78] sm:$0xf]
      %v1257 = vld [vmem:[%s1225 + $0x7c] sm:$0xf]
      %v1258 = vld [vmem:[%s1225 + $0x80] sm:$0xf]
      %v1259 = vld [vmem:[%s1225 + $0x84] sm:$0xf]
      %v1260 = vld [vmem:[%s1225 + $0x88] sm:$0xf]
      %v1261 = vld [vmem:[%s1225 + $0x8c] sm:$0xf]
      %v1262 = vld [vmem:[%s1225 + $0x90] sm:$0xf]
      %v1263 = vld [vmem:[%s1225 + $0x94] sm:$0xf]
      %v1264 = vld [vmem:[%s1225 + $0x98] sm:$0xf]
      %v1265 = vld [vmem:[%s1225 + $0x9c] sm:$0xf]
      %v1266 = vld [vmem:[%s1225 + $0xa0] sm:$0xf]
      %v1267 = vld [vmem:[%s1225 + $0xa4] sm:$0xf]
      %v1268 = vld [vmem:[%s1225 + $0xa8] sm:$0xf]
      %v1269 = vld [vmem:[%s1225 + $0xac] sm:$0xf]
      %v1270 = vld [vmem:[%s1225 + $0xb0] sm:$0xf]
      %v1271 = vld [vmem:[%s1225 + $0xb4] sm:$0xf]
      %v1272 = vld [vmem:[%s1225 + $0xb8] sm:$0xf]
      %v1273 = vld [vmem:[%s1225 + $0xbc] sm:$0xf]
      %v1274 = vpack.c.b16 %v1204, %v1201
      %v1275 = vpack.c.b16 %v1205, %v1202
      %v1276 = vpack.c.b16 %v1206, %v1203
      %v1277 = vpack.c.b16 %v1210, %v1207
      %v1278 = vpack.c.b16 %v1211, %v1208
      %v1279 = vpack.c.b16 %v1212, %v1209
      %v1280 = vpack.c.b16 %v1216, %v1213
      %v1281 = vpack.c.b16 %v1217, %v1214
      %v1282 = vpack.c.b16 %v1218, %v1215
      %v1283 = vpack.c.b16 %v1222, %v1219
      %v1284 = vpack.c.b16 %v1223, %v1220
      %v1285 = vpack.c.b16 %v1224, %v1221
      %v1346 = vunpack.c.l.b16 %v1226
      %v1347 = vunpack.c.l.b16 %v1227
      %v1348 = vunpack.c.l.b16 %v1228
      %v1349 = vunpack.c.l.b16 %v1229
      %v1350 = vunpack.c.l.b16 %v1230
      %v1351 = vunpack.c.l.b16 %v1231
      %v1352 = vunpack.c.l.b16 %v1232
      %v1353 = vunpack.c.l.b16 %v1233
      %v1354 = vunpack.c.l.b16 %v1234
      %v1355 = vunpack.c.l.b16 %v1235
      %v1356 = vunpack.c.l.b16 %v1236
      %v1357 = vunpack.c.l.b16 %v1237
      %v1358 = vunpack.c.l.b16 %v1238
      %v1359 = vunpack.c.l.b16 %v1239
      %v1360 = vunpack.c.l.b16 %v1240
      %v1361 = vunpack.c.l.b16 %v1241
      %v1362 = vunpack.c.l.b16 %v1242
      %v1363 = vunpack.c.l.b16 %v1243
      %v1364 = vunpack.c.l.b16 %v1244
      %v1365 = vunpack.c.l.b16 %v1245
      %v1366 = vunpack.c.l.b16 %v1246
      %v1367 = vunpack.c.l.b16 %v1247
      %v1368 = vunpack.c.l.b16 %v1248
      %v1369 = vunpack.c.l.b16 %v1249
      %v1370 = vunpack.c.l.b16 %v1250
      %v1371 = vunpack.c.l.b16 %v1251
      %v1372 = vunpack.c.l.b16 %v1252
      %v1373 = vunpack.c.l.b16 %v1253
      %v1374 = vunpack.c.l.b16 %v1254
      %v1375 = vunpack.c.l.b16 %v1255
      %v1376 = vunpack.c.l.b16 %v1256
      %v1377 = vunpack.c.l.b16 %v1257
      %v1378 = vunpack.c.l.b16 %v1258
      %v1379 = vunpack.c.l.b16 %v1259
      %v1380 = vunpack.c.l.b16 %v1260
      %v1381 = vunpack.c.l.b16 %v1261
      %v1382 = vunpack.c.l.b16 %v1262
      %v1383 = vunpack.c.l.b16 %v1263
      %v1384 = vunpack.c.l.b16 %v1264
      %v1385 = vunpack.c.l.b16 %v1265
      %v1386 = vunpack.c.l.b16 %v1266
      %v1387 = vunpack.c.l.b16 %v1267
      %v1388 = vunpack.c.l.b16 %v1268
      %v1389 = vunpack.c.l.b16 %v1269
      %v1390 = vunpack.c.l.b16 %v1270
      %v1391 = vunpack.c.l.b16 %v1271
      %v1392 = vunpack.c.l.b16 %v1272
      %v1393 = vunpack.c.l.b16 %v1273
      %v1394 = vpack.c.b16 %v1347, %v1346
      %v1395 = vpack.c.b16 %v1349, %v1348
      %v1396 = vpack.c.b16 %v1351, %v1350
      %v1397 = vpack.c.b16 %v1353, %v1352
      %v1398 = vpack.c.b16 %v1355, %v1354
      %v1399 = vpack.c.b16 %v1357, %v1356
      %v1400 = vpack.c.b16 %v1359, %v1358
      %v1401 = vpack.c.b16 %v1361, %v1360
      %v1402 = vpack.c.b16 %v1363, %v1362
      %v1403 = vpack.c.b16 %v1365, %v1364
      %v1404 = vpack.c.b16 %v1367, %v1366
      %v1405 = vpack.c.b16 %v1369, %v1368
      %v1406 = vpack.c.b16 %v1371, %v1370
      %v1407 = vpack.c.b16 %v1373, %v1372
      %v1408 = vpack.c.b16 %v1375, %v1374
      %v1409 = vpack.c.b16 %v1377, %v1376
      %v1410 = vpack.c.b16 %v1379, %v1378
      %v1411 = vpack.c.b16 %v1381, %v1380
      %v1412 = vpack.c.b16 %v1383, %v1382
      %v1413 = vpack.c.b16 %v1385, %v1384
      %v1414 = vpack.c.b16 %v1387, %v1386
      %v1415 = vpack.c.b16 %v1389, %v1388
      %v1416 = vpack.c.b16 %v1391, %v1390
      %v1417 = vpack.c.b16 %v1393, %v1392
      %1442 = vmatprep.subr.bf16.mxu0 0
      %1443 = vmatpush1.bf16.msra.mxu0 %v1401
      %1444 = vmatprep.subr.bf16.mxu0 0
      %1445 = vmatpush1.bf16.msra.mxu0 %v1400
      %1446 = vmatprep.subr.bf16.mxu0 0
      %1447 = vmatpush1.bf16.msra.mxu0 %v1399
      %1448 = vmatprep.subr.bf16.mxu0 0
      %1449 = vmatpush1.bf16.msra.mxu0 %v1398
      %1450 = vmatprep.subr.bf16.mxu0 0
      %1451 = vmatpush1.bf16.msra.mxu0 %v1397
      %1452 = vmatprep.subr.bf16.mxu0 0
      %1453 = vmatpush1.bf16.msra.mxu0 %v1396
      %1454 = vmatprep.subr.bf16.mxu0 0
      %1455 = vmatpush1.bf16.msra.mxu0 %v1395
      %1456 = vmatprep.subr.bf16.mxu0 0
      %1457 = vmatpush1.bf16.msra.mxu0 %v1394
      %1458 = vmatprep.subr.bf16.mxu0 0
      %1459 = vmatpush2.bf16.msra.mxu0 %v1409
      %1460 = vmatprep.subr.bf16.mxu0 0
      %1461 = vmatpush2.bf16.msra.mxu0 %v1408
      %1462 = vmatprep.subr.bf16.mxu0 0
      %1463 = vmatpush2.bf16.msra.mxu0 %v1407
      %1464 = vmatprep.subr.bf16.mxu0 0
      %1465 = vmatpush2.bf16.msra.mxu0 %v1406
      %1466 = vmatprep.subr.bf16.mxu0 0
      %1467 = vmatpush2.bf16.msra.mxu0 %v1405
      %1468 = vmatprep.subr.bf16.mxu0 0
      %1469 = vmatpush2.bf16.msra.mxu0 %v1404
      %1470 = vmatprep.subr.bf16.mxu0 0
      %1471 = vmatpush2.bf16.msra.mxu0 %v1403
      %1472 = vmatprep.subr.bf16.mxu0 0
      %1473 = vmatpush2.bf16.msra.mxu0 %v1402
      %1474 = vmatprep.mubr.bf16.mxu0 %v1275
      %1475 = vmatmul.mubr.bf16.gmra.mxu0 %v1274
      %v1476 = vpop.f32.mrf.mxu0
      %v1477 = vadd.f32 0.0, %v1476
      %v1478 = vpop.f32.mrf.mxu0
      %v1479 = vpop.f32.mrf.mxu0
      %v1480 = vadd.f32 0.0, %v1479
      %v1481 = vpop.f32.mrf.mxu0
      %1482 = vmatprep.mubr.bf16.mxu0 %v1278
      %1483 = vmatmul.mubr.bf16.gmra.mxu0 %v1277
      %v1484 = vpop.f32.mrf.mxu0
      %v1485 = vadd.f32 0.0, %v1484
      %v1486 = vpop.f32.mrf.mxu0
      %v1487 = vpop.f32.mrf.mxu0
      %v1488 = vadd.f32 0.0, %v1487
      %v1489 = vpop.f32.mrf.mxu0
      %1490 = vmatprep.mubr.bf16.mxu0 %v1281
      %1491 = vmatmul.mubr.bf16.gmra.mxu0 %v1280
      %v1492 = vpop.f32.mrf.mxu0
      %v1493 = vadd.f32 0.0, %v1492
      %v1494 = vpop.f32.mrf.mxu0
      %v1495 = vpop.f32.mrf.mxu0
      %v1496 = vadd.f32 0.0, %v1495
      %v1497 = vpop.f32.mrf.mxu0
      %1498 = vmatprep.mubr.bf16.mxu0 %v1284
      %1499 = vmatmul.mubr.bf16.gmra.mxu0 %v1283
      %v1500 = vpop.f32.mrf.mxu0
      %v1501 = vadd.f32 0.0, %v1500
      %v1502 = vpop.f32.mrf.mxu0
      %v1503 = vpop.f32.mrf.mxu0
      %v1504 = vadd.f32 0.0, %v1503
      %v1505 = vpop.f32.mrf.mxu0
      %1506 = vdwg.mxu0
      %1507 = vmatprep.subr.bf16.mxu0 0
      %1508 = vmatpush1.bf16.msra.mxu0 %v1417
      %1509 = vmatprep.subr.bf16.mxu0 0
      %1510 = vmatpush1.bf16.msra.mxu0 %v1416
      %1511 = vmatprep.subr.bf16.mxu0 0
      %1512 = vmatpush1.bf16.msra.mxu0 %v1415
      %1513 = vmatprep.subr.bf16.mxu0 0
      %1514 = vmatpush1.bf16.msra.mxu0 %v1414
      %1515 = vmatprep.subr.bf16.mxu0 0
      %1516 = vmatpush1.bf16.msra.mxu0 %v1413
      %1517 = vmatprep.subr.bf16.mxu0 0
      %1518 = vmatpush1.bf16.msra.mxu0 %v1412
      %1519 = vmatprep.subr.bf16.mxu0 0
      %1520 = vmatpush1.bf16.msra.mxu0 %v1411
      %1521 = vmatprep.subr.bf16.mxu0 0
      %1522 = vmatpush1.bf16.msra.mxu0 %v1410
      %1523 = vmatprep.subr.bf16.mxu0 0
      %1524 = vmatpush2.bf16.msra.mxu0 0
      %1525 = vmatprep.subr.bf16.mxu0 0
      %1526 = vmatpush2.bf16.msra.mxu0 0
      %1527 = vmatprep.subr.bf16.mxu0 0
      %1528 = vmatpush2.bf16.msra.mxu0 0
      %1529 = vmatprep.subr.bf16.mxu0 0
      %1530 = vmatpush2.bf16.msra.mxu0 0
      %1531 = vmatprep.subr.bf16.mxu0 0
      %1532 = vmatpush2.bf16.msra.mxu0 0
      %1533 = vmatprep.subr.bf16.mxu0 0
      %1534 = vmatpush2.bf16.msra.mxu0 0
      %1535 = vmatprep.subr.bf16.mxu0 0
      %1536 = vmatpush2.bf16.msra.mxu0 0
      %1537 = vmatprep.subr.bf16.mxu0 0
      %1538 = vmatpush2.bf16.msra.mxu0 0
      %1539 = vmatprep.mubr.bf16.mxu0 0
      %1540 = vmatmul.mubr.bf16.gmra.mxu0 %v1276
      %v1541 = vpop.f32.mrf.mxu0
      %v1542 = vadd.f32 %v1477, %v1541
      %v1543 = vpop.f32.mrf.mxu0
      %v1544 = vpop.f32.mrf.mxu0
      %v1545 = vadd.f32 %v1480, %v1544
      %v1546 = vpop.f32.mrf.mxu0
      %1547 = vmatprep.mubr.bf16.mxu0 0
      %1548 = vmatmul.mubr.bf16.gmra.mxu0 %v1279
      %v1549 = vpop.f32.mrf.mxu0
      %v1550 = vadd.f32 %v1485, %v1549
      %v1551 = vpop.f32.mrf.mxu0
      %v1552 = vpop.f32.mrf.mxu0
      %v1553 = vadd.f32 %v1488, %v1552
      %v1554 = vpop.f32.mrf.mxu0
      %1555 = vmatprep.mubr.bf16.mxu0 0
      %1556 = vmatmul.mubr.bf16.gmra.mxu0 %v1282
      %v1557 = vpop.f32.mrf.mxu0
      %v1558 = vadd.f32 %v1493, %v1557
      %v1559 = vpop.f32.mrf.mxu0
      %v1560 = vpop.f32.mrf.mxu0
      %v1561 = vadd.f32 %v1496, %v1560
      %v1562 = vpop.f32.mrf.mxu0
      %1563 = vmatprep.mubr.bf16.mxu0 0
      %1564 = vmatmul.mubr.bf16.gmra.mxu0 %v1285
      %v1565 = vpop.f32.mrf.mxu0
      %v1566 = vadd.f32 %v1501, %v1565
      %v1567 = vpop.f32.mrf.mxu0
      %v1568 = vpop.f32.mrf.mxu0
      %v1569 = vadd.f32 %v1504, %v1568
      %v1570 = vpop.f32.mrf.mxu0
      %1571 = vdwg.mxu0
      %v1572 = vadd.f32 %v1075, %v1542
      %v1573 = vadd.f32 %v1078, %v1545
      %v1574 = vadd.f32 %v1083, %v1550
      %v1575 = vadd.f32 %v1086, %v1553
      %v1576 = vadd.f32 %v1091, %v1558
      %v1577 = vadd.f32 %v1094, %v1561
      %v1578 = vadd.f32 %v1099, %v1566
      %v1579 = vadd.f32 %v1102, %v1569
      %s1580 = scalar_lea.vmem [#allocation2], 48
      %v1581 = vld [vmem:[%s1580] ss:$2 sm:$0xff]
      %s1582 = scalar_lea.vmem %s1580, 48 [#allocation2]
      %v1583 = vld [vmem:[%s1582] ss:$2 sm:$0xff]
      %s1584 = scalar_lea.vmem %s1580, 96 [#allocation2]
      %v1585 = vld [vmem:[%s1584] ss:$2 sm:$0xff]
      %s1586 = scalar_lea.vmem %s1580, 144 [#allocation2]
      %v1587 = vld [vmem:[%s1586] ss:$2 sm:$0xff]
      %s1588 = scalar_lea.vmem %s1580, 192 [#allocation2]
      %v1589 = vld [vmem:[%s1588] ss:$2 sm:$0xff]
      %s1590 = scalar_lea.vmem %s1580, 240 [#allocation2]
      %v1591 = vld [vmem:[%s1590] ss:$2 sm:$0xff]
      %s1592 = scalar_lea.vmem %s1580, 288 [#allocation2]
      %v1593 = vld [vmem:[%s1592] ss:$2 sm:$0xff]
      %s1594 = scalar_lea.vmem %s1580, 336 [#allocation2]
      %v1595 = vld [vmem:[%s1594] ss:$2 sm:$0xff]
      %v1596 = vpack.c.bf16 %v1581, %v1581
      %v1597 = vpack.c.bf16 %v1583, %v1583
      %v1598 = vpack.c.bf16 %v1585, %v1585
      %v1599 = vpack.c.bf16 %v1587, %v1587
      %v1600 = vpack.c.bf16 %v1589, %v1589
      %v1601 = vpack.c.bf16 %v1591, %v1591
      %v1602 = vpack.c.bf16 %v1593, %v1593
      %v1603 = vpack.c.bf16 %v1595, %v1595
      %s1604 = scalar_lea.vmem %s1580, 1 [#allocation2]
      %v1605 = vld [vmem:[%s1604] ss:$2 sm:$0xff]
      %s1606 = scalar_lea.vmem %s1580, 49 [#allocation2]
      %v1607 = vld [vmem:[%s1606] ss:$2 sm:$0xff]
      %s1608 = scalar_lea.vmem %s1580, 97 [#allocation2]
      %v1609 = vld [vmem:[%s1608] ss:$2 sm:$0xff]
      %s1610 = scalar_lea.vmem %s1580, 145 [#allocation2]
      %v1611 = vld [vmem:[%s1610] ss:$2 sm:$0xff]
      %s1612 = scalar_lea.vmem %s1580, 193 [#allocation2]
      %v1613 = vld [vmem:[%s1612] ss:$2 sm:$0xff]
      %s1614 = scalar_lea.vmem %s1580, 241 [#allocation2]
      %v1615 = vld [vmem:[%s1614] ss:$2 sm:$0xff]
      %s1616 = scalar_lea.vmem %s1580, 289 [#allocation2]
      %v1617 = vld [vmem:[%s1616] ss:$2 sm:$0xff]
      %s1618 = scalar_lea.vmem %s1580, 337 [#allocation2]
      %v1619 = vld [vmem:[%s1618] ss:$2 sm:$0xff]
      %v1620 = vpack.c.bf16 %v1605, %v1605
      %v1621 = vpack.c.bf16 %v1607, %v1607
      %v1622 = vpack.c.bf16 %v1609, %v1609
      %v1623 = vpack.c.bf16 %v1611, %v1611
      %v1624 = vpack.c.bf16 %v1613, %v1613
      %v1625 = vpack.c.bf16 %v1615, %v1615
      %v1626 = vpack.c.bf16 %v1617, %v1617
      %v1627 = vpack.c.bf16 %v1619, %v1619
      %s1628 = scalar_lea.vmem %s1580, 2 [#allocation2]
      %v1629 = vld [vmem:[%s1628] ss:$2 sm:$0xff]
      %s1630 = scalar_lea.vmem %s1580, 50 [#allocation2]
      %v1631 = vld [vmem:[%s1630] ss:$2 sm:$0xff]
      %s1632 = scalar_lea.vmem %s1580, 98 [#allocation2]
      %v1633 = vld [vmem:[%s1632] ss:$2 sm:$0xff]
      %s1634 = scalar_lea.vmem %s1580, 146 [#allocation2]
      %v1635 = vld [vmem:[%s1634] ss:$2 sm:$0xff]
      %s1636 = scalar_lea.vmem %s1580, 194 [#allocation2]
      %v1637 = vld [vmem:[%s1636] ss:$2 sm:$0xff]
      %s1638 = scalar_lea.vmem %s1580, 242 [#allocation2]
      %v1639 = vld [vmem:[%s1638] ss:$2 sm:$0xff]
      %s1640 = scalar_lea.vmem %s1580, 290 [#allocation2]
      %v1641 = vld [vmem:[%s1640] ss:$2 sm:$0xff]
      %s1642 = scalar_lea.vmem %s1580, 338 [#allocation2]
      %v1643 = vld [vmem:[%s1642] ss:$2 sm:$0xff]
      %v1644 = vpack.c.bf16 %v1629, %v1629
      %v1645 = vpack.c.bf16 %v1631, %v1631
      %v1646 = vpack.c.bf16 %v1633, %v1633
      %v1647 = vpack.c.bf16 %v1635, %v1635
      %v1648 = vpack.c.bf16 %v1637, %v1637
      %v1649 = vpack.c.bf16 %v1639, %v1639
      %v1650 = vpack.c.bf16 %v1641, %v1641
      %v1651 = vpack.c.bf16 %v1643, %v1643
      %v1676 = vunpack.c.l.b16 %v1596
      %v1677 = vunpack.c.l.b16 %v1620
      %v1678 = vunpack.c.l.b16 %v1644
      %v1679 = vunpack.c.l.b16 %v1597
      %v1680 = vunpack.c.l.b16 %v1621
      %v1681 = vunpack.c.l.b16 %v1645
      %v1682 = vunpack.c.l.b16 %v1598
      %v1683 = vunpack.c.l.b16 %v1622
      %v1684 = vunpack.c.l.b16 %v1646
      %v1685 = vunpack.c.l.b16 %v1599
      %v1686 = vunpack.c.l.b16 %v1623
      %v1687 = vunpack.c.l.b16 %v1647
      %v1688 = vunpack.c.l.b16 %v1600
      %v1689 = vunpack.c.l.b16 %v1624
      %v1690 = vunpack.c.l.b16 %v1648
      %v1691 = vunpack.c.l.b16 %v1601
      %v1692 = vunpack.c.l.b16 %v1625
      %v1693 = vunpack.c.l.b16 %v1649
      %v1694 = vunpack.c.l.b16 %v1602
      %v1695 = vunpack.c.l.b16 %v1626
      %v1696 = vunpack.c.l.b16 %v1650
      %v1697 = vunpack.c.l.b16 %v1603
      %v1698 = vunpack.c.l.b16 %v1627
      %v1699 = vunpack.c.l.b16 %v1651
      %s1700 = scalar_lea.vmem %s346, 384
      %v1701 = vld [vmem:[%s1700] sm:$0xf]
      %v1702 = vld [vmem:[%s1700 + $0x4] sm:$0xf]
      %v1703 = vld [vmem:[%s1700 + $0x8] sm:$0xf]
      %v1704 = vld [vmem:[%s1700 + $0xc] sm:$0xf]
      %v1705 = vld [vmem:[%s1700 + $0x10] sm:$0xf]
      %v1706 = vld [vmem:[%s1700 + $0x14] sm:$0xf]
      %v1707 = vld [vmem:[%s1700 + $0x18] sm:$0xf]
      %v1708 = vld [vmem:[%s1700 + $0x1c] sm:$0xf]
      %v1709 = vld [vmem:[%s1700 + $0x20] sm:$0xf]
      %v1710 = vld [vmem:[%s1700 + $0x24] sm:$0xf]
      %v1711 = vld [vmem:[%s1700 + $0x28] sm:$0xf]
      %v1712 = vld [vmem:[%s1700 + $0x2c] sm:$0xf]
      %v1713 = vld [vmem:[%s1700 + $0x30] sm:$0xf]
      %v1714 = vld [vmem:[%s1700 + $0x34] sm:$0xf]
      %v1715 = vld [vmem:[%s1700 + $0x38] sm:$0xf]
      %v1716 = vld [vmem:[%s1700 + $0x3c] sm:$0xf]
      %v1717 = vld [vmem:[%s1700 + $0x40] sm:$0xf]
      %v1718 = vld [vmem:[%s1700 + $0x44] sm:$0xf]
      %v1719 = vld [vmem:[%s1700 + $0x48] sm:$0xf]
      %v1720 = vld [vmem:[%s1700 + $0x4c] sm:$0xf]
      %v1721 = vld [vmem:[%s1700 + $0x50] sm:$0xf]
      %v1722 = vld [vmem:[%s1700 + $0x54] sm:$0xf]
      %v1723 = vld [vmem:[%s1700 + $0x58] sm:$0xf]
      %v1724 = vld [vmem:[%s1700 + $0x5c] sm:$0xf]
      %v1725 = vld [vmem:[%s1700 + $0x60] sm:$0xf]
      %v1726 = vld [vmem:[%s1700 + $0x64] sm:$0xf]
      %v1727 = vld [vmem:[%s1700 + $0x68] sm:$0xf]
      %v1728 = vld [vmem:[%s1700 + $0x6c] sm:$0xf]
      %v1729 = vld [vmem:[%s1700 + $0x70] sm:$0xf]
      %v1730 = vld [vmem:[%s1700 + $0x74] sm:$0xf]
      %v1731 = vld [vmem:[%s1700 + $0x78] sm:$0xf]
      %v1732 = vld [vmem:[%s1700 + $0x7c] sm:$0xf]
      %v1733 = vld [vmem:[%s1700 + $0x80] sm:$0xf]
      %v1734 = vld [vmem:[%s1700 + $0x84] sm:$0xf]
      %v1735 = vld [vmem:[%s1700 + $0x88] sm:$0xf]
      %v1736 = vld [vmem:[%s1700 + $0x8c] sm:$0xf]
      %v1737 = vld [vmem:[%s1700 + $0x90] sm:$0xf]
      %v1738 = vld [vmem:[%s1700 + $0x94] sm:$0xf]
      %v1739 = vld [vmem:[%s1700 + $0x98] sm:$0xf]
      %v1740 = vld [vmem:[%s1700 + $0x9c] sm:$0xf]
      %v1741 = vld [vmem:[%s1700 + $0xa0] sm:$0xf]
      %v1742 = vld [vmem:[%s1700 + $0xa4] sm:$0xf]
      %v1743 = vld [vmem:[%s1700 + $0xa8] sm:$0xf]
      %v1744 = vld [vmem:[%s1700 + $0xac] sm:$0xf]
      %v1745 = vld [vmem:[%s1700 + $0xb0] sm:$0xf]
      %v1746 = vld [vmem:[%s1700 + $0xb4] sm:$0xf]
      %v1747 = vld [vmem:[%s1700 + $0xb8] sm:$0xf]
      %v1748 = vld [vmem:[%s1700 + $0xbc] sm:$0xf]
      %v1749 = vpack.c.b16 %v1679, %v1676
      %v1750 = vpack.c.b16 %v1680, %v1677
      %v1751 = vpack.c.b16 %v1681, %v1678
      %v1752 = vpack.c.b16 %v1685, %v1682
      %v1753 = vpack.c.b16 %v1686, %v1683
      %v1754 = vpack.c.b16 %v1687, %v1684
      %v1755 = vpack.c.b16 %v1691, %v1688
      %v1756 = vpack.c.b16 %v1692, %v1689
      %v1757 = vpack.c.b16 %v1693, %v1690
      %v1758 = vpack.c.b16 %v1697, %v1694
      %v1759 = vpack.c.b16 %v1698, %v1695
      %v1760 = vpack.c.b16 %v1699, %v1696
      %v1821 = vunpack.c.l.b16 %v1701
      %v1822 = vunpack.c.l.b16 %v1702
      %v1823 = vunpack.c.l.b16 %v1703
      %v1824 = vunpack.c.l.b16 %v1704
      %v1825 = vunpack.c.l.b16 %v1705
      %v1826 = vunpack.c.l.b16 %v1706
      %v1827 = vunpack.c.l.b16 %v1707
      %v1828 = vunpack.c.l.b16 %v1708
      %v1829 = vunpack.c.l.b16 %v1709
      %v1830 = vunpack.c.l.b16 %v1710
      %v1831 = vunpack.c.l.b16 %v1711
      %v1832 = vunpack.c.l.b16 %v1712
      %v1833 = vunpack.c.l.b16 %v1713
      %v1834 = vunpack.c.l.b16 %v1714
      %v1835 = vunpack.c.l.b16 %v1715
      %v1836 = vunpack.c.l.b16 %v1716
      %v1837 = vunpack.c.l.b16 %v1717
      %v1838 = vunpack.c.l.b16 %v1718
      %v1839 = vunpack.c.l.b16 %v1719
      %v1840 = vunpack.c.l.b16 %v1720
      %v1841 = vunpack.c.l.b16 %v1721
      %v1842 = vunpack.c.l.b16 %v1722
      %v1843 = vunpack.c.l.b16 %v1723
      %v1844 = vunpack.c.l.b16 %v1724
      %v1845 = vunpack.c.l.b16 %v1725
      %v1846 = vunpack.c.l.b16 %v1726
      %v1847 = vunpack.c.l.b16 %v1727
      %v1848 = vunpack.c.l.b16 %v1728
      %v1849 = vunpack.c.l.b16 %v1729
      %v1850 = vunpack.c.l.b16 %v1730
      %v1851 = vunpack.c.l.b16 %v1731
      %v1852 = vunpack.c.l.b16 %v1732
      %v1853 = vunpack.c.l.b16 %v1733
      %v1854 = vunpack.c.l.b16 %v1734
      %v1855 = vunpack.c.l.b16 %v1735
      %v1856 = vunpack.c.l.b16 %v1736
      %v1857 = vunpack.c.l.b16 %v1737
      %v1858 = vunpack.c.l.b16 %v1738
      %v1859 = vunpack.c.l.b16 %v1739
      %v1860 = vunpack.c.l.b16 %v1740
      %v1861 = vunpack.c.l.b16 %v1741
      %v1862 = vunpack.c.l.b16 %v1742
      %v1863 = vunpack.c.l.b16 %v1743
      %v1864 = vunpack.c.l.b16 %v1744
      %v1865 = vunpack.c.l.b16 %v1745
      %v1866 = vunpack.c.l.b16 %v1746
      %v1867 = vunpack.c.l.b16 %v1747
      %v1868 = vunpack.c.l.b16 %v1748
      %v1869 = vpack.c.b16 %v1822, %v1821
      %v1870 = vpack.c.b16 %v1824, %v1823
      %v1871 = vpack.c.b16 %v1826, %v1825
      %v1872 = vpack.c.b16 %v1828, %v1827
      %v1873 = vpack.c.b16 %v1830, %v1829
      %v1874 = vpack.c.b16 %v1832, %v1831
      %v1875 = vpack.c.b16 %v1834, %v1833
      %v1876 = vpack.c.b16 %v1836, %v1835
      %v1877 = vpack.c.b16 %v1838, %v1837
      %v1878 = vpack.c.b16 %v1840, %v1839
      %v1879 = vpack.c.b16 %v1842, %v1841
      %v1880 = vpack.c.b16 %v1844, %v1843
      %v1881 = vpack.c.b16 %v1846, %v1845
      %v1882 = vpack.c.b16 %v1848, %v1847
      %v1883 = vpack.c.b16 %v1850, %v1849
      %v1884 = vpack.c.b16 %v1852, %v1851
      %v1885 = vpack.c.b16 %v1854, %v1853
      %v1886 = vpack.c.b16 %v1856, %v1855
      %v1887 = vpack.c.b16 %v1858, %v1857
      %v1888 = vpack.c.b16 %v1860, %v1859
      %v1889 = vpack.c.b16 %v1862, %v1861
      %v1890 = vpack.c.b16 %v1864, %v1863
      %v1891 = vpack.c.b16 %v1866, %v1865
      %v1892 = vpack.c.b16 %v1868, %v1867
      %1917 = vmatprep.subr.bf16.mxu0 0
      %1918 = vmatpush1.bf16.msra.mxu0 %v1876
      %1919 = vmatprep.subr.bf16.mxu0 0
      %1920 = vmatpush1.bf16.msra.mxu0 %v1875
      %1921 = vmatprep.subr.bf16.mxu0 0
      %1922 = vmatpush1.bf16.msra.mxu0 %v1874
      %1923 = vmatprep.subr.bf16.mxu0 0
      %1924 = vmatpush1.bf16.msra.mxu0 %v1873
      %1925 = vmatprep.subr.bf16.mxu0 0
      %1926 = vmatpush1.bf16.msra.mxu0 %v1872
      %1927 = vmatprep.subr.bf16.mxu0 0
      %1928 = vmatpush1.bf16.msra.mxu0 %v1871
      %1929 = vmatprep.subr.bf16.mxu0 0
      %1930 = vmatpush1.bf16.msra.mxu0 %v1870
      %1931 = vmatprep.subr.bf16.mxu0 0
      %1932 = vmatpush1.bf16.msra.mxu0 %v1869
      %1933 = vmatprep.subr.bf16.mxu0 0
      %1934 = vmatpush2.bf16.msra.mxu0 %v1884
      %1935 = vmatprep.subr.bf16.mxu0 0
      %1936 = vmatpush2.bf16.msra.mxu0 %v1883
      %1937 = vmatprep.subr.bf16.mxu0 0
      %1938 = vmatpush2.bf16.msra.mxu0 %v1882
      %1939 = vmatprep.subr.bf16.mxu0 0
      %1940 = vmatpush2.bf16.msra.mxu0 %v1881
      %1941 = vmatprep.subr.bf16.mxu0 0
      %1942 = vmatpush2.bf16.msra.mxu0 %v1880
      %1943 = vmatprep.subr.bf16.mxu0 0
      %1944 = vmatpush2.bf16.msra.mxu0 %v1879
      %1945 = vmatprep.subr.bf16.mxu0 0
      %1946 = vmatpush2.bf16.msra.mxu0 %v1878
      %1947 = vmatprep.subr.bf16.mxu0 0
      %1948 = vmatpush2.bf16.msra.mxu0 %v1877
      %1949 = vmatprep.mubr.bf16.mxu0 %v1750
      %1950 = vmatmul.mubr.bf16.gmra.mxu0 %v1749
      %v1951 = vpop.f32.mrf.mxu0
      %v1952 = vadd.f32 0.0, %v1951
      %v1953 = vpop.f32.mrf.mxu0
      %v1954 = vpop.f32.mrf.mxu0
      %v1955 = vadd.f32 0.0, %v1954
      %v1956 = vpop.f32.mrf.mxu0
      %1957 = vmatprep.mubr.bf16.mxu0 %v1753
      %1958 = vmatmul.mubr.bf16.gmra.mxu0 %v1752
      %v1959 = vpop.f32.mrf.mxu0
      %v1960 = vadd.f32 0.0, %v1959
      %v1961 = vpop.f32.mrf.mxu0
      %v1962 = vpop.f32.mrf.mxu0
      %v1963 = vadd.f32 0.0, %v1962
      %v1964 = vpop.f32.mrf.mxu0
      %1965 = vmatprep.mubr.bf16.mxu0 %v1756
      %1966 = vmatmul.mubr.bf16.gmra.mxu0 %v1755
      %v1967 = vpop.f32.mrf.mxu0
      %v1968 = vadd.f32 0.0, %v1967
      %v1969 = vpop.f32.mrf.mxu0
      %v1970 = vpop.f32.mrf.mxu0
      %v1971 = vadd.f32 0.0, %v1970
      %v1972 = vpop.f32.mrf.mxu0
      %1973 = vmatprep.mubr.bf16.mxu0 %v1759
      %1974 = vmatmul.mubr.bf16.gmra.mxu0 %v1758
      %v1975 = vpop.f32.mrf.mxu0
      %v1976 = vadd.f32 0.0, %v1975
      %v1977 = vpop.f32.mrf.mxu0
      %v1978 = vpop.f32.mrf.mxu0
      %v1979 = vadd.f32 0.0, %v1978
      %v1980 = vpop.f32.mrf.mxu0
      %1981 = vdwg.mxu0
      %1982 = vmatprep.subr.bf16.mxu0 0
      %1983 = vmatpush1.bf16.msra.mxu0 %v1892
      %1984 = vmatprep.subr.bf16.mxu0 0
      %1985 = vmatpush1.bf16.msra.mxu0 %v1891
      %1986 = vmatprep.subr.bf16.mxu0 0
      %1987 = vmatpush1.bf16.msra.mxu0 %v1890
      %1988 = vmatprep.subr.bf16.mxu0 0
      %1989 = vmatpush1.bf16.msra.mxu0 %v1889
      %1990 = vmatprep.subr.bf16.mxu0 0
      %1991 = vmatpush1.bf16.msra.mxu0 %v1888
      %1992 = vmatprep.subr.bf16.mxu0 0
      %1993 = vmatpush1.bf16.msra.mxu0 %v1887
      %1994 = vmatprep.subr.bf16.mxu0 0
      %1995 = vmatpush1.bf16.msra.mxu0 %v1886
      %1996 = vmatprep.subr.bf16.mxu0 0
      %1997 = vmatpush1.bf16.msra.mxu0 %v1885
      %1998 = vmatprep.subr.bf16.mxu0 0
      %1999 = vmatpush2.bf16.msra.mxu0 0
      %2000 = vmatprep.subr.bf16.mxu0 0
      %2001 = vmatpush2.bf16.msra.mxu0 0
      %2002 = vmatprep.subr.bf16.mxu0 0
      %2003 = vmatpush2.bf16.msra.mxu0 0
      %2004 = vmatprep.subr.bf16.mxu0 0
      %2005 = vmatpush2.bf16.msra.mxu0 0
      %2006 = vmatprep.subr.bf16.mxu0 0
      %2007 = vmatpush2.bf16.msra.mxu0 0
      %2008 = vmatprep.subr.bf16.mxu0 0
      %2009 = vmatpush2.bf16.msra.mxu0 0
      %2010 = vmatprep.subr.bf16.mxu0 0
      %2011 = vmatpush2.bf16.msra.mxu0 0
      %2012 = vmatprep.subr.bf16.mxu0 0
      %2013 = vmatpush2.bf16.msra.mxu0 0
      %2014 = vmatprep.mubr.bf16.mxu0 0
      %2015 = vmatmul.mubr.bf16.gmra.mxu0 %v1751
      %v2016 = vpop.f32.mrf.mxu0
      %v2017 = vadd.f32 %v1952, %v2016
      %v2018 = vpop.f32.mrf.mxu0
      %v2019 = vpop.f32.mrf.mxu0
      %v2020 = vadd.f32 %v1955, %v2019
      %v2021 = vpop.f32.mrf.mxu0
      %2022 = vmatprep.mubr.bf16.mxu0 0
      %2023 = vmatmul.mubr.bf16.gmra.mxu0 %v1754
      %v2024 = vpop.f32.mrf.mxu0
      %v2025 = vadd.f32 %v1960, %v2024
      %v2026 = vpop.f32.mrf.mxu0
      %v2027 = vpop.f32.mrf.mxu0
      %v2028 = vadd.f32 %v1963, %v2027
      %v2029 = vpop.f32.mrf.mxu0
      %2030 = vmatprep.mubr.bf16.mxu0 0
      %2031 = vmatmul.mubr.bf16.gmra.mxu0 %v1757
      %v2032 = vpop.f32.mrf.mxu0
      %v2033 = vadd.f32 %v1968, %v2032
      %v2034 = vpop.f32.mrf.mxu0
      %v2035 = vpop.f32.mrf.mxu0
      %v2036 = vadd.f32 %v1971, %v2035
      %v2037 = vpop.f32.mrf.mxu0
      %2038 = vmatprep.mubr.bf16.mxu0 0
      %2039 = vmatmul.mubr.bf16.gmra.mxu0 %v1760
      %v2040 = vpop.f32.mrf.mxu0
      %v2041 = vadd.f32 %v1976, %v2040
      %v2042 = vpop.f32.mrf.mxu0
      %v2043 = vpop.f32.mrf.mxu0
      %v2044 = vadd.f32 %v1979, %v2043
      %v2045 = vpop.f32.mrf.mxu0
      %2046 = vdwg.mxu0
      %v2047 = vadd.f32 %v1572, %v2017
      %v2048 = vadd.f32 %v1573, %v2020
      %v2049 = vadd.f32 %v1574, %v2025
      %v2050 = vadd.f32 %v1575, %v2028
      %v2051 = vadd.f32 %v1576, %v2033
      %v2052 = vadd.f32 %v1577, %v2036
      %v2053 = vadd.f32 %v1578, %v2041
      %v2054 = vadd.f32 %v1579, %v2044
      %v2055 = vld [vmem:[%s354] ss:$2 sm:$0xff]
      %s2056 = scalar_lea.vmem %s354, 32
      %v2057 = vld [vmem:[%s2056] ss:$2 sm:$0xff]
      %s2058 = scalar_lea.vmem %s354, 64
      %v2059 = vld [vmem:[%s2058] ss:$2 sm:$0xff]
      %s2060 = scalar_lea.vmem %s354, 96
      %v2061 = vld [vmem:[%s2060] ss:$2 sm:$0xff]
      %s2062 = scalar_lea.vmem %s354, 128
      %v2063 = vld [vmem:[%s2062] ss:$2 sm:$0xff]
      %s2064 = scalar_lea.vmem %s354, 160
      %v2065 = vld [vmem:[%s2064] ss:$2 sm:$0xff]
      %s2066 = scalar_lea.vmem %s354, 192
      %v2067 = vld [vmem:[%s2066] ss:$2 sm:$0xff]
      %s2068 = scalar_lea.vmem %s354, 224
      %v2069 = vld [vmem:[%s2068] ss:$2 sm:$0xff]
      %v2070 = vpack.c.bf16 %v2057, %v2055
      %v2071 = vpack.c.bf16 %v2061, %v2059
      %v2072 = vpack.c.bf16 %v2065, %v2063
      %v2073 = vpack.c.bf16 %v2069, %v2067
      %v2074 = vld [vmem:[%s358] sm:$0xf]
      %v2075 = vld [vmem:[%s358 + $0x4] sm:$0xf]
      %v2076 = vld [vmem:[%s358 + $0x8] sm:$0xf]
      %v2077 = vld [vmem:[%s358 + $0xc] sm:$0xf]
      %v2078 = vld [vmem:[%s358 + $0x10] sm:$0xf]
      %v2079 = vld [vmem:[%s358 + $0x14] sm:$0xf]
      %v2080 = vld [vmem:[%s358 + $0x18] sm:$0xf]
      %v2081 = vld [vmem:[%s358 + $0x1c] sm:$0xf]
      %v2082 = vld [vmem:[%s358 + $0x20] sm:$0xf]
      %v2083 = vld [vmem:[%s358 + $0x24] sm:$0xf]
      %v2084 = vld [vmem:[%s358 + $0x28] sm:$0xf]
      %v2085 = vld [vmem:[%s358 + $0x2c] sm:$0xf]
      %v2086 = vld [vmem:[%s358 + $0x30] sm:$0xf]
      %v2087 = vld [vmem:[%s358 + $0x34] sm:$0xf]
      %v2088 = vld [vmem:[%s358 + $0x38] sm:$0xf]
      %v2089 = vld [vmem:[%s358 + $0x3c] sm:$0xf]
      %v2106 = vunpack.c.l.b16 %v2074
      %v2107 = vunpack.c.l.b16 %v2075
      %v2108 = vunpack.c.l.b16 %v2076
      %v2109 = vunpack.c.l.b16 %v2077
      %v2110 = vunpack.c.l.b16 %v2078
      %v2111 = vunpack.c.l.b16 %v2079
      %v2112 = vunpack.c.l.b16 %v2080
      %v2113 = vunpack.c.l.b16 %v2081
      %v2114 = vunpack.c.l.b16 %v2082
      %v2115 = vunpack.c.l.b16 %v2083
      %v2116 = vunpack.c.l.b16 %v2084
      %v2117 = vunpack.c.l.b16 %v2085
      %v2118 = vunpack.c.l.b16 %v2086
      %v2119 = vunpack.c.l.b16 %v2087
      %v2120 = vunpack.c.l.b16 %v2088
      %v2121 = vunpack.c.l.b16 %v2089
      %v2122 = vpack.c.b16 %v2107, %v2106
      %v2123 = vpack.c.b16 %v2109, %v2108
      %v2124 = vpack.c.b16 %v2111, %v2110
      %v2125 = vpack.c.b16 %v2113, %v2112
      %v2126 = vpack.c.b16 %v2115, %v2114
      %v2127 = vpack.c.b16 %v2117, %v2116
      %v2128 = vpack.c.b16 %v2119, %v2118
      %v2129 = vpack.c.b16 %v2121, %v2120
      %2138 = vmatprep.subr.bf16.mxu0 0
      %2139 = vmatpush1.bf16.msra.mxu0 %v2129
      %2140 = vmatprep.subr.bf16.mxu0 0
      %2141 = vmatpush1.bf16.msra.mxu0 %v2128
      %2142 = vmatprep.subr.bf16.mxu0 0
      %2143 = vmatpush1.bf16.msra.mxu0 %v2127
      %2144 = vmatprep.subr.bf16.mxu0 0
      %2145 = vmatpush1.bf16.msra.mxu0 %v2126
      %2146 = vmatprep.subr.bf16.mxu0 0
      %2147 = vmatpush1.bf16.msra.mxu0 %v2125
      %2148 = vmatprep.subr.bf16.mxu0 0
      %2149 = vmatpush1.bf16.msra.mxu0 %v2124
      %2150 = vmatprep.subr.bf16.mxu0 0
      %2151 = vmatpush1.bf16.msra.mxu0 %v2123
      %2152 = vmatprep.subr.bf16.mxu0 0
      %2153 = vmatpush1.bf16.msra.mxu0 %v2122
      %2154 = vmatprep.subr.bf16.mxu0 0
      %2155 = vmatpush2.bf16.msra.mxu0 0
      %2156 = vmatprep.subr.bf16.mxu0 0
      %2157 = vmatpush2.bf16.msra.mxu0 0
      %2158 = vmatprep.subr.bf16.mxu0 0
      %2159 = vmatpush2.bf16.msra.mxu0 0
      %2160 = vmatprep.subr.bf16.mxu0 0
      %2161 = vmatpush2.bf16.msra.mxu0 0
      %2162 = vmatprep.subr.bf16.mxu0 0
      %2163 = vmatpush2.bf16.msra.mxu0 0
      %2164 = vmatprep.subr.bf16.mxu0 0
      %2165 = vmatpush2.bf16.msra.mxu0 0
      %2166 = vmatprep.subr.bf16.mxu0 0
      %2167 = vmatpush2.bf16.msra.mxu0 0
      %2168 = vmatprep.subr.bf16.mxu0 0
      %2169 = vmatpush2.bf16.msra.mxu0 0
      %2170 = vmatprep.mubr.bf16.mxu0 0
      %2171 = vmatmul.mubr.bf16.gmra.mxu0 %v2070
      %v2172 = vpop.f32.mrf.mxu0
      %v2173 = vadd.f32 0.0, %v2172
      %v2174 = vpop.f32.mrf.mxu0
      %v2175 = vpop.f32.mrf.mxu0
      %v2176 = vadd.f32 0.0, %v2175
      %v2177 = vpop.f32.mrf.mxu0
      %2178 = vmatprep.mubr.bf16.mxu0 0
      %2179 = vmatmul.mubr.bf16.gmra.mxu0 %v2071
      %v2180 = vpop.f32.mrf.mxu0
      %v2181 = vadd.f32 0.0, %v2180
      %v2182 = vpop.f32.mrf.mxu0
      %v2183 = vpop.f32.mrf.mxu0
      %v2184 = vadd.f32 0.0, %v2183
      %v2185 = vpop.f32.mrf.mxu0
      %2186 = vmatprep.mubr.bf16.mxu0 0
      %2187 = vmatmul.mubr.bf16.gmra.mxu0 %v2072
      %v2188 = vpop.f32.mrf.mxu0
      %v2189 = vadd.f32 0.0, %v2188
      %v2190 = vpop.f32.mrf.mxu0
      %v2191 = vpop.f32.mrf.mxu0
      %v2192 = vadd.f32 0.0, %v2191
      %v2193 = vpop.f32.mrf.mxu0
      %2194 = vmatprep.mubr.bf16.mxu0 0
      %2195 = vmatmul.mubr.bf16.gmra.mxu0 %v2073
      %v2196 = vpop.f32.mrf.mxu0
      %v2197 = vadd.f32 0.0, %v2196
      %v2198 = vpop.f32.mrf.mxu0
      %v2199 = vpop.f32.mrf.mxu0
      %v2200 = vadd.f32 0.0, %v2199
      %v2201 = vpop.f32.mrf.mxu0
      %2202 = vdwg.mxu0
      %v2203 = vadd.f32 %v2047, %v2173
      %v2204 = vadd.f32 %v2048, %v2176
      %v2205 = vadd.f32 %v2049, %v2181
      %v2206 = vadd.f32 %v2050, %v2184
      %v2207 = vadd.f32 %v2051, %v2189
      %v2208 = vadd.f32 %v2052, %v2192
      %v2209 = vadd.f32 %v2053, %v2197
      %v2210 = vadd.f32 %v2054, %v2200
      %2211 = vst [vmem:[%s366] sm:$0xff] %v2203
      %2212 = vst [vmem:[%s366 + $0x8] sm:$0xff] %v2204
      %2213 = vst [vmem:[%s366 + $0x10] sm:$0xff] %v2205
      %2214 = vst [vmem:[%s366 + $0x18] sm:$0xff] %v2206
      %2215 = vst [vmem:[%s366 + $0x20] sm:$0xff] %v2207
      %2216 = vst [vmem:[%s366 + $0x28] sm:$0xff] %v2208
      %2217 = vst [vmem:[%s366 + $0x30] sm:$0xff] %v2209
      %2218 = vst [vmem:[%s366 + $0x38] sm:$0xff] %v2210
      %p2219 = scmp.lt.s32.totalorder %s22, 1
      %s2220 = scalar_select %p2219, %s22, 1
      %p2221 = scmp.lt.s32.totalorder %s23, 0
      %s2222 = scalar_select %p2221, %s23, 0
      %s2223 = smul.addr %s2220, 8
      %s2224 = sadd.s32 %s2222, %s2223
      %s2225 = smul.addr %s2224, 8
      %s2226 = scalar_lea.vmem %s7, %s2225
      // Predicated region
      $region53: #{wide_basic_forward.3} parent=47 // pred_check
        %p2227 = pneg %p222
      $region54: #{wide_basic_forward.3} parent=47 // pred_check_branch
        %2229 = sbr.rel (%p2227) target = $region56
      $region55: #{wide_basic_forward.3} parent=47 // pred_region
        _
      $region56: #{wide_basic_forward.3} parent=47 // pred_fallthru
        _
    $region48: #{wide_basic_forward.3} parent=5 // pred_fallthru
      _
    %p2230 = scmp.le.s32.totalorder 2, %s13
    // Predicated region
    $region57: #{wide_basic_forward.3} parent=5 // pred_check
      %p2231 = pneg %p2230
    $region58: #{wide_basic_forward.3} parent=5 // pred_check_branch
      %2233 = sbr.rel (%p2231) target = $region60
    $region59: #{wide_basic_forward.3} parent=5 // pred_region
      %s2234 = ssub.s32 %s13, 2
      // Predicated region
      $region61: #{wide_basic_forward.3} parent=59 // pred_check
        %p2235 = pneg %p228
      $region62: #{wide_basic_forward.3} parent=59 // pred_check_branch
        %2237 = sbr.rel (%p2235) target = $region64
      $region63: #{wide_basic_forward.3} parent=59 // pred_region
        %p2238 = scmp.lt.s32.totalorder %s24, 1
        %s2239 = scalar_select %p2238, %s24, 1
        %p2240 = scmp.lt.s32.totalorder %s25, 0
        %s2241 = scalar_select %p2240, %s25, 0
        %s2242 = smul.addr %s2239, 8
        %s2243 = sadd.s32 %s2241, %s2242
        %s2244 = smul.addr %s2243, 8
        %s2245 = scalar_lea.vmem %s7, %s2244
      $region64: #{wide_basic_forward.3} parent=59 // pred_fallthru
        _
    $region60: #{wide_basic_forward.3} parent=5 // pred_fallthru
      _
  $region6: #{wide_basic_forward.3} parent=0 // loop_footer
    %s17 = sadd.s32 1, %s13
  $region7: #{wide_basic_forward.3} parent=0 // loop_footer_branch
    %12 = sbr.rel target = $region3
  $region8: #{wide_basic_forward.3} parent=0 // loop_exit
    _

// kernel: wide_basic_forward.2
$region0: #{wide_basic_forward.2}
  #allocation0 [shape = 'u32[]', space=smem, size = 0x4, offset = 0x4, fixed_abs, tag = 'smem constant byte address 0x4 - core index']
  #allocation1 [shape = 'u32[144,128]{1,0:T(1,128)}', space=vmem, size = 0x12000, scoped, tag = 'internal scratch']
  #allocation2 [shape = 'f32[18,18,128]{2,1,0:T(8,128)}', space=vmem, size = 0x36000, scoped, tag = 'scratch operand']
  %s0 = inlined_call_operand.vmem [shape: f32[2,16,16,128], index: 0, kind: input, shape index: {}]
  %s1 = inlined_call_operand.vmem [shape: bf16[3,384,128], index: 1, kind: input, shape index: {}]
  %s2 = inlined_call_operand.vmem [shape: f32[1,128], index: 2, kind: input, shape index: {}]
  %s3 = inlined_call_operand.vmem [shape: f32[1,128], index: 3, kind: input, shape index: {}]
  %s4 = inlined_call_operand.vmem [shape: f32[1,128], index: 4, kind: input, shape index: {}]
  %s5 = inlined_call_operand.vmem [shape: bf16[2,256,128], index: 5, kind: output, shape index: {}]
  %s6 = sld [smem:[#allocation0]]
  $region57: #{wide_basic_forward.2} parent=0
    _
  %s8 = ssub.s32 1, %s6
  %s9 = scalar_select 0, %s8, %s6
  loop: start=0, step=1, limit=4
  $region2: #{wide_basic_forward.2} parent=0 // loop_pre_header
    _
  $region3: #{wide_basic_forward.2} parent=0 // loop_header
    %s11 = sphi 0, %s15
    %p12 = scmp.ge.s32.totalorder %s11, 4
    %s18 = sphi 0, %s30
    %s19 = sphi 0, %s26
    %s20 = sphi 0, %s18
    %s21 = sphi 0, %s19
    %s22 = sphi 0, %s20
    %s23 = sphi 0, %s21
    %s33 = sphi 0, %s35
    %s36 = sphi 0, %s33
    %s37 = sphi 0, %s36
    %s53 = sphi 0, %s37
    %s59 = sphi 0, %s61
    %s62 = sphi 0, %s59
    %s63 = sphi 0, %s62
    %s79 = sphi 0, %s63
    %s83 = sphi 0, %s83
    %s85 = sphi 0, %s83
    %s86 = sphi 0, %s85
    %s100 = sphi 0, %s86
    %s104 = sphi 0, %s104
    %s106 = sphi 0, %s104
    %s107 = sphi 0, %s106
    %s121 = sphi 0, %s107
    %s127 = sphi 0, %s129
    %s130 = sphi 0, %s127
    %s131 = sphi 0, %s130
    %s147 = sphi 0, %s131
    %s155 = sphi 0, %s157
    %s158 = sphi 0, %s155
    %s159 = sphi 0, %s158
    %s175 = sphi 0, %s159
  $region4: #{wide_basic_forward.2} parent=0 // loop_header_branch
    %14 = sbr.rel (%p12) target = $region8
  $region5: #{wide_basic_forward.2} parent=0 // loop_body
    %s16 = ssub.s32 %s11, 1
    %s17 = ssub.s32 %s11, 2
    %s24 = sadd.s32 1, %s19
    %p25 = scmp.ge.s32.totalorder %s24, 1
    %s26 = scalar_select %p25, 0, %s24
    %s27 = sadd.s32 1, %s18
    %s28 = scalar_select %p25, %s27, %s18
    %p29 = scmp.ge.s32.totalorder %s28, 2
    %s30 = scalar_select %p29, 0, %s28
    %s31 = ssub.s32 %s18, %s30
    %p32 = scmp.eq.s32.totalorder %s31, 0
    %s34 = sadd.s32 %s33, 1
    %s35 = scalar_select %p32, %s33, %s34
    %p38 = pneg %p32
    %p39 = scmp.eq.s32.totalorder %s11, 1
    %p40 = por %p38, %p39
    %p41 = scmp.ne.s32.totalorder %s33, %s36
    %p42 = scmp.eq.s32.totalorder %s11, 0
    %p43 = por %p41, %p42
    %p44 = scmp.ne.s32.totalorder %s33, %s36
    %p45 = scmp.eq.s32.totalorder %s16, 1
    %p46 = por %p44, %p45
    %p47 = scmp.ne.s32.totalorder %s36, %s37
    %p48 = scmp.eq.s32.totalorder %s16, 0
    %p49 = por %p47, %p48
    %p50 = scmp.ne.s32.totalorder %s36, %s37
    %p51 = scmp.eq.s32.totalorder %s17, 1
    %p52 = por %p50, %p51
    %p54 = scmp.ne.s32.totalorder %s37, %s53
    %p55 = scmp.eq.s32.totalorder %s17, 0
    %p56 = por %p54, %p55
    %s57 = ssub.s32 %s19, %s26
    %p58 = scmp.eq.s32.totalorder %s57, 0
    %s60 = sadd.s32 %s59, 1
    %s61 = scalar_select %p58, %s59, %s60
    %p64 = pneg %p58
    %p65 = scmp.eq.s32.totalorder %s11, 1
    %p66 = por %p64, %p65
    %p67 = scmp.ne.s32.totalorder %s59, %s62
    %p68 = scmp.eq.s32.totalorder %s11, 0
    %p69 = por %p67, %p68
    %p70 = scmp.ne.s32.totalorder %s59, %s62
    %p71 = scmp.eq.s32.totalorder %s16, 1
    %p72 = por %p70, %p71
    %p73 = scmp.ne.s32.totalorder %s62, %s63
    %p74 = scmp.eq.s32.totalorder %s16, 0
    %p75 = por %p73, %p74
    %p76 = scmp.ne.s32.totalorder %s62, %s63
    %p77 = scmp.eq.s32.totalorder %s17, 1
    %p78 = por %p76, %p77
    %p80 = scmp.ne.s32.totalorder %s63, %s79
    %p81 = scmp.eq.s32.totalorder %s17, 0
    %p82 = por %p80, %p81
    %s84 = sadd.s32 %s83, 1
    %p87 = scmp.eq.s32.totalorder %s11, 1
    %p88 = scmp.ne.s32.totalorder %s83, %s85
    %p89 = scmp.eq.s32.totalorder %s11, 0
    %p90 = por %p88, %p89
    %p91 = scmp.ne.s32.totalorder %s83, %s85
    %p92 = scmp.eq.s32.totalorder %s16, 1
    %p93 = por %p91, %p92
    %p94 = scmp.ne.s32.totalorder %s85, %s86
    %p95 = scmp.eq.s32.totalorder %s16, 0
    %p96 = por %p94, %p95
    %p97 = scmp.ne.s32.totalorder %s85, %s86
    %p98 = scmp.eq.s32.totalorder %s17, 1
    %p99 = por %p97, %p98
    %p101 = scmp.ne.s32.totalorder %s86, %s100
    %p102 = scmp.eq.s32.totalorder %s17, 0
    %p103 = por %p101, %p102
    %s105 = sadd.s32 %s104, 1
    %p108 = scmp.eq.s32.totalorder %s11, 1
    %p109 = scmp.ne.s32.totalorder %s104, %s106
    %p110 = scmp.eq.s32.totalorder %s11, 0
    %p111 = por %p109, %p110
    %p112 = scmp.ne.s32.totalorder %s104, %s106
    %p113 = scmp.eq.s32.totalorder %s16, 1
    %p114 = por %p112, %p113
    %p115 = scmp.ne.s32.totalorder %s106, %s107
    %p116 = scmp.eq.s32.totalorder %s16, 0
    %p117 = por %p115, %p116
    %p118 = scmp.ne.s32.totalorder %s106, %s107
    %p119 = scmp.eq.s32.totalorder %s17, 1
    %p120 = por %p118, %p119
    %p122 = scmp.ne.s32.totalorder %s107, %s121
    %p123 = scmp.eq.s32.totalorder %s17, 0
    %p124 = por %p122, %p123
    %s125 = ssub.s32 %s19, %s26
    %p126 = scmp.eq.s32.totalorder %s125, 0
    %s128 = sadd.s32 %s127, 1
    %s129 = scalar_select %p126, %s127, %s128
    %p132 = pneg %p126
    %p133 = scmp.eq.s32.totalorder %s11, 1
    %p134 = por %p132, %p133
    %p135 = scmp.ne.s32.totalorder %s127, %s130
    %p136 = scmp.eq.s32.totalorder %s11, 0
    %p137 = por %p135, %p136
    %p138 = scmp.ne.s32.totalorder %s127, %s130
    %p139 = scmp.eq.s32.totalorder %s16, 1
    %p140 = por %p138, %p139
    %p141 = scmp.ne.s32.totalorder %s130, %s131
    %p142 = scmp.eq.s32.totalorder %s16, 0
    %p143 = por %p141, %p142
    %p144 = scmp.ne.s32.totalorder %s130, %s131
    %p145 = scmp.eq.s32.totalorder %s17, 1
    %p146 = por %p144, %p145
    %p148 = scmp.ne.s32.totalorder %s131, %s147
    %p149 = scmp.eq.s32.totalorder %s17, 0
    %p150 = por %p148, %p149
    %s151 = ssub.s32 %s18, %s30
    %s152 = ssub.s32 %s19, %s26
    %s153 = sor.u32 %s151, %s152
    %p154 = scmp.eq.s32.totalorder %s153, 0
    %s156 = sadd.s32 %s155, 1
    %s157 = scalar_select %p154, %s155, %s156
    %p160 = pneg %p154
    %p161 = scmp.eq.s32.totalorder %s11, 1
    %p162 = por %p160, %p161
    %p163 = scmp.ne.s32.totalorder %s155, %s158
    %p164 = scmp.eq.s32.totalorder %s11, 0
    %p165 = por %p163, %p164
    %p166 = scmp.ne.s32.totalorder %s155, %s158
    %p167 = scmp.eq.s32.totalorder %s16, 1
    %p168 = por %p166, %p167
    %p169 = scmp.ne.s32.totalorder %s158, %s159
    %p170 = scmp.eq.s32.totalorder %s16, 0
    %p171 = por %p169, %p170
    %p172 = scmp.ne.s32.totalorder %s158, %s159
    %p173 = scmp.eq.s32.totalorder %s17, 1
    %p174 = por %p172, %p173
    %p176 = scmp.ne.s32.totalorder %s159, %s175
    %p177 = scmp.eq.s32.totalorder %s17, 0
    %p178 = por %p176, %p177
    %p179 = scmp.le.s32.totalorder 1, %s11
    %p180 = scmp.lt.s32.totalorder %s11, 3
    %p181 = pnand %p179, %p180
    %p182 = pneg %p181
    // Predicated region
    $region9: #{wide_basic_forward.2} parent=5 // pred_check
      _
    $region10: #{wide_basic_forward.2} parent=5 // pred_check_branch
      %184 = sbr.rel (%p181) target = $region12
    $region11: #{wide_basic_forward.2} parent=5 // pred_region
      %s185 = ssub.s32 %s11, 1
      // Predicated region
      $region13: #{wide_basic_forward.2} parent=11 // pred_check
        %p186 = pneg %p75
      $region14: #{wide_basic_forward.2} parent=11 // pred_check_branch
        %188 = sbr.rel (%p186) target = $region16
      $region15: #{wide_basic_forward.2} parent=11 // pred_region
        %p189 = scmp.lt.s32.totalorder %s21, 0
        %s190 = scalar_select %p189, %s21, 0
        %s191 = smul.addr %s190, 4
        %s192 = scalar_lea.vmem %s1, %s191
      $region16: #{wide_basic_forward.2} parent=11 // pred_fallthru
        _
      // Predicated region
      $region17: #{wide_basic_forward.2} parent=11 // pred_check
        %p193 = pneg %p96
      $region18: #{wide_basic_forward.2} parent=11 // pred_check_branch
        %195 = sbr.rel (%p193) target = $region20
      $region19: #{wide_basic_forward.2} parent=11 // pred_region
        _
      $region20: #{wide_basic_forward.2} parent=11 // pred_fallthru
        _
      // Predicated region
      $region21: #{wide_basic_forward.2} parent=11 // pred_check
        %p196 = pneg %p117
      $region22: #{wide_basic_forward.2} parent=11 // pred_check_branch
        %198 = sbr.rel (%p196) target = $region24
      $region23: #{wide_basic_forward.2} parent=11 // pred_region
        _
      $region24: #{wide_basic_forward.2} parent=11 // pred_fallthru
        _
      // Predicated region
      $region25: #{wide_basic_forward.2} parent=11 // pred_check
        %p199 = pneg %p143
      $region26: #{wide_basic_forward.2} parent=11 // pred_check_branch
        %201 = sbr.rel (%p199) target = $region28
      $region27: #{wide_basic_forward.2} parent=11 // pred_region
        %p202 = scmp.lt.s32.totalorder %s21, 0
        %s203 = scalar_select %p202, %s21, 0
        %s204 = scalar_lea.vmem %s4, %s203
      $region28: #{wide_basic_forward.2} parent=11 // pred_fallthru
        _
    $region12: #{wide_basic_forward.2} parent=5 // pred_fallthru
      _
    %p205 = scmp.lt.s32.totalorder %s11, 2
    // Predicated region
    $region29: #{wide_basic_forward.2} parent=5 // pred_check
      %p206 = pneg %p205
    $region30: #{wide_basic_forward.2} parent=5 // pred_check_branch
      %208 = sbr.rel (%p206) target = $region32
    $region31: #{wide_basic_forward.2} parent=5 // pred_region
      // Predicated region
      $region33: #{wide_basic_forward.2} parent=31 // pred_check
        %p209 = pneg %p43
      $region34: #{wide_basic_forward.2} parent=31 // pred_check_branch
        %211 = sbr.rel (%p209) target = $region36
      $region35: #{wide_basic_forward.2} parent=31 // pred_region
        %p212 = scmp.lt.s32.totalorder %s18, 1
        %s213 = scalar_select %p212, %s18, 1
        %s214 = smul.addr %s213, 32
        %s215 = smul.addr %s214, 8
        %s216 = scalar_lea.vmem %s0, %s215
      $region36: #{wide_basic_forward.2} parent=31 // pred_fallthru
        _
    $region32: #{wide_basic_forward.2} parent=5 // pred_fallthru
      _
    %p217 = scmp.le.s32.totalorder 1, %s11
    %p218 = scmp.lt.s32.totalorder %s11, 3
    %p219 = pnand %p217, %p218
    %p220 = pneg %p219
    // Predicated region
    $region37: #{wide_basic_forward.2} parent=5 // pred_check
      _
    $region38: #{wide_basic_forward.2} parent=5 // pred_check_branch
      %222 = sbr.rel (%p219) target = $region40
    $region39: #{wide_basic_forward.2} parent=5 // pred_region
      %s223 = ssub.s32 %s11, 1
      %p224 = scmp.lt.s32.totalorder %s20, 1
      %s225 = scalar_select %p224, %s20, 1
      %s226 = smul.addr %s225, 32
      %s227 = smul.addr %s226, 8
      %s228 = scalar_lea.vmem %s0, %s227
      %p229 = pneg %p49
      %p230 = pneg %p46
      %p231 = scmp.lt.s32.totalorder %s21, 0
      %s232 = scalar_select %p231, %s21, 0
      %s233 = smul.addr %s232, 4
      %s234 = scalar_lea.vmem %s1, %s233
      %p235 = pneg %p75
      %p236 = pneg %p72
      %p237 = pneg %p96
      %p238 = pneg %p93
      %p239 = pneg %p117
      %p240 = pneg %p114
      %p241 = scmp.lt.s32.totalorder %s21, 0
      %s242 = scalar_select %p241, %s21, 0
      %s243 = scalar_lea.vmem %s4, %s242
      %p244 = pneg %p143
      %p245 = pneg %p140
      %p246 = pneg %p171
      %p247 = pneg %p168
      %p248 = scmp.lt.s32.totalorder %s20, 1
      %s249 = scalar_select %p248, %s20, 1
      %p250 = scmp.lt.s32.totalorder %s21, 0
      %s251 = scalar_select %p250, %s21, 0
      %s252 = smul.addr %s249, 32
      %s253 = sadd.s32 %s251, %s252
      %s254 = smul.addr %s253, 4
      %s255 = scalar_lea.vmem %s5, %s254
      %p256 = scmp.lt.s32.totalorder %s20, 1
      %s257 = scalar_select %p256, %s20, 1
      %s258 = smul.addr %s257, 32
      %s259 = smul.addr %s258, 8
      %s260 = scalar_lea.vmem %s0, %s259
      %p261 = scmp.lt.s32.totalorder %s21, 0
      %s262 = scalar_select %p261, %s21, 0
      %s263 = smul.addr %s262, 4
      %s264 = scalar_lea.vmem %s1, %s263
      %p265 = scmp.lt.s32.totalorder %s21, 0
      %s266 = scalar_select %p265, %s21, 0
      %s267 = scalar_lea.vmem %s4, %s266
      %p268 = scmp.lt.s32.totalorder %s20, 1
      %s269 = scalar_select %p268, %s20, 1
      %p270 = scmp.lt.s32.totalorder %s21, 0
      %s271 = scalar_select %p270, %s21, 0
      %s272 = smul.addr %s269, 32
      %s273 = sadd.s32 %s271, %s272
      %s274 = smul.addr %s273, 4
      %s275 = scalar_lea.vmem %s5, %s274
      %p277 = scmp.eq.s32.totalorder %s21, 0
      // Predicated region
      $region41: #{wide_basic_forward.2} parent=39 // pred_check
        %p278 = pneg %p277
      $region42: #{wide_basic_forward.2} parent=39 // pred_check_branch
        %280 = sbr.rel (%p278) target = $region44
      $region43: #{wide_basic_forward.2} parent=39 // pred_region
        %281 = vst [vmem:[#allocation2] sm:$0xff] 0.0
        %282 = vst [vmem:[#allocation2 + $0x8] sm:$0xff] 0.0
        %283 = vst [vmem:[#allocation2 + $0x10] sm:$0x3] 0.0
        %284 = vst [vmem:[#allocation2 + $0x18] sm:$0xff] 0.0
        %285 = vst [vmem:[#allocation2 + $0x20] sm:$0xff] 0.0
        %286 = vst [vmem:[#allocation2 + $0x28] sm:$0x3] 0.0
        %287 = vst [vmem:[#allocation2 + $0x30] sm:$0xff] 0.0
        %288 = vst [vmem:[#allocation2 + $0x38] sm:$0xff] 0.0
        %289 = vst [vmem:[#allocation2 + $0x40] sm:$0x3] 0.0
        %290 = vst [vmem:[#allocation2 + $0x48] sm:$0xff] 0.0
        %291 = vst [vmem:[#allocation2 + $0x50] sm:$0xff] 0.0
        %292 = vst [vmem:[#allocation2 + $0x58] sm:$0x3] 0.0
        %293 = vst [vmem:[#allocation2 + $0x60] sm:$0xff] 0.0
        %294 = vst [vmem:[#allocation2 + $0x68] sm:$0xff] 0.0
        %295 = vst [vmem:[#allocation2 + $0x70] sm:$0x3] 0.0
        %296 = vst [vmem:[#allocation2 + $0x78] sm:$0xff] 0.0
        %297 = vst [vmem:[#allocation2 + $0x80] sm:$0xff] 0.0
        %298 = vst [vmem:[#allocation2 + $0x88] sm:$0x3] 0.0
        %299 = vst [vmem:[#allocation2 + $0x90] sm:$0xff] 0.0
        %300 = vst [vmem:[#allocation2 + $0x98] sm:$0xff] 0.0
        %301 = vst [vmem:[#allocation2 + $0xa0] sm:$0x3] 0.0
        %302 = vst [vmem:[#allocation2 + $0xa8] sm:$0xff] 0.0
        %303 = vst [vmem:[#allocation2 + $0xb0] sm:$0xff] 0.0
        %304 = vst [vmem:[#allocation2 + $0xb8] sm:$0x3] 0.0
        %305 = vst [vmem:[#allocation2 + $0xc0] sm:$0xff] 0.0
        %306 = vst [vmem:[#allocation2 + $0xc8] sm:$0xff] 0.0
        %307 = vst [vmem:[#allocation2 + $0xd0] sm:$0x3] 0.0
        %308 = vst [vmem:[#allocation2 + $0xd8] sm:$0xff] 0.0
        %309 = vst [vmem:[#allocation2 + $0xe0] sm:$0xff] 0.0
        %310 = vst [vmem:[#allocation2 + $0xe8] sm:$0x3] 0.0
        %311 = vst [vmem:[#allocation2 + $0xf0] sm:$0xff] 0.0
        %312 = vst [vmem:[#allocation2 + $0xf8] sm:$0xff] 0.0
        %313 = vst [vmem:[#allocation2 + $0x100] sm:$0x3] 0.0
        %314 = vst [vmem:[#allocation2 + $0x108] sm:$0xff] 0.0
        %315 = vst [vmem:[#allocation2 + $0x110] sm:$0xff] 0.0
        %316 = vst [vmem:[#allocation2 + $0x118] sm:$0x3] 0.0
        %317 = vst [vmem:[#allocation2 + $0x120] sm:$0xff] 0.0
        %318 = vst [vmem:[#allocation2 + $0x128] sm:$0xff] 0.0
        %319 = vst [vmem:[#allocation2 + $0x130] sm:$0x3] 0.0
        %320 = vst [vmem:[#allocation2 + $0x138] sm:$0xff] 0.0
        %321 = vst [vmem:[#allocation2 + $0x140] sm:$0xff] 0.0
        %322 = vst [vmem:[#allocation2 + $0x148] sm:$0x3] 0.0
        %323 = vst [vmem:[#allocation2 + $0x150] sm:$0xff] 0.0
        %324 = vst [vmem:[#allocation2 + $0x158] sm:$0xff] 0.0
        %325 = vst [vmem:[#allocation2 + $0x160] sm:$0x3] 0.0
        %326 = vst [vmem:[#allocation2 + $0x168] sm:$0xff] 0.0
        %327 = vst [vmem:[#allocation2 + $0x170] sm:$0xff] 0.0
        %328 = vst [vmem:[#allocation2 + $0x178] sm:$0x3] 0.0
        %329 = vst [vmem:[#allocation2 + $0x180] sm:$0xff] 0.0
        %330 = vst [vmem:[#allocation2 + $0x188] sm:$0xff] 0.0
        %331 = vst [vmem:[#allocation2 + $0x190] sm:$0x3] 0.0
        %332 = vst [vmem:[#allocation2 + $0x198] sm:$0xff] 0.0
        %333 = vst [vmem:[#allocation2 + $0x1a0] sm:$0xff] 0.0
        %334 = vst [vmem:[#allocation2 + $0x1a8] sm:$0x3] 0.0
        %v335 = vld [vmem:[%s260] sm:$0xff]
        %v336 = vld [vmem:[%s260 + $0x8] sm:$0xff]
        %v337 = vld [vmem:[%s260 + $0x10] sm:$0xff]
        %v338 = vld [vmem:[%s260 + $0x18] sm:$0xff]
        %v339 = vld [vmem:[%s260 + $0x20] sm:$0xff]
        %v340 = vld [vmem:[%s260 + $0x28] sm:$0xff]
        %v341 = vld [vmem:[%s260 + $0x30] sm:$0xff]
        %v342 = vld [vmem:[%s260 + $0x38] sm:$0xff]
        %v343 = vld [vmem:[%s260 + $0x40] sm:$0xff]
        %v344 = vld [vmem:[%s260 + $0x48] sm:$0xff]
        %v345 = vld [vmem:[%s260 + $0x50] sm:$0xff]
        %v346 = vld [vmem:[%s260 + $0x58] sm:$0xff]
        %v347 = vld [vmem:[%s260 + $0x60] sm:$0xff]
        %v348 = vld [vmem:[%s260 + $0x68] sm:$0xff]
        %v349 = vld [vmem:[%s260 + $0x70] sm:$0xff]
        %v350 = vld [vmem:[%s260 + $0x78] sm:$0xff]
        %v351 = vld [vmem:[%s260 + $0x80] sm:$0xff]
        %v352 = vld [vmem:[%s260 + $0x88] sm:$0xff]
        %v353 = vld [vmem:[%s260 + $0x90] sm:$0xff]
        %v354 = vld [vmem:[%s260 + $0x98] sm:$0xff]
        %v355 = vld [vmem:[%s260 + $0xa0] sm:$0xff]
        %v356 = vld [vmem:[%s260 + $0xa8] sm:$0xff]
        %v357 = vld [vmem:[%s260 + $0xb0] sm:$0xff]
        %v358 = vld [vmem:[%s260 + $0xb8] sm:$0xff]
        %v359 = vld [vmem:[%s260 + $0xc0] sm:$0xff]
        %v360 = vld [vmem:[%s260 + $0xc8] sm:$0xff]
        %v361 = vld [vmem:[%s260 + $0xd0] sm:$0xff]
        %v362 = vld [vmem:[%s260 + $0xd8] sm:$0xff]
        %v363 = vld [vmem:[%s260 + $0xe0] sm:$0xff]
        %v364 = vld [vmem:[%s260 + $0xe8] sm:$0xff]
        %v365 = vld [vmem:[%s260 + $0xf0] sm:$0xff]
        %v366 = vld [vmem:[%s260 + $0xf8] sm:$0xff]
        %v367 = vld [vmem:[%s2] sm:$0x1]
        %v369 = vlaneseq
        %v370 = vshrl.u32 %v369, 7
        %v371 = vsub.s32 0, %v370
        %v372 = vrot.slane %v367, %v371
        %v374 = vmul.f32 %v335, %v372
        %v375 = vmul.f32 %v336, %v372
        %v376 = vmul.f32 %v337, %v372
        %v377 = vmul.f32 %v338, %v372
        %v378 = vmul.f32 %v339, %v372
        %v379 = vmul.f32 %v340, %v372
        %v380 = vmul.f32 %v341, %v372
        %v381 = vmul.f32 %v342, %v372
        %v382 = vmul.f32 %v343, %v372
        %v383 = vmul.f32 %v344, %v372
        %v384 = vmul.f32 %v345, %v372
        %v385 = vmul.f32 %v346, %v372
        %v386 = vmul.f32 %v347, %v372
        %v387 = vmul.f32 %v348, %v372
        %v388 = vmul.f32 %v349, %v372
        %v389 = vmul.f32 %v350, %v372
        %v390 = vmul.f32 %v351, %v372
        %v391 = vmul.f32 %v352, %v372
        %v392 = vmul.f32 %v353, %v372
        %v393 = vmul.f32 %v354, %v372
        %v394 = vmul.f32 %v355, %v372
        %v395 = vmul.f32 %v356, %v372
        %v396 = vmul.f32 %v357, %v372
        %v397 = vmul.f32 %v358, %v372
        %v398 = vmul.f32 %v359, %v372
        %v399 = vmul.f32 %v360, %v372
        %v400 = vmul.f32 %v361, %v372
        %v401 = vmul.f32 %v362, %v372
        %v402 = vmul.f32 %v363, %v372
        %v403 = vmul.f32 %v364, %v372
        %v404 = vmul.f32 %v365, %v372
        %v405 = vmul.f32 %v366, %v372
        %v406 = vld [vmem:[%s3] sm:$0x1]
        %v408 = vlaneseq
        %v409 = vshrl.u32 %v408, 7
        %v410 = vsub.s32 0, %v409
        %v411 = vrot.slane %v406, %v410
        %v413 = vadd.f32 %v374, %v411
        %v414 = vadd.f32 %v375, %v411
        %v415 = vadd.f32 %v376, %v411
        %v416 = vadd.f32 %v377, %v411
        %v417 = vadd.f32 %v378, %v411
        %v418 = vadd.f32 %v379, %v411
        %v419 = vadd.f32 %v380, %v411
        %v420 = vadd.f32 %v381, %v411
        %v421 = vadd.f32 %v382, %v411
        %v422 = vadd.f32 %v383, %v411
        %v423 = vadd.f32 %v384, %v411
        %v424 = vadd.f32 %v385, %v411
        %v425 = vadd.f32 %v386, %v411
        %v426 = vadd.f32 %v387, %v411
        %v427 = vadd.f32 %v388, %v411
        %v428 = vadd.f32 %v389, %v411
        %v429 = vadd.f32 %v390, %v411
        %v430 = vadd.f32 %v391, %v411
        %v431 = vadd.f32 %v392, %v411
        %v432 = vadd.f32 %v393, %v411
        %v433 = vadd.f32 %v394, %v411
        %v434 = vadd.f32 %v395, %v411
        %v435 = vadd.f32 %v396, %v411
        %v436 = vadd.f32 %v397, %v411
        %v437 = vadd.f32 %v398, %v411
        %v438 = vadd.f32 %v399, %v411
        %v439 = vadd.f32 %v400, %v411
        %v440 = vadd.f32 %v401, %v411
        %v441 = vadd.f32 %v402, %v411
        %v442 = vadd.f32 %v403, %v411
        %v443 = vadd.f32 %v404, %v411
        %v444 = vadd.f32 %v405, %v411
        %v445 = vmax.f32 %v413, 0.0
        %v446 = vmax.f32 %v414, 0.0
        %v447 = vmax.f32 %v415, 0.0
        %v448 = vmax.f32 %v416, 0.0
        %v449 = vmax.f32 %v417, 0.0
        %v450 = vmax.f32 %v418, 0.0
        %v451 = vmax.f32 %v419, 0.0
        %v452 = vmax.f32 %v420, 0.0
        %v453 = vmax.f32 %v421, 0.0
        %v454 = vmax.f32 %v422, 0.0
        %v455 = vmax.f32 %v423, 0.0
        %v456 = vmax.f32 %v424, 0.0
        %v457 = vmax.f32 %v425, 0.0
        %v458 = vmax.f32 %v426, 0.0
        %v459 = vmax.f32 %v427, 0.0
        %v460 = vmax.f32 %v428, 0.0
        %v461 = vmax.f32 %v429, 0.0
        %v462 = vmax.f32 %v430, 0.0
        %v463 = vmax.f32 %v431, 0.0
        %v464 = vmax.f32 %v432, 0.0
        %v465 = vmax.f32 %v433, 0.0
        %v466 = vmax.f32 %v434, 0.0
        %v467 = vmax.f32 %v435, 0.0
        %v468 = vmax.f32 %v436, 0.0
        %v469 = vmax.f32 %v437, 0.0
        %v470 = vmax.f32 %v438, 0.0
        %v471 = vmax.f32 %v439, 0.0
        %v472 = vmax.f32 %v440, 0.0
        %v473 = vmax.f32 %v441, 0.0
        %v474 = vmax.f32 %v442, 0.0
        %v475 = vmax.f32 %v443, 0.0
        %v476 = vmax.f32 %v444, 0.0
        %s477 = scalar_lea.vmem [#allocation2], 24
        %478 = vst [vmem:[%s477 + $0x1] sm:$0xff] %v445
        %479 = vst [vmem:[%s477 + $0x9] sm:$0xff] %v446
        %480 = vst [vmem:[%s477 + $0x19] sm:$0xff] %v447
        %481 = vst [vmem:[%s477 + $0x21] sm:$0xff] %v448
        %482 = vst [vmem:[%s477 + $0x31] sm:$0xff] %v449
        %483 = vst [vmem:[%s477 + $0x39] sm:$0xff] %v450
        %484 = vst [vmem:[%s477 + $0x49] sm:$0xff] %v451
        %485 = vst [vmem:[%s477 + $0x51] sm:$0xff] %v452
        %486 = vst [vmem:[%s477 + $0x61] sm:$0xff] %v453
        %487 = vst [vmem:[%s477 + $0x69] sm:$0xff] %v454
        %488 = vst [vmem:[%s477 + $0x79] sm:$0xff] %v455
        %489 = vst [vmem:[%s477 + $0x81] sm:$0xff] %v456
        %490 = vst [vmem:[%s477 + $0x91] sm:$0xff] %v457
        %491 = vst [vmem:[%s477 + $0x99] sm:$0xff] %v458
        %492 = vst [vmem:[%s477 + $0xa9] sm:$0xff] %v459
        %493 = vst [vmem:[%s477 + $0xb1] sm:$0xff] %v460
        %494 = vst [vmem:[%s477 + $0xc1] sm:$0xff] %v461
        %495 = vst [vmem:[%s477 + $0xc9] sm:$0xff] %v462
        %496 = vst [vmem:[%s477 + $0xd9] sm:$0xff] %v463
        %497 = vst [vmem:[%s477 + $0xe1] sm:$0xff] %v464
        %498 = vst [vmem:[%s477 + $0xf1] sm:$0xff] %v465
        %499 = vst [vmem:[%s477 + $0xf9] sm:$0xff] %v466
        %500 = vst [vmem:[%s477 + $0x109] sm:$0xff] %v467
        %501 = vst [vmem:[%s477 + $0x111] sm:$0xff] %v468
        %502 = vst [vmem:[%s477 + $0x121] sm:$0xff] %v469
        %503 = vst [vmem:[%s477 + $0x129] sm:$0xff] %v470
        %504 = vst [vmem:[%s477 + $0x139] sm:$0xff] %v471
        %505 = vst [vmem:[%s477 + $0x141] sm:$0xff] %v472
        %506 = vst [vmem:[%s477 + $0x151] sm:$0xff] %v473
        %507 = vst [vmem:[%s477 + $0x159] sm:$0xff] %v474
        %508 = vst [vmem:[%s477 + $0x169] sm:$0xff] %v475
        %509 = vst [vmem:[%s477 + $0x171] sm:$0xff] %v476
      $region44: #{wide_basic_forward.2} parent=39 // pred_fallthru
        _
      %v510 = vld [vmem:[#allocation2] sm:$0xff]
      %v511 = vld [vmem:[#allocation2 + $0x8] sm:$0xff]
      %v512 = vld [vmem:[#allocation2 + $0x18] sm:$0xff]
      %v513 = vld [vmem:[#allocation2 + $0x20] sm:$0xff]
      %v514 = vld [vmem:[#allocation2 + $0x30] sm:$0xff]
      %v515 = vld [vmem:[#allocation2 + $0x38] sm:$0xff]
      %v516 = vld [vmem:[#allocation2 + $0x48] sm:$0xff]
      %v517 = vld [vmem:[#allocation2 + $0x50] sm:$0xff]
      %v518 = vld [vmem:[#allocation2 + $0x60] sm:$0xff]
      %v519 = vld [vmem:[#allocation2 + $0x68] sm:$0xff]
      %v520 = vld [vmem:[#allocation2 + $0x78] sm:$0xff]
      %v521 = vld [vmem:[#allocation2 + $0x80] sm:$0xff]
      %v522 = vld [vmem:[#allocation2 + $0x90] sm:$0xff]
      %v523 = vld [vmem:[#allocation2 + $0x98] sm:$0xff]
      %v524 = vld [vmem:[#allocation2 + $0xa8] sm:$0xff]
      %v525 = vld [vmem:[#allocation2 + $0xb0] sm:$0xff]
      %v526 = vld [vmem:[#allocation2 + $0xc0] sm:$0xff]
      %v527 = vld [vmem:[#allocation2 + $0xc8] sm:$0xff]
      %v528 = vld [vmem:[#allocation2 + $0xd8] sm:$0xff]
      %v529 = vld [vmem:[#allocation2 + $0xe0] sm:$0xff]
      %v530 = vld [vmem:[#allocation2 + $0xf0] sm:$0xff]
      %v531 = vld [vmem:[#allocation2 + $0xf8] sm:$0xff]
      %v532 = vld [vmem:[#allocation2 + $0x108] sm:$0xff]
      %v533 = vld [vmem:[#allocation2 + $0x110] sm:$0xff]
      %v534 = vld [vmem:[#allocation2 + $0x120] sm:$0xff]
      %v535 = vld [vmem:[#allocation2 + $0x128] sm:$0xff]
      %v536 = vld [vmem:[#allocation2 + $0x138] sm:$0xff]
      %v537 = vld [vmem:[#allocation2 + $0x140] sm:$0xff]
      %v538 = vld [vmem:[#allocation2 + $0x150] sm:$0xff]
      %v539 = vld [vmem:[#allocation2 + $0x158] sm:$0xff]
      %v540 = vld [vmem:[#allocation2 + $0x168] sm:$0xff]
      %v541 = vld [vmem:[#allocation2 + $0x170] sm:$0xff]
      %v542 = vpack.c.bf16 %v511, %v510
      %v543 = vpack.c.bf16 %v513, %v512
      %v544 = vpack.c.bf16 %v515, %v514
      %v545 = vpack.c.bf16 %v517, %v516
      %v546 = vpack.c.bf16 %v519, %v518
      %v547 = vpack.c.bf16 %v521, %v520
      %v548 = vpack.c.bf16 %v523, %v522
      %v549 = vpack.c.bf16 %v525, %v524
      %v550 = vpack.c.bf16 %v527, %v526
      %v551 = vpack.c.bf16 %v529, %v528
      %v552 = vpack.c.bf16 %v531, %v530
      %v553 = vpack.c.bf16 %v533, %v532
      %v554 = vpack.c.bf16 %v535, %v534
      %v555 = vpack.c.bf16 %v537, %v536
      %v556 = vpack.c.bf16 %v539, %v538
      %v557 = vpack.c.bf16 %v541, %v540
      %v558 = vld [vmem:[#allocation2 + $0x1] sm:$0xff]
      %v559 = vld [vmem:[#allocation2 + $0x9] sm:$0xff]
      %v560 = vld [vmem:[#allocation2 + $0x19] sm:$0xff]
      %v561 = vld [vmem:[#allocation2 + $0x21] sm:$0xff]
      %v562 = vld [vmem:[#allocation2 + $0x31] sm:$0xff]
      %v563 = vld [vmem:[#allocation2 + $0x39] sm:$0xff]
      %v564 = vld [vmem:[#allocation2 + $0x49] sm:$0xff]
      %v565 = vld [vmem:[#allocation2 + $0x51] sm:$0xff]
      %v566 = vld [vmem:[#allocation2 + $0x61] sm:$0xff]
      %v567 = vld [vmem:[#allocation2 + $0x69] sm:$0xff]
      %v568 = vld [vmem:[#allocation2 + $0x79] sm:$0xff]
      %v569 = vld [vmem:[#allocation2 + $0x81] sm:$0xff]
      %v570 = vld [vmem:[#allocation2 + $0x91] sm:$0xff]
      %v571 = vld [vmem:[#allocation2 + $0x99] sm:$0xff]
      %v572 = vld [vmem:[#allocation2 + $0xa9] sm:$0xff]
      %v573 = vld [vmem:[#allocation2 + $0xb1] sm:$0xff]
      %v574 = vld [vmem:[#allocation2 + $0xc1] sm:$0xff]
      %v575 = vld [vmem:[#allocation2 + $0xc9] sm:$0xff]
      %v576 = vld [vmem:[#allocation2 + $0xd9] sm:$0xff]
      %v577 = vld [vmem:[#allocation2 + $0xe1] sm:$0xff]
      %v578 = vld [vmem:[#allocation2 + $0xf1] sm:$0xff]
      %v579 = vld [vmem:[#allocation2 + $0xf9] sm:$0xff]
      %v580 = vld [vmem:[#allocation2 + $0x109] sm:$0xff]
      %v581 = vld [vmem:[#allocation2 + $0x111] sm:$0xff]
      %v582 = vld [vmem:[#allocation2 + $0x121] sm:$0xff]
      %v583 = vld [vmem:[#allocation2 + $0x129] sm:$0xff]
      %v584 = vld [vmem:[#allocation2 + $0x139] sm:$0xff]
      %v585 = vld [vmem:[#allocation2 + $0x141] sm:$0xff]
      %v586 = vld [vmem:[#allocation2 + $0x151] sm:$0xff]
      %v587 = vld [vmem:[#allocation2 + $0x159] sm:$0xff]
      %v588 = vld [vmem:[#allocation2 + $0x169] sm:$0xff]
      %v589 = vld [vmem:[#allocation2 + $0x171] sm:$0xff]
      %v590 = vpack.c.bf16 %v559, %v558
      %v591 = vpack.c.bf16 %v561, %v560
      %v592 = vpack.c.bf16 %v563, %v562
      %v593 = vpack.c.bf16 %v565, %v564
      %v594 = vpack.c.bf16 %v567, %v566
      %v595 = vpack.c.bf16 %v569, %v568
      %v596 = vpack.c.bf16 %v571, %v570
      %v597 = vpack.c.bf16 %v573, %v572
      %v598 = vpack.c.bf16 %v575, %v574
      %v599 = vpack.c.bf16 %v577, %v576
      %v600 = vpack.c.bf16 %v579, %v578
      %v601 = vpack.c.bf16 %v581, %v580
      %v602 = vpack.c.bf16 %v583, %v582
      %v603 = vpack.c.bf16 %v585, %v584
      %v604 = vpack.c.bf16 %v587, %v586
      %v605 = vpack.c.bf16 %v589, %v588
      %v606 = vld [vmem:[#allocation2 + $0x2] sm:$0xff]
      %v607 = vld [vmem:[#allocation2 + $0xa] sm:$0xff]
      %v608 = vld [vmem:[#allocation2 + $0x1a] sm:$0xff]
      %v609 = vld [vmem:[#allocation2 + $0x22] sm:$0xff]
      %v610 = vld [vmem:[#allocation2 + $0x32] sm:$0xff]
      %v611 = vld [vmem:[#allocation2 + $0x3a] sm:$0xff]
      %v612 = vld [vmem:[#allocation2 + $0x4a] sm:$0xff]
      %v613 = vld [vmem:[#allocation2 + $0x52] sm:$0xff]
      %v614 = vld [vmem:[#allocation2 + $0x62] sm:$0xff]
      %v615 = vld [vmem:[#allocation2 + $0x6a] sm:$0xff]
      %v616 = vld [vmem:[#allocation2 + $0x7a] sm:$0xff]
      %v617 = vld [vmem:[#allocation2 + $0x82] sm:$0xff]
      %v618 = vld [vmem:[#allocation2 + $0x92] sm:$0xff]
      %v619 = vld [vmem:[#allocation2 + $0x9a] sm:$0xff]
      %v620 = vld [vmem:[#allocation2 + $0xaa] sm:$0xff]
      %v621 = vld [vmem:[#allocation2 + $0xb2] sm:$0xff]
      %v622 = vld [vmem:[#allocation2 + $0xc2] sm:$0xff]
      %v623 = vld [vmem:[#allocation2 + $0xca] sm:$0xff]
      %v624 = vld [vmem:[#allocation2 + $0xda] sm:$0xff]
      %v625 = vld [vmem:[#allocation2 + $0xe2] sm:$0xff]
      %v626 = vld [vmem:[#allocation2 + $0xf2] sm:$0xff]
      %v627 = vld [vmem:[#allocation2 + $0xfa] sm:$0xff]
      %v628 = vld [vmem:[#allocation2 + $0x10a] sm:$0xff]
      %v629 = vld [vmem:[#allocation2 + $0x112] sm:$0xff]
      %v630 = vld [vmem:[#allocation2 + $0x122] sm:$0xff]
      %v631 = vld [vmem:[#allocation2 + $0x12a] sm:$0xff]
      %v632 = vld [vmem:[#allocation2 + $0x13a] sm:$0xff]
      %v633 = vld [vmem:[#allocation2 + $0x142] sm:$0xff]
      %v634 = vld [vmem:[#allocation2 + $0x152] sm:$0xff]
      %v635 = vld [vmem:[#allocation2 + $0x15a] sm:$0xff]
      %v636 = vld [vmem:[#allocation2 + $0x16a] sm:$0xff]
      %v637 = vld [vmem:[#allocation2 + $0x172] sm:$0xff]
      %v638 = vpack.c.bf16 %v607, %v606
      %v639 = vpack.c.bf16 %v609, %v608
      %v640 = vpack.c.bf16 %v611, %v610
      %v641 = vpack.c.bf16 %v613, %v612
      %v642 = vpack.c.bf16 %v615, %v614
      %v643 = vpack.c.bf16 %v617, %v616
      %v644 = vpack.c.bf16 %v619, %v618
      %v645 = vpack.c.bf16 %v621, %v620
      %v646 = vpack.c.bf16 %v623, %v622
      %v647 = vpack.c.bf16 %v625, %v624
      %v648 = vpack.c.bf16 %v627, %v626
      %v649 = vpack.c.bf16 %v629, %v628
      %v650 = vpack.c.bf16 %v631, %v630
      %v651 = vpack.c.bf16 %v633, %v632
      %v652 = vpack.c.bf16 %v635, %v634
      %v653 = vpack.c.bf16 %v637, %v636
      %v654 = vld [vmem:[%s264] sm:$0xf]
      %v655 = vld [vmem:[%s264 + $0x4] sm:$0xf]
      %v656 = vld [vmem:[%s264 + $0x8] sm:$0xf]
      %v657 = vld [vmem:[%s264 + $0xc] sm:$0xf]
      %v658 = vld [vmem:[%s264 + $0x10] sm:$0xf]
      %v659 = vld [vmem:[%s264 + $0x14] sm:$0xf]
      %v660 = vld [vmem:[%s264 + $0x18] sm:$0xf]
      %v661 = vld [vmem:[%s264 + $0x1c] sm:$0xf]
      %v662 = vld [vmem:[%s264 + $0x20] sm:$0xf]
      %v663 = vld [vmem:[%s264 + $0x24] sm:$0xf]
      %v664 = vld [vmem:[%s264 + $0x28] sm:$0xf]
      %v665 = vld [vmem:[%s264 + $0x2c] sm:$0xf]
      %v666 = vld [vmem:[%s264 + $0x30] sm:$0xf]
      %v667 = vld [vmem:[%s264 + $0x34] sm:$0xf]
      %v668 = vld [vmem:[%s264 + $0x38] sm:$0xf]
      %v669 = vld [vmem:[%s264 + $0x3c] sm:$0xf]
      %v670 = vld [vmem:[%s264 + $0x40] sm:$0xf]
      %v671 = vld [vmem:[%s264 + $0x44] sm:$0xf]
      %v672 = vld [vmem:[%s264 + $0x48] sm:$0xf]
      %v673 = vld [vmem:[%s264 + $0x4c] sm:$0xf]
      %v674 = vld [vmem:[%s264 + $0x50] sm:$0xf]
      %v675 = vld [vmem:[%s264 + $0x54] sm:$0xf]
      %v676 = vld [vmem:[%s264 + $0x58] sm:$0xf]
      %v677 = vld [vmem:[%s264 + $0x5c] sm:$0xf]
      %v678 = vld [vmem:[%s264 + $0x60] sm:$0xf]
      %v679 = vld [vmem:[%s264 + $0x64] sm:$0xf]
      %v680 = vld [vmem:[%s264 + $0x68] sm:$0xf]
      %v681 = vld [vmem:[%s264 + $0x6c] sm:$0xf]
      %v682 = vld [vmem:[%s264 + $0x70] sm:$0xf]
      %v683 = vld [vmem:[%s264 + $0x74] sm:$0xf]
      %v684 = vld [vmem:[%s264 + $0x78] sm:$0xf]
      %v685 = vld [vmem:[%s264 + $0x7c] sm:$0xf]
      %v686 = vld [vmem:[%s264 + $0x80] sm:$0xf]
      %v687 = vld [vmem:[%s264 + $0x84] sm:$0xf]
      %v688 = vld [vmem:[%s264 + $0x88] sm:$0xf]
      %v689 = vld [vmem:[%s264 + $0x8c] sm:$0xf]
      %v690 = vld [vmem:[%s264 + $0x90] sm:$0xf]
      %v691 = vld [vmem:[%s264 + $0x94] sm:$0xf]
      %v692 = vld [vmem:[%s264 + $0x98] sm:$0xf]
      %v693 = vld [vmem:[%s264 + $0x9c] sm:$0xf]
      %v694 = vld [vmem:[%s264 + $0xa0] sm:$0xf]
      %v695 = vld [vmem:[%s264 + $0xa4] sm:$0xf]
      %v696 = vld [vmem:[%s264 + $0xa8] sm:$0xf]
      %v697 = vld [vmem:[%s264 + $0xac] sm:$0xf]
      %v698 = vld [vmem:[%s264 + $0xb0] sm:$0xf]
      %v699 = vld [vmem:[%s264 + $0xb4] sm:$0xf]
      %v700 = vld [vmem:[%s264 + $0xb8] sm:$0xf]
      %v701 = vld [vmem:[%s264 + $0xbc] sm:$0xf]
      %v702 = vld [vmem:[%s267] sm:$0x1]
      %v704 = vlaneseq
      %v705 = vshrl.u32 %v704, 7
      %v706 = vsub.s32 0, %v705
      %v707 = vrot.slane %v702, %v706
      %v757 = vunpack.c.l.b16 %v654
      %v758 = vunpack.c.l.b16 %v655
      %v759 = vunpack.c.l.b16 %v656
      %v760 = vunpack.c.l.b16 %v657
      %v761 = vunpack.c.l.b16 %v658
      %v762 = vunpack.c.l.b16 %v659
      %v763 = vunpack.c.l.b16 %v660
      %v764 = vunpack.c.l.b16 %v661
      %v765 = vunpack.c.l.b16 %v662
      %v766 = vunpack.c.l.b16 %v663
      %v767 = vunpack.c.l.b16 %v664
      %v768 = vunpack.c.l.b16 %v665
      %v769 = vunpack.c.l.b16 %v666
      %v770 = vunpack.c.l.b16 %v667
      %v771 = vunpack.c.l.b16 %v668
      %v772 = vunpack.c.l.b16 %v669
      %v773 = vunpack.c.l.b16 %v670
      %v774 = vunpack.c.l.b16 %v671
      %v775 = vunpack.c.l.b16 %v672
      %v776 = vunpack.c.l.b16 %v673
      %v777 = vunpack.c.l.b16 %v674
      %v778 = vunpack.c.l.b16 %v675
      %v779 = vunpack.c.l.b16 %v676
      %v780 = vunpack.c.l.b16 %v677
      %v781 = vunpack.c.l.b16 %v678
      %v782 = vunpack.c.l.b16 %v679
      %v783 = vunpack.c.l.b16 %v680
      %v784 = vunpack.c.l.b16 %v681
      %v785 = vunpack.c.l.b16 %v682
      %v786 = vunpack.c.l.b16 %v683
      %v787 = vunpack.c.l.b16 %v684
      %v788 = vunpack.c.l.b16 %v685
      %v789 = vunpack.c.l.b16 %v686
      %v790 = vunpack.c.l.b16 %v687
      %v791 = vunpack.c.l.b16 %v688
      %v792 = vunpack.c.l.b16 %v689
      %v793 = vunpack.c.l.b16 %v690
      %v794 = vunpack.c.l.b16 %v691
      %v795 = vunpack.c.l.b16 %v692
      %v796 = vunpack.c.l.b16 %v693
      %v797 = vunpack.c.l.b16 %v694
      %v798 = vunpack.c.l.b16 %v695
      %v799 = vunpack.c.l.b16 %v696
      %v800 = vunpack.c.l.b16 %v697
      %v801 = vunpack.c.l.b16 %v698
      %v802 = vunpack.c.l.b16 %v699
      %v803 = vunpack.c.l.b16 %v700
      %v804 = vunpack.c.l.b16 %v701
      %v805 = vpack.c.b16 %v758, %v757
      %v806 = vpack.c.b16 %v760, %v759
      %v807 = vpack.c.b16 %v762, %v761
      %v808 = vpack.c.b16 %v764, %v763
      %v809 = vpack.c.b16 %v766, %v765
      %v810 = vpack.c.b16 %v768, %v767
      %v811 = vpack.c.b16 %v770, %v769
      %v812 = vpack.c.b16 %v772, %v771
      %v813 = vpack.c.b16 %v774, %v773
      %v814 = vpack.c.b16 %v776, %v775
      %v815 = vpack.c.b16 %v778, %v777
      %v816 = vpack.c.b16 %v780, %v779
      %v817 = vpack.c.b16 %v782, %v781
      %v818 = vpack.c.b16 %v784, %v783
      %v819 = vpack.c.b16 %v786, %v785
      %v820 = vpack.c.b16 %v788, %v787
      %v821 = vpack.c.b16 %v790, %v789
      %v822 = vpack.c.b16 %v792, %v791
      %v823 = vpack.c.b16 %v794, %v793
      %v824 = vpack.c.b16 %v796, %v795
      %v825 = vpack.c.b16 %v798, %v797
      %v826 = vpack.c.b16 %v800, %v799
      %v827 = vpack.c.b16 %v802, %v801
      %v828 = vpack.c.b16 %v804, %v803
      %853 = vmatprep.subr.bf16.mxu0 0
      %854 = vmatpush1.bf16.msra.mxu0 %v812
      %855 = vmatprep.subr.bf16.mxu0 0
      %856 = vmatpush1.bf16.msra.mxu0 %v811
      %857 = vmatprep.subr.bf16.mxu0 0
      %858 = vmatpush1.bf16.msra.mxu0 %v810
      %859 = vmatprep.subr.bf16.mxu0 0
      %860 = vmatpush1.bf16.msra.mxu0 %v809
      %861 = vmatprep.subr.bf16.mxu0 0
      %862 = vmatpush1.bf16.msra.mxu0 %v808
      %863 = vmatprep.subr.bf16.mxu0 0
      %864 = vmatpush1.bf16.msra.mxu0 %v807
      %865 = vmatprep.subr.bf16.mxu0 0
      %866 = vmatpush1.bf16.msra.mxu0 %v806
      %867 = vmatprep.subr.bf16.mxu0 0
      %868 = vmatpush1.bf16.msra.mxu0 %v805
      %869 = vmatprep.subr.bf16.mxu0 0
      %870 = vmatpush2.bf16.msra.mxu0 %v820
      %871 = vmatprep.subr.bf16.mxu0 0
      %872 = vmatpush2.bf16.msra.mxu0 %v819
      %873 = vmatprep.subr.bf16.mxu0 0
      %874 = vmatpush2.bf16.msra.mxu0 %v818
      %875 = vmatprep.subr.bf16.mxu0 0
      %876 = vmatpush2.bf16.msra.mxu0 %v817
      %877 = vmatprep.subr.bf16.mxu0 0
      %878 = vmatpush2.bf16.msra.mxu0 %v816
      %879 = vmatprep.subr.bf16.mxu0 0
      %880 = vmatpush2.bf16.msra.mxu0 %v815
      %881 = vmatprep.subr.bf16.mxu0 0
      %882 = vmatpush2.bf16.msra.mxu0 %v814
      %883 = vmatprep.subr.bf16.mxu0 0
      %884 = vmatpush2.bf16.msra.mxu0 %v813
      %885 = vmatprep.mubr.bf16.mxu0 %v590
      %886 = vmatmul.mubr.bf16.gmra.mxu0 %v542
      %v887 = vpop.f32.mrf.mxu0
      %v888 = vadd.f32 %v707, %v887
      %v889 = vpop.f32.mrf.mxu0
      %v890 = vpop.f32.mrf.mxu0
      %v891 = vadd.f32 %v707, %v890
      %v892 = vpop.f32.mrf.mxu0
      %893 = vmatprep.mubr.bf16.mxu0 %v591
      %894 = vmatmul.mubr.bf16.gmra.mxu0 %v543
      %v895 = vpop.f32.mrf.mxu0
      %v896 = vadd.f32 %v707, %v895
      %v897 = vpop.f32.mrf.mxu0
      %v898 = vpop.f32.mrf.mxu0
      %v899 = vadd.f32 %v707, %v898
      %v900 = vpop.f32.mrf.mxu0
      %901 = vmatprep.mubr.bf16.mxu0 %v592
      %902 = vmatmul.mubr.bf16.gmra.mxu0 %v544
      %v903 = vpop.f32.mrf.mxu0
      %v904 = vadd.f32 %v707, %v903
      %v905 = vpop.f32.mrf.mxu0
      %v906 = vpop.f32.mrf.mxu0
      %v907 = vadd.f32 %v707, %v906
      %v908 = vpop.f32.mrf.mxu0
      %909 = vmatprep.mubr.bf16.mxu0 %v593
      %910 = vmatmul.mubr.bf16.gmra.mxu0 %v545
      %v911 = vpop.f32.mrf.mxu0
      %v912 = vadd.f32 %v707, %v911
      %v913 = vpop.f32.mrf.mxu0
      %v914 = vpop.f32.mrf.mxu0
      %v915 = vadd.f32 %v707, %v914
      %v916 = vpop.f32.mrf.mxu0
      %917 = vmatprep.mubr.bf16.mxu0 %v594
      %918 = vmatmul.mubr.bf16.gmra.mxu0 %v546
      %v919 = vpop.f32.mrf.mxu0
      %v920 = vadd.f32 %v707, %v919
      %v921 = vpop.f32.mrf.mxu0
      %v922 = vpop.f32.mrf.mxu0
      %v923 = vadd.f32 %v707, %v922
      %v924 = vpop.f32.mrf.mxu0
      %925 = vmatprep.mubr.bf16.mxu0 %v595
      %926 = vmatmul.mubr.bf16.gmra.mxu0 %v547
      %v927 = vpop.f32.mrf.mxu0
      %v928 = vadd.f32 %v707, %v927
      %v929 = vpop.f32.mrf.mxu0
      %v930 = vpop.f32.mrf.mxu0
      %v931 = vadd.f32 %v707, %v930
      %v932 = vpop.f32.mrf.mxu0
      %933 = vmatprep.mubr.bf16.mxu0 %v596
      %934 = vmatmul.mubr.bf16.gmra.mxu0 %v548
      %v935 = vpop.f32.mrf.mxu0
      %v936 = vadd.f32 %v707, %v935
      %v937 = vpop.f32.mrf.mxu0
      %v938 = vpop.f32.mrf.mxu0
      %v939 = vadd.f32 %v707, %v938
      %v940 = vpop.f32.mrf.mxu0
      %941 = vmatprep.mubr.bf16.mxu0 %v597
      %942 = vmatmul.mubr.bf16.gmra.mxu0 %v549
      %v943 = vpop.f32.mrf.mxu0
      %v944 = vadd.f32 %v707, %v943
      %v945 = vpop.f32.mrf.mxu0
      %v946 = vpop.f32.mrf.mxu0
      %v947 = vadd.f32 %v707, %v946
      %v948 = vpop.f32.mrf.mxu0
      %949 = vmatprep.mubr.bf16.mxu0 %v598
      %950 = vmatmul.mubr.bf16.gmra.mxu0 %v550
      %v951 = vpop.f32.mrf.mxu0
      %v952 = vadd.f32 %v707, %v951
      %v953 = vpop.f32.mrf.mxu0
      %v954 = vpop.f32.mrf.mxu0
      %v955 = vadd.f32 %v707, %v954
      %v956 = vpop.f32.mrf.mxu0
      %957 = vmatprep.mubr.bf16.mxu0 %v599
      %958 = vmatmul.mubr.bf16.gmra.mxu0 %v551
      %v959 = vpop.f32.mrf.mxu0
      %v960 = vadd.f32 %v707, %v959
      %v961 = vpop.f32.mrf.mxu0
      %v962 = vpop.f32.mrf.mxu0
      %v963 = vadd.f32 %v707, %v962
      %v964 = vpop.f32.mrf.mxu0
      %965 = vmatprep.mubr.bf16.mxu0 %v600
      %966 = vmatmul.mubr.bf16.gmra.mxu0 %v552
      %v967 = vpop.f32.mrf.mxu0
      %v968 = vadd.f32 %v707, %v967
      %v969 = vpop.f32.mrf.mxu0
      %v970 = vpop.f32.mrf.mxu0
      %v971 = vadd.f32 %v707, %v970
      %v972 = vpop.f32.mrf.mxu0
      %973 = vmatprep.mubr.bf16.mxu0 %v601
      %974 = vmatmul.mubr.bf16.gmra.mxu0 %v553
      %v975 = vpop.f32.mrf.mxu0
      %v976 = vadd.f32 %v707, %v975
      %v977 = vpop.f32.mrf.mxu0
      %v978 = vpop.f32.mrf.mxu0
      %v979 = vadd.f32 %v707, %v978
      %v980 = vpop.f32.mrf.mxu0
      %981 = vmatprep.mubr.bf16.mxu0 %v602
      %982 = vmatmul.mubr.bf16.gmra.mxu0 %v554
      %v983 = vpop.f32.mrf.mxu0
      %v984 = vadd.f32 %v707, %v983
      %v985 = vpop.f32.mrf.mxu0
      %v986 = vpop.f32.mrf.mxu0
      %v987 = vadd.f32 %v707, %v986
      %v988 = vpop.f32.mrf.mxu0
      %989 = vmatprep.mubr.bf16.mxu0 %v603
      %990 = vmatmul.mubr.bf16.gmra.mxu0 %v555
      %v991 = vpop.f32.mrf.mxu0
      %v992 = vadd.f32 %v707, %v991
      %v993 = vpop.f32.mrf.mxu0
      %v994 = vpop.f32.mrf.mxu0
      %v995 = vadd.f32 %v707, %v994
      %v996 = vpop.f32.mrf.mxu0
      %997 = vmatprep.mubr.bf16.mxu0 %v604
      %998 = vmatmul.mubr.bf16.gmra.mxu0 %v556
      %v999 = vpop.f32.mrf.mxu0
      %v1000 = vadd.f32 %v707, %v999
      %v1001 = vpop.f32.mrf.mxu0
      %v1002 = vpop.f32.mrf.mxu0
      %v1003 = vadd.f32 %v707, %v1002
      %v1004 = vpop.f32.mrf.mxu0
      %1005 = vmatprep.mubr.bf16.mxu0 %v605
      %1006 = vmatmul.mubr.bf16.gmra.mxu0 %v557
      %v1007 = vpop.f32.mrf.mxu0
      %v1008 = vadd.f32 %v707, %v1007
      %v1009 = vpop.f32.mrf.mxu0
      %v1010 = vpop.f32.mrf.mxu0
      %v1011 = vadd.f32 %v707, %v1010
      %v1012 = vpop.f32.mrf.mxu0
      %1013 = vdwg.mxu0
      %1014 = vmatprep.subr.bf16.mxu0 0
      %1015 = vmatpush1.bf16.msra.mxu0 %v828
      %1016 = vmatprep.subr.bf16.mxu0 0
      %1017 = vmatpush1.bf16.msra.mxu0 %v827
      %1018 = vmatprep.subr.bf16.mxu0 0
      %1019 = vmatpush1.bf16.msra.mxu0 %v826
      %1020 = vmatprep.subr.bf16.mxu0 0
      %1021 = vmatpush1.bf16.msra.mxu0 %v825
      %1022 = vmatprep.subr.bf16.mxu0 0
      %1023 = vmatpush1.bf16.msra.mxu0 %v824
      %1024 = vmatprep.subr.bf16.mxu0 0
      %1025 = vmatpush1.bf16.msra.mxu0 %v823
      %1026 = vmatprep.subr.bf16.mxu0 0
      %1027 = vmatpush1.bf16.msra.mxu0 %v822
      %1028 = vmatprep.subr.bf16.mxu0 0
      %1029 = vmatpush1.bf16.msra.mxu0 %v821
      %1030 = vmatprep.subr.bf16.mxu0 0
      %1031 = vmatpush2.bf16.msra.mxu0 0
      %1032 = vmatprep.subr.bf16.mxu0 0
      %1033 = vmatpush2.bf16.msra.mxu0 0
      %1034 = vmatprep.subr.bf16.mxu0 0
      %1035 = vmatpush2.bf16.msra.mxu0 0
      %1036 = vmatprep.subr.bf16.mxu0 0
      %1037 = vmatpush2.bf16.msra.mxu0 0
      %1038 = vmatprep.subr.bf16.mxu0 0
      %1039 = vmatpush2.bf16.msra.mxu0 0
      %1040 = vmatprep.subr.bf16.mxu0 0
      %1041 = vmatpush2.bf16.msra.mxu0 0
      %1042 = vmatprep.subr.bf16.mxu0 0
      %1043 = vmatpush2.bf16.msra.mxu0 0
      %1044 = vmatprep.subr.bf16.mxu0 0
      %1045 = vmatpush2.bf16.msra.mxu0 0
      %1046 = vmatprep.mubr.bf16.mxu0 0
      %1047 = vmatmul.mubr.bf16.gmra.mxu0 %v638
      %v1048 = vpop.f32.mrf.mxu0
      %v1049 = vadd.f32 %v888, %v1048
      %v1050 = vpop.f32.mrf.mxu0
      %v1051 = vpop.f32.mrf.mxu0
      %v1052 = vadd.f32 %v891, %v1051
      %v1053 = vpop.f32.mrf.mxu0
      %1054 = vmatprep.mubr.bf16.mxu0 0
      %1055 = vmatmul.mubr.bf16.gmra.mxu0 %v639
      %v1056 = vpop.f32.mrf.mxu0
      %v1057 = vadd.f32 %v896, %v1056
      %v1058 = vpop.f32.mrf.mxu0
      %v1059 = vpop.f32.mrf.mxu0
      %v1060 = vadd.f32 %v899, %v1059
      %v1061 = vpop.f32.mrf.mxu0
      %1062 = vmatprep.mubr.bf16.mxu0 0
      %1063 = vmatmul.mubr.bf16.gmra.mxu0 %v640
      %v1064 = vpop.f32.mrf.mxu0
      %v1065 = vadd.f32 %v904, %v1064
      %v1066 = vpop.f32.mrf.mxu0
      %v1067 = vpop.f32.mrf.mxu0
      %v1068 = vadd.f32 %v907, %v1067
      %v1069 = vpop.f32.mrf.mxu0
      %1070 = vmatprep.mubr.bf16.mxu0 0
      %1071 = vmatmul.mubr.bf16.gmra.mxu0 %v641
      %v1072 = vpop.f32.mrf.mxu0
      %v1073 = vadd.f32 %v912, %v1072
      %v1074 = vpop.f32.mrf.mxu0
      %v1075 = vpop.f32.mrf.mxu0
      %v1076 = vadd.f32 %v915, %v1075
      %v1077 = vpop.f32.mrf.mxu0
      %1078 = vmatprep.mubr.bf16.mxu0 0
      %1079 = vmatmul.mubr.bf16.gmra.mxu0 %v642
      %v1080 = vpop.f32.mrf.mxu0
      %v1081 = vadd.f32 %v920, %v1080
      %v1082 = vpop.f32.mrf.mxu0
      %v1083 = vpop.f32.mrf.mxu0
      %v1084 = vadd.f32 %v923, %v1083
      %v1085 = vpop.f32.mrf.mxu0
      %1086 = vmatprep.mubr.bf16.mxu0 0
      %1087 = vmatmul.mubr.bf16.gmra.mxu0 %v643
      %v1088 = vpop.f32.mrf.mxu0
      %v1089 = vadd.f32 %v928, %v1088
      %v1090 = vpop.f32.mrf.mxu0
      %v1091 = vpop.f32.mrf.mxu0
      %v1092 = vadd.f32 %v931, %v1091
      %v1093 = vpop.f32.mrf.mxu0
      %1094 = vmatprep.mubr.bf16.mxu0 0
      %1095 = vmatmul.mubr.bf16.gmra.mxu0 %v644
      %v1096 = vpop.f32.mrf.mxu0
      %v1097 = vadd.f32 %v936, %v1096
      %v1098 = vpop.f32.mrf.mxu0
      %v1099 = vpop.f32.mrf.mxu0
      %v1100 = vadd.f32 %v939, %v1099
      %v1101 = vpop.f32.mrf.mxu0
      %1102 = vmatprep.mubr.bf16.mxu0 0
      %1103 = vmatmul.mubr.bf16.gmra.mxu0 %v645
      %v1104 = vpop.f32.mrf.mxu0
      %v1105 = vadd.f32 %v944, %v1104
      %v1106 = vpop.f32.mrf.mxu0
      %v1107 = vpop.f32.mrf.mxu0
      %v1108 = vadd.f32 %v947, %v1107
      %v1109 = vpop.f32.mrf.mxu0
      %1110 = vmatprep.mubr.bf16.mxu0 0
      %1111 = vmatmul.mubr.bf16.gmra.mxu0 %v646
      %v1112 = vpop.f32.mrf.mxu0
      %v1113 = vadd.f32 %v952, %v1112
      %v1114 = vpop.f32.mrf.mxu0
      %v1115 = vpop.f32.mrf.mxu0
      %v1116 = vadd.f32 %v955, %v1115
      %v1117 = vpop.f32.mrf.mxu0
      %1118 = vmatprep.mubr.bf16.mxu0 0
      %1119 = vmatmul.mubr.bf16.gmra.mxu0 %v647
      %v1120 = vpop.f32.mrf.mxu0
      %v1121 = vadd.f32 %v960, %v1120
      %v1122 = vpop.f32.mrf.mxu0
      %v1123 = vpop.f32.mrf.mxu0
      %v1124 = vadd.f32 %v963, %v1123
      %v1125 = vpop.f32.mrf.mxu0
      %1126 = vmatprep.mubr.bf16.mxu0 0
      %1127 = vmatmul.mubr.bf16.gmra.mxu0 %v648
      %v1128 = vpop.f32.mrf.mxu0
      %v1129 = vadd.f32 %v968, %v1128
      %v1130 = vpop.f32.mrf.mxu0
      %v1131 = vpop.f32.mrf.mxu0
      %v1132 = vadd.f32 %v971, %v1131
      %v1133 = vpop.f32.mrf.mxu0
      %1134 = vmatprep.mubr.bf16.mxu0 0
      %1135 = vmatmul.mubr.bf16.gmra.mxu0 %v649
      %v1136 = vpop.f32.mrf.mxu0
      %v1137 = vadd.f32 %v976, %v1136
      %v1138 = vpop.f32.mrf.mxu0
      %v1139 = vpop.f32.mrf.mxu0
      %v1140 = vadd.f32 %v979, %v1139
      %v1141 = vpop.f32.mrf.mxu0
      %1142 = vmatprep.mubr.bf16.mxu0 0
      %1143 = vmatmul.mubr.bf16.gmra.mxu0 %v650
      %v1144 = vpop.f32.mrf.mxu0
      %v1145 = vadd.f32 %v984, %v1144
      %v1146 = vpop.f32.mrf.mxu0
      %v1147 = vpop.f32.mrf.mxu0
      %v1148 = vadd.f32 %v987, %v1147
      %v1149 = vpop.f32.mrf.mxu0
      %1150 = vmatprep.mubr.bf16.mxu0 0
      %1151 = vmatmul.mubr.bf16.gmra.mxu0 %v651
      %v1152 = vpop.f32.mrf.mxu0
      %v1153 = vadd.f32 %v992, %v1152
      %v1154 = vpop.f32.mrf.mxu0
      %v1155 = vpop.f32.mrf.mxu0
      %v1156 = vadd.f32 %v995, %v1155
      %v1157 = vpop.f32.mrf.mxu0
      %1158 = vmatprep.mubr.bf16.mxu0 0
      %1159 = vmatmul.mubr.bf16.gmra.mxu0 %v652
      %v1160 = vpop.f32.mrf.mxu0
      %v1161 = vadd.f32 %v1000, %v1160
      %v1162 = vpop.f32.mrf.mxu0
      %v1163 = vpop.f32.mrf.mxu0
      %v1164 = vadd.f32 %v1003, %v1163
      %v1165 = vpop.f32.mrf.mxu0
      %1166 = vmatprep.mubr.bf16.mxu0 0
      %1167 = vmatmul.mubr.bf16.gmra.mxu0 %v653
      %v1168 = vpop.f32.mrf.mxu0
      %v1169 = vadd.f32 %v1008, %v1168
      %v1170 = vpop.f32.mrf.mxu0
      %v1171 = vpop.f32.mrf.mxu0
      %v1172 = vadd.f32 %v1011, %v1171
      %v1173 = vpop.f32.mrf.mxu0
      %1174 = vdwg.mxu0
      %s1175 = scalar_lea.vmem [#allocation2], 24
      %v1176 = vld [vmem:[%s1175] sm:$0xff]
      %v1177 = vld [vmem:[%s1175 + $0x8] sm:$0xff]
      %v1178 = vld [vmem:[%s1175 + $0x18] sm:$0xff]
      %v1179 = vld [vmem:[%s1175 + $0x20] sm:$0xff]
      %v1180 = vld [vmem:[%s1175 + $0x30] sm:$0xff]
      %v1181 = vld [vmem:[%s1175 + $0x38] sm:$0xff]
      %v1182 = vld [vmem:[%s1175 + $0x48] sm:$0xff]
      %v1183 = vld [vmem:[%s1175 + $0x50] sm:$0xff]
      %v1184 = vld [vmem:[%s1175 + $0x60] sm:$0xff]
      %v1185 = vld [vmem:[%s1175 + $0x68] sm:$0xff]
      %v1186 = vld [vmem:[%s1175 + $0x78] sm:$0xff]
      %v1187 = vld [vmem:[%s1175 + $0x80] sm:$0xff]
      %v1188 = vld [vmem:[%s1175 + $0x90] sm:$0xff]
      %v1189 = vld [vmem:[%s1175 + $0x98] sm:$0xff]
      %v1190 = vld [vmem:[%s1175 + $0xa8] sm:$0xff]
      %v1191 = vld [vmem:[%s1175 + $0xb0] sm:$0xff]
      %v1192 = vld [vmem:[%s1175 + $0xc0] sm:$0xff]
      %v1193 = vld [vmem:[%s1175 + $0xc8] sm:$0xff]
      %v1194 = vld [vmem:[%s1175 + $0xd8] sm:$0xff]
      %v1195 = vld [vmem:[%s1175 + $0xe0] sm:$0xff]
      %v1196 = vld [vmem:[%s1175 + $0xf0] sm:$0xff]
      %v1197 = vld [vmem:[%s1175 + $0xf8] sm:$0xff]
      %v1198 = vld [vmem:[%s1175 + $0x108] sm:$0xff]
      %v1199 = vld [vmem:[%s1175 + $0x110] sm:$0xff]
      %v1200 = vld [vmem:[%s1175 + $0x120] sm:$0xff]
      %v1201 = vld [vmem:[%s1175 + $0x128] sm:$0xff]
      %v1202 = vld [vmem:[%s1175 + $0x138] sm:$0xff]
      %v1203 = vld [vmem:[%s1175 + $0x140] sm:$0xff]
      %v1204 = vld [vmem:[%s1175 + $0x150] sm:$0xff]
      %v1205 = vld [vmem:[%s1175 + $0x158] sm:$0xff]
      %v1206 = vld [vmem:[%s1175 + $0x168] sm:$0xff]
      %v1207 = vld [vmem:[%s1175 + $0x170] sm:$0xff]
      %v1208 = vpack.c.bf16 %v1177, %v1176
      %v1209 = vpack.c.bf16 %v1179, %v1178
      %v1210 = vpack.c.bf16 %v1181, %v1180
      %v1211 = vpack.c.bf16 %v1183, %v1182
      %v1212 = vpack.c.bf16 %v1185, %v1184
      %v1213 = vpack.c.bf16 %v1187, %v1186
      %v1214 = vpack.c.bf16 %v1189, %v1188
      %v1215 = vpack.c.bf16 %v1191, %v1190
      %v1216 = vpack.c.bf16 %v1193, %v1192
      %v1217 = vpack.c.bf16 %v1195, %v1194
      %v1218 = vpack.c.bf16 %v1197, %v1196
      %v1219 = vpack.c.bf16 %v1199, %v1198
      %v1220 = vpack.c.bf16 %v1201, %v1200
      %v1221 = vpack.c.bf16 %v1203, %v1202
      %v1222 = vpack.c.bf16 %v1205, %v1204
      %v1223 = vpack.c.bf16 %v1207, %v1206
      %v1224 = vld [vmem:[%s1175 + $0x1] sm:$0xff]
      %v1225 = vld [vmem:[%s1175 + $0x9] sm:$0xff]
      %v1226 = vld [vmem:[%s1175 + $0x19] sm:$0xff]
      %v1227 = vld [vmem:[%s1175 + $0x21] sm:$0xff]
      %v1228 = vld [vmem:[%s1175 + $0x31] sm:$0xff]
      %v1229 = vld [vmem:[%s1175 + $0x39] sm:$0xff]
      %v1230 = vld [vmem:[%s1175 + $0x49] sm:$0xff]
      %v1231 = vld [vmem:[%s1175 + $0x51] sm:$0xff]
      %v1232 = vld [vmem:[%s1175 + $0x61] sm:$0xff]
      %v1233 = vld [vmem:[%s1175 + $0x69] sm:$0xff]
      %v1234 = vld [vmem:[%s1175 + $0x79] sm:$0xff]
      %v1235 = vld [vmem:[%s1175 + $0x81] sm:$0xff]
      %v1236 = vld [vmem:[%s1175 + $0x91] sm:$0xff]
      %v1237 = vld [vmem:[%s1175 + $0x99] sm:$0xff]
      %v1238 = vld [vmem:[%s1175 + $0xa9] sm:$0xff]
      %v1239 = vld [vmem:[%s1175 + $0xb1] sm:$0xff]
      %v1240 = vld [vmem:[%s1175 + $0xc1] sm:$0xff]
      %v1241 = vld [vmem:[%s1175 + $0xc9] sm:$0xff]
      %v1242 = vld [vmem:[%s1175 + $0xd9] sm:$0xff]
      %v1243 = vld [vmem:[%s1175 + $0xe1] sm:$0xff]
      %v1244 = vld [vmem:[%s1175 + $0xf1] sm:$0xff]
      %v1245 = vld [vmem:[%s1175 + $0xf9] sm:$0xff]
      %v1246 = vld [vmem:[%s1175 + $0x109] sm:$0xff]
      %v1247 = vld [vmem:[%s1175 + $0x111] sm:$0xff]
      %v1248 = vld [vmem:[%s1175 + $0x121] sm:$0xff]
      %v1249 = vld [vmem:[%s1175 + $0x129] sm:$0xff]
      %v1250 = vld [vmem:[%s1175 + $0x139] sm:$0xff]
      %v1251 = vld [vmem:[%s1175 + $0x141] sm:$0xff]
      %v1252 = vld [vmem:[%s1175 + $0x151] sm:$0xff]
      %v1253 = vld [vmem:[%s1175 + $0x159] sm:$0xff]
      %v1254 = vld [vmem:[%s1175 + $0x169] sm:$0xff]
      %v1255 = vld [vmem:[%s1175 + $0x171] sm:$0xff]
      %v1256 = vpack.c.bf16 %v1225, %v1224
      %v1257 = vpack.c.bf16 %v1227, %v1226
      %v1258 = vpack.c.bf16 %v1229, %v1228
      %v1259 = vpack.c.bf16 %v1231, %v1230
      %v1260 = vpack.c.bf16 %v1233, %v1232
      %v1261 = vpack.c.bf16 %v1235, %v1234
      %v1262 = vpack.c.bf16 %v1237, %v1236
      %v1263 = vpack.c.bf16 %v1239, %v1238
      %v1264 = vpack.c.bf16 %v1241, %v1240
      %v1265 = vpack.c.bf16 %v1243, %v1242
      %v1266 = vpack.c.bf16 %v1245, %v1244
      %v1267 = vpack.c.bf16 %v1247, %v1246
      %v1268 = vpack.c.bf16 %v1249, %v1248
      %v1269 = vpack.c.bf16 %v1251, %v1250
      %v1270 = vpack.c.bf16 %v1253, %v1252
      %v1271 = vpack.c.bf16 %v1255, %v1254
      %v1272 = vld [vmem:[%s1175 + $0x2] sm:$0xff]
      %v1273 = vld [vmem:[%s1175 + $0xa] sm:$0xff]
      %v1274 = vld [vmem:[%s1175 + $0x1a] sm:$0xff]
      %v1275 = vld [vmem:[%s1175 + $0x22] sm:$0xff]
      %v1276 = vld [vmem:[%s1175 + $0x32] sm:$0xff]
      %v1277 = vld [vmem:[%s1175 + $0x3a] sm:$0xff]
      %v1278 = vld [vmem:[%s1175 + $0x4a] sm:$0xff]
      %v1279 = vld [vmem:[%s1175 + $0x52] sm:$0xff]
      %v1280 = vld [vmem:[%s1175 + $0x62] sm:$0xff]
      %v1281 = vld [vmem:[%s1175 + $0x6a] sm:$0xff]
      %v1282 = vld [vmem:[%s1175 + $0x7a] sm:$0xff]
      %v1283 = vld [vmem:[%s1175 + $0x82] sm:$0xff]
      %v1284 = vld [vmem:[%s1175 + $0x92] sm:$0xff]
      %v1285 = vld [vmem:[%s1175 + $0x9a] sm:$0xff]
      %v1286 = vld [vmem:[%s1175 + $0xaa] sm:$0xff]
      %v1287 = vld [vmem:[%s1175 + $0xb2] sm:$0xff]
      %v1288 = vld [vmem:[%s1175 + $0xc2] sm:$0xff]
      %v1289 = vld [vmem:[%s1175 + $0xca] sm:$0xff]
      %v1290 = vld [vmem:[%s1175 + $0xda] sm:$0xff]
      %v1291 = vld [vmem:[%s1175 + $0xe2] sm:$0xff]
      %v1292 = vld [vmem:[%s1175 + $0xf2] sm:$0xff]
      %v1293 = vld [vmem:[%s1175 + $0xfa] sm:$0xff]
      %v1294 = vld [vmem:[%s1175 + $0x10a] sm:$0xff]
      %v1295 = vld [vmem:[%s1175 + $0x112] sm:$0xff]
      %v1296 = vld [vmem:[%s1175 + $0x122] sm:$0xff]
      %v1297 = vld [vmem:[%s1175 + $0x12a] sm:$0xff]
      %v1298 = vld [vmem:[%s1175 + $0x13a] sm:$0xff]
      %v1299 = vld [vmem:[%s1175 + $0x142] sm:$0xff]
      %v1300 = vld [vmem:[%s1175 + $0x152] sm:$0xff]
      %v1301 = vld [vmem:[%s1175 + $0x15a] sm:$0xff]
      %v1302 = vld [vmem:[%s1175 + $0x16a] sm:$0xff]
      %v1303 = vld [vmem:[%s1175 + $0x172] sm:$0xff]
      %v1304 = vpack.c.bf16 %v1273, %v1272
      %v1305 = vpack.c.bf16 %v1275, %v1274
      %v1306 = vpack.c.bf16 %v1277, %v1276
      %v1307 = vpack.c.bf16 %v1279, %v1278
      %v1308 = vpack.c.bf16 %v1281, %v1280
      %v1309 = vpack.c.bf16 %v1283, %v1282
      %v1310 = vpack.c.bf16 %v1285, %v1284
      %v1311 = vpack.c.bf16 %v1287, %v1286
      %v1312 = vpack.c.bf16 %v1289, %v1288
      %v1313 = vpack.c.bf16 %v1291, %v1290
      %v1314 = vpack.c.bf16 %v1293, %v1292
      %v1315 = vpack.c.bf16 %v1295, %v1294
      %v1316 = vpack.c.bf16 %v1297, %v1296
      %v1317 = vpack.c.bf16 %v1299, %v1298
      %v1318 = vpack.c.bf16 %v1301, %v1300
      %v1319 = vpack.c.bf16 %v1303, %v1302
      %s1320 = scalar_lea.vmem %s264, 192
      %v1321 = vld [vmem:[%s1320] sm:$0xf]
      %v1322 = vld [vmem:[%s1320 + $0x4] sm:$0xf]
      %v1323 = vld [vmem:[%s1320 + $0x8] sm:$0xf]
      %v1324 = vld [vmem:[%s1320 + $0xc] sm:$0xf]
      %v1325 = vld [vmem:[%s1320 + $0x10] sm:$0xf]
      %v1326 = vld [vmem:[%s1320 + $0x14] sm:$0xf]
      %v1327 = vld [vmem:[%s1320 + $0x18] sm:$0xf]
      %v1328 = vld [vmem:[%s1320 + $0x1c] sm:$0xf]
      %v1329 = vld [vmem:[%s1320 + $0x20] sm:$0xf]
      %v1330 = vld [vmem:[%s1320 + $0x24] sm:$0xf]
      %v1331 = vld [vmem:[%s1320 + $0x28] sm:$0xf]
      %v1332 = vld [vmem:[%s1320 + $0x2c] sm:$0xf]
      %v1333 = vld [vmem:[%s1320 + $0x30] sm:$0xf]
      %v1334 = vld [vmem:[%s1320 + $0x34] sm:$0xf]
      %v1335 = vld [vmem:[%s1320 + $0x38] sm:$0xf]
      %v1336 = vld [vmem:[%s1320 + $0x3c] sm:$0xf]
      %v1337 = vld [vmem:[%s1320 + $0x40] sm:$0xf]
      %v1338 = vld [vmem:[%s1320 + $0x44] sm:$0xf]
      %v1339 = vld [vmem:[%s1320 + $0x48] sm:$0xf]
      %v1340 = vld [vmem:[%s1320 + $0x4c] sm:$0xf]
      %v1341 = vld [vmem:[%s1320 + $0x50] sm:$0xf]
      %v1342 = vld [vmem:[%s1320 + $0x54] sm:$0xf]
      %v1343 = vld [vmem:[%s1320 + $0x58] sm:$0xf]
      %v1344 = vld [vmem:[%s1320 + $0x5c] sm:$0xf]
      %v1345 = vld [vmem:[%s1320 + $0x60] sm:$0xf]
      %v1346 = vld [vmem:[%s1320 + $0x64] sm:$0xf]
      %v1347 = vld [vmem:[%s1320 + $0x68] sm:$0xf]
      %v1348 = vld [vmem:[%s1320 + $0x6c] sm:$0xf]
      %v1349 = vld [vmem:[%s1320 + $0x70] sm:$0xf]
      %v1350 = vld [vmem:[%s1320 + $0x74] sm:$0xf]
      %v1351 = vld [vmem:[%s1320 + $0x78] sm:$0xf]
      %v1352 = vld [vmem:[%s1320 + $0x7c] sm:$0xf]
      %v1353 = vld [vmem:[%s1320 + $0x80] sm:$0xf]
      %v1354 = vld [vmem:[%s1320 + $0x84] sm:$0xf]
      %v1355 = vld [vmem:[%s1320 + $0x88] sm:$0xf]
      %v1356 = vld [vmem:[%s1320 + $0x8c] sm:$0xf]
      %v1357 = vld [vmem:[%s1320 + $0x90] sm:$0xf]
      %v1358 = vld [vmem:[%s1320 + $0x94] sm:$0xf]
      %v1359 = vld [vmem:[%s1320 + $0x98] sm:$0xf]
      %v1360 = vld [vmem:[%s1320 + $0x9c] sm:$0xf]
      %v1361 = vld [vmem:[%s1320 + $0xa0] sm:$0xf]
      %v1362 = vld [vmem:[%s1320 + $0xa4] sm:$0xf]
      %v1363 = vld [vmem:[%s1320 + $0xa8] sm:$0xf]
      %v1364 = vld [vmem:[%s1320 + $0xac] sm:$0xf]
      %v1365 = vld [vmem:[%s1320 + $0xb0] sm:$0xf]
      %v1366 = vld [vmem:[%s1320 + $0xb4] sm:$0xf]
      %v1367 = vld [vmem:[%s1320 + $0xb8] sm:$0xf]
      %v1368 = vld [vmem:[%s1320 + $0xbc] sm:$0xf]
      %v1417 = vunpack.c.l.b16 %v1321
      %v1418 = vunpack.c.l.b16 %v1322
      %v1419 = vunpack.c.l.b16 %v1323
      %v1420 = vunpack.c.l.b16 %v1324
      %v1421 = vunpack.c.l.b16 %v1325
      %v1422 = vunpack.c.l.b16 %v1326
      %v1423 = vunpack.c.l.b16 %v1327
      %v1424 = vunpack.c.l.b16 %v1328
      %v1425 = vunpack.c.l.b16 %v1329
      %v1426 = vunpack.c.l.b16 %v1330
      %v1427 = vunpack.c.l.b16 %v1331
      %v1428 = vunpack.c.l.b16 %v1332
      %v1429 = vunpack.c.l.b16 %v1333
      %v1430 = vunpack.c.l.b16 %v1334
      %v1431 = vunpack.c.l.b16 %v1335
      %v1432 = vunpack.c.l.b16 %v1336
      %v1433 = vunpack.c.l.b16 %v1337
      %v1434 = vunpack.c.l.b16 %v1338
      %v1435 = vunpack.c.l.b16 %v1339
      %v1436 = vunpack.c.l.b16 %v1340
      %v1437 = vunpack.c.l.b16 %v1341
      %v1438 = vunpack.c.l.b16 %v1342
      %v1439 = vunpack.c.l.b16 %v1343
      %v1440 = vunpack.c.l.b16 %v1344
      %v1441 = vunpack.c.l.b16 %v1345
      %v1442 = vunpack.c.l.b16 %v1346
      %v1443 = vunpack.c.l.b16 %v1347
      %v1444 = vunpack.c.l.b16 %v1348
      %v1445 = vunpack.c.l.b16 %v1349
      %v1446 = vunpack.c.l.b16 %v1350
      %v1447 = vunpack.c.l.b16 %v1351
      %v1448 = vunpack.c.l.b16 %v1352
      %v1449 = vunpack.c.l.b16 %v1353
      %v1450 = vunpack.c.l.b16 %v1354
      %v1451 = vunpack.c.l.b16 %v1355
      %v1452 = vunpack.c.l.b16 %v1356
      %v1453 = vunpack.c.l.b16 %v1357
      %v1454 = vunpack.c.l.b16 %v1358
      %v1455 = vunpack.c.l.b16 %v1359
      %v1456 = vunpack.c.l.b16 %v1360
      %v1457 = vunpack.c.l.b16 %v1361
      %v1458 = vunpack.c.l.b16 %v1362
      %v1459 = vunpack.c.l.b16 %v1363
      %v1460 = vunpack.c.l.b16 %v1364
      %v1461 = vunpack.c.l.b16 %v1365
      %v1462 = vunpack.c.l.b16 %v1366
      %v1463 = vunpack.c.l.b16 %v1367
      %v1464 = vunpack.c.l.b16 %v1368
      %v1465 = vpack.c.b16 %v1418, %v1417
      %v1466 = vpack.c.b16 %v1420, %v1419
      %v1467 = vpack.c.b16 %v1422, %v1421
      %v1468 = vpack.c.b16 %v1424, %v1423
      %v1469 = vpack.c.b16 %v1426, %v1425
      %v1470 = vpack.c.b16 %v1428, %v1427
      %v1471 = vpack.c.b16 %v1430, %v1429
      %v1472 = vpack.c.b16 %v1432, %v1431
      %v1473 = vpack.c.b16 %v1434, %v1433
      %v1474 = vpack.c.b16 %v1436, %v1435
      %v1475 = vpack.c.b16 %v1438, %v1437
      %v1476 = vpack.c.b16 %v1440, %v1439
      %v1477 = vpack.c.b16 %v1442, %v1441
      %v1478 = vpack.c.b16 %v1444, %v1443
      %v1479 = vpack.c.b16 %v1446, %v1445
      %v1480 = vpack.c.b16 %v1448, %v1447
      %v1481 = vpack.c.b16 %v1450, %v1449
      %v1482 = vpack.c.b16 %v1452, %v1451
      %v1483 = vpack.c.b16 %v1454, %v1453
      %v1484 = vpack.c.b16 %v1456, %v1455
      %v1485 = vpack.c.b16 %v1458, %v1457
      %v1486 = vpack.c.b16 %v1460, %v1459
      %v1487 = vpack.c.b16 %v1462, %v1461
      %v1488 = vpack.c.b16 %v1464, %v1463
      %1513 = vmatprep.subr.bf16.mxu0 0
      %1514 = vmatpush1.bf16.msra.mxu0 %v1472
      %1515 = vmatprep.subr.bf16.mxu0 0
      %1516 = vmatpush1.bf16.msra.mxu0 %v1471
      %1517 = vmatprep.subr.bf16.mxu0 0
      %1518 = vmatpush1.bf16.msra.mxu0 %v1470
      %1519 = vmatprep.subr.bf16.mxu0 0
      %1520 = vmatpush1.bf16.msra.mxu0 %v1469
      %1521 = vmatprep.subr.bf16.mxu0 0
      %1522 = vmatpush1.bf16.msra.mxu0 %v1468
      %1523 = vmatprep.subr.bf16.mxu0 0
      %1524 = vmatpush1.bf16.msra.mxu0 %v1467
      %1525 = vmatprep.subr.bf16.mxu0 0
      %1526 = vmatpush1.bf16.msra.mxu0 %v1466
      %1527 = vmatprep.subr.bf16.mxu0 0
      %1528 = vmatpush1.bf16.msra.mxu0 %v1465
      %1529 = vmatprep.subr.bf16.mxu0 0
      %1530 = vmatpush2.bf16.msra.mxu0 %v1480
      %1531 = vmatprep.subr.bf16.mxu0 0
      %1532 = vmatpush2.bf16.msra.mxu0 %v1479
      %1533 = vmatprep.subr.bf16.mxu0 0
      %1534 = vmatpush2.bf16.msra.mxu0 %v1478
      %1535 = vmatprep.subr.bf16.mxu0 0
      %1536 = vmatpush2.bf16.msra.mxu0 %v1477
      %1537 = vmatprep.subr.bf16.mxu0 0
      %1538 = vmatpush2.bf16.msra.mxu0 %v1476
      %1539 = vmatprep.subr.bf16.mxu0 0
      %1540 = vmatpush2.bf16.msra.mxu0 %v1475
      %1541 = vmatprep.subr.bf16.mxu0 0
      %1542 = vmatpush2.bf16.msra.mxu0 %v1474
      %1543 = vmatprep.subr.bf16.mxu0 0
      %1544 = vmatpush2.bf16.msra.mxu0 %v1473
      %1545 = vmatprep.mubr.bf16.mxu0 %v1256
      %1546 = vmatmul.mubr.bf16.gmra.mxu0 %v1208
      %v1547 = vpop.f32.mrf.mxu0
      %v1548 = vadd.f32 0.0, %v1547
      %v1549 = vpop.f32.mrf.mxu0
      %v1550 = vpop.f32.mrf.mxu0
      %v1551 = vadd.f32 0.0, %v1550
      %v1552 = vpop.f32.mrf.mxu0
      %1553 = vmatprep.mubr.bf16.mxu0 %v1257
      %1554 = vmatmul.mubr.bf16.gmra.mxu0 %v1209
      %v1555 = vpop.f32.mrf.mxu0
      %v1556 = vadd.f32 0.0, %v1555
      %v1557 = vpop.f32.mrf.mxu0
      %v1558 = vpop.f32.mrf.mxu0
      %v1559 = vadd.f32 0.0, %v1558
      %v1560 = vpop.f32.mrf.mxu0
      %1561 = vmatprep.mubr.bf16.mxu0 %v1258
      %1562 = vmatmul.mubr.bf16.gmra.mxu0 %v1210
      %v1563 = vpop.f32.mrf.mxu0
      %v1564 = vadd.f32 0.0, %v1563
      %v1565 = vpop.f32.mrf.mxu0
      %v1566 = vpop.f32.mrf.mxu0
      %v1567 = vadd.f32 0.0, %v1566
      %v1568 = vpop.f32.mrf.mxu0
      %1569 = vmatprep.mubr.bf16.mxu0 %v1259
      %1570 = vmatmul.mubr.bf16.gmra.mxu0 %v1211
      %v1571 = vpop.f32.mrf.mxu0
      %v1572 = vadd.f32 0.0, %v1571
      %v1573 = vpop.f32.mrf.mxu0
      %v1574 = vpop.f32.mrf.mxu0
      %v1575 = vadd.f32 0.0, %v1574
      %v1576 = vpop.f32.mrf.mxu0
      %1577 = vmatprep.mubr.bf16.mxu0 %v1260
      %1578 = vmatmul.mubr.bf16.gmra.mxu0 %v1212
      %v1579 = vpop.f32.mrf.mxu0
      %v1580 = vadd.f32 0.0, %v1579
      %v1581 = vpop.f32.mrf.mxu0
      %v1582 = vpop.f32.mrf.mxu0
      %v1583 = vadd.f32 0.0, %v1582
      %v1584 = vpop.f32.mrf.mxu0
      %1585 = vmatprep.mubr.bf16.mxu0 %v1261
      %1586 = vmatmul.mubr.bf16.gmra.mxu0 %v1213
      %v1587 = vpop.f32.mrf.mxu0
      %v1588 = vadd.f32 0.0, %v1587
      %v1589 = vpop.f32.mrf.mxu0
      %v1590 = vpop.f32.mrf.mxu0
      %v1591 = vadd.f32 0.0, %v1590
      %v1592 = vpop.f32.mrf.mxu0
      %1593 = vmatprep.mubr.bf16.mxu0 %v1262
      %1594 = vmatmul.mubr.bf16.gmra.mxu0 %v1214
      %v1595 = vpop.f32.mrf.mxu0
      %v1596 = vadd.f32 0.0, %v1595
      %v1597 = vpop.f32.mrf.mxu0
      %v1598 = vpop.f32.mrf.mxu0
      %v1599 = vadd.f32 0.0, %v1598
      %v1600 = vpop.f32.mrf.mxu0
      %1601 = vmatprep.mubr.bf16.mxu0 %v1263
      %1602 = vmatmul.mubr.bf16.gmra.mxu0 %v1215
      %v1603 = vpop.f32.mrf.mxu0
      %v1604 = vadd.f32 0.0, %v1603
      %v1605 = vpop.f32.mrf.mxu0
      %v1606 = vpop.f32.mrf.mxu0
      %v1607 = vadd.f32 0.0, %v1606
      %v1608 = vpop.f32.mrf.mxu0
      %1609 = vmatprep.mubr.bf16.mxu0 %v1264
      %1610 = vmatmul.mubr.bf16.gmra.mxu0 %v1216
      %v1611 = vpop.f32.mrf.mxu0
      %v1612 = vadd.f32 0.0, %v1611
      %v1613 = vpop.f32.mrf.mxu0
      %v1614 = vpop.f32.mrf.mxu0
      %v1615 = vadd.f32 0.0, %v1614
      %v1616 = vpop.f32.mrf.mxu0
      %1617 = vmatprep.mubr.bf16.mxu0 %v1265
      %1618 = vmatmul.mubr.bf16.gmra.mxu0 %v1217
      %v1619 = vpop.f32.mrf.mxu0
      %v1620 = vadd.f32 0.0, %v1619
      %v1621 = vpop.f32.mrf.mxu0
      %v1622 = vpop.f32.mrf.mxu0
      %v1623 = vadd.f32 0.0, %v1622
      %v1624 = vpop.f32.mrf.mxu0
      %1625 = vmatprep.mubr.bf16.mxu0 %v1266
      %1626 = vmatmul.mubr.bf16.gmra.mxu0 %v1218
      %v1627 = vpop.f32.mrf.mxu0
      %v1628 = vadd.f32 0.0, %v1627
      %v1629 = vpop.f32.mrf.mxu0
      %v1630 = vpop.f32.mrf.mxu0
      %v1631 = vadd.f32 0.0, %v1630
      %v1632 = vpop.f32.mrf.mxu0
      %1633 = vmatprep.mubr.bf16.mxu0 %v1267
      %1634 = vmatmul.mubr.bf16.gmra.mxu0 %v1219
      %v1635 = vpop.f32.mrf.mxu0
      %v1636 = vadd.f32 0.0, %v1635
      %v1637 = vpop.f32.mrf.mxu0
      %v1638 = vpop.f32.mrf.mxu0
      %v1639 = vadd.f32 0.0, %v1638
      %v1640 = vpop.f32.mrf.mxu0
      %1641 = vmatprep.mubr.bf16.mxu0 %v1268
      %1642 = vmatmul.mubr.bf16.gmra.mxu0 %v1220
      %v1643 = vpop.f32.mrf.mxu0
      %v1644 = vadd.f32 0.0, %v1643
      %v1645 = vpop.f32.mrf.mxu0
      %v1646 = vpop.f32.mrf.mxu0
      %v1647 = vadd.f32 0.0, %v1646
      %v1648 = vpop.f32.mrf.mxu0
      %1649 = vmatprep.mubr.bf16.mxu0 %v1269
      %1650 = vmatmul.mubr.bf16.gmra.mxu0 %v1221
      %v1651 = vpop.f32.mrf.mxu0
      %v1652 = vadd.f32 0.0, %v1651
      %v1653 = vpop.f32.mrf.mxu0
      %v1654 = vpop.f32.mrf.mxu0
      %v1655 = vadd.f32 0.0, %v1654
      %v1656 = vpop.f32.mrf.mxu0
      %1657 = vmatprep.mubr.bf16.mxu0 %v1270
      %1658 = vmatmul.mubr.bf16.gmra.mxu0 %v1222
      %v1659 = vpop.f32.mrf.mxu0
      %v1660 = vadd.f32 0.0, %v1659
      %v1661 = vpop.f32.mrf.mxu0
      %v1662 = vpop.f32.mrf.mxu0
      %v1663 = vadd.f32 0.0, %v1662
      %v1664 = vpop.f32.mrf.mxu0
      %1665 = vmatprep.mubr.bf16.mxu0 %v1271
      %1666 = vmatmul.mubr.bf16.gmra.mxu0 %v1223
      %v1667 = vpop.f32.mrf.mxu0
      %v1668 = vadd.f32 0.0, %v1667
      %v1669 = vpop.f32.mrf.mxu0
      %v1670 = vpop.f32.mrf.mxu0
      %v1671 = vadd.f32 0.0, %v1670
      %v1672 = vpop.f32.mrf.mxu0
      %1673 = vdwg.mxu0
      %1674 = vmatprep.subr.bf16.mxu0 0
      %1675 = vmatpush1.bf16.msra.mxu0 %v1488
      %1676 = vmatprep.subr.bf16.mxu0 0
      %1677 = vmatpush1.bf16.msra.mxu0 %v1487
      %1678 = vmatprep.subr.bf16.mxu0 0
      %1679 = vmatpush1.bf16.msra.mxu0 %v1486
      %1680 = vmatprep.subr.bf16.mxu0 0
      %1681 = vmatpush1.bf16.msra.mxu0 %v1485
      %1682 = vmatprep.subr.bf16.mxu0 0
      %1683 = vmatpush1.bf16.msra.mxu0 %v1484
      %1684 = vmatprep.subr.bf16.mxu0 0
      %1685 = vmatpush1.bf16.msra.mxu0 %v1483
      %1686 = vmatprep.subr.bf16.mxu0 0
      %1687 = vmatpush1.bf16.msra.mxu0 %v1482
      %1688 = vmatprep.subr.bf16.mxu0 0
      %1689 = vmatpush1.bf16.msra.mxu0 %v1481
      %1690 = vmatprep.subr.bf16.mxu0 0
      %1691 = vmatpush2.bf16.msra.mxu0 0
      %1692 = vmatprep.subr.bf16.mxu0 0
      %1693 = vmatpush2.bf16.msra.mxu0 0
      %1694 = vmatprep.subr.bf16.mxu0 0
      %1695 = vmatpush2.bf16.msra.mxu0 0
      %1696 = vmatprep.subr.bf16.mxu0 0
      %1697 = vmatpush2.bf16.msra.mxu0 0
      %1698 = vmatprep.subr.bf16.mxu0 0
      %1699 = vmatpush2.bf16.msra.mxu0 0
      %1700 = vmatprep.subr.bf16.mxu0 0
      %1701 = vmatpush2.bf16.msra.mxu0 0
      %1702 = vmatprep.subr.bf16.mxu0 0
      %1703 = vmatpush2.bf16.msra.mxu0 0
      %1704 = vmatprep.subr.bf16.mxu0 0
      %1705 = vmatpush2.bf16.msra.mxu0 0
      %1706 = vmatprep.mubr.bf16.mxu0 0
      %1707 = vmatmul.mubr.bf16.gmra.mxu0 %v1304
      %v1708 = vpop.f32.mrf.mxu0
      %v1709 = vadd.f32 %v1548, %v1708
      %v1710 = vpop.f32.mrf.mxu0
      %v1711 = vpop.f32.mrf.mxu0
      %v1712 = vadd.f32 %v1551, %v1711
      %v1713 = vpop.f32.mrf.mxu0
      %1714 = vmatprep.mubr.bf16.mxu0 0
      %1715 = vmatmul.mubr.bf16.gmra.mxu0 %v1305
      %v1716 = vpop.f32.mrf.mxu0
      %v1717 = vadd.f32 %v1556, %v1716
      %v1718 = vpop.f32.mrf.mxu0
      %v1719 = vpop.f32.mrf.mxu0
      %v1720 = vadd.f32 %v1559, %v1719
      %v1721 = vpop.f32.mrf.mxu0
      %1722 = vmatprep.mubr.bf16.mxu0 0
      %1723 = vmatmul.mubr.bf16.gmra.mxu0 %v1306
      %v1724 = vpop.f32.mrf.mxu0
      %v1725 = vadd.f32 %v1564, %v1724
      %v1726 = vpop.f32.mrf.mxu0
      %v1727 = vpop.f32.mrf.mxu0
      %v1728 = vadd.f32 %v1567, %v1727
      %v1729 = vpop.f32.mrf.mxu0
      %1730 = vmatprep.mubr.bf16.mxu0 0
      %1731 = vmatmul.mubr.bf16.gmra.mxu0 %v1307
      %v1732 = vpop.f32.mrf.mxu0
      %v1733 = vadd.f32 %v1572, %v1732
      %v1734 = vpop.f32.mrf.mxu0
      %v1735 = vpop.f32.mrf.mxu0
      %v1736 = vadd.f32 %v1575, %v1735
      %v1737 = vpop.f32.mrf.mxu0
      %1738 = vmatprep.mubr.bf16.mxu0 0
      %1739 = vmatmul.mubr.bf16.gmra.mxu0 %v1308
      %v1740 = vpop.f32.mrf.mxu0
      %v1741 = vadd.f32 %v1580, %v1740
      %v1742 = vpop.f32.mrf.mxu0
      %v1743 = vpop.f32.mrf.mxu0
      %v1744 = vadd.f32 %v1583, %v1743
      %v1745 = vpop.f32.mrf.mxu0
      %1746 = vmatprep.mubr.bf16.mxu0 0
      %1747 = vmatmul.mubr.bf16.gmra.mxu0 %v1309
      %v1748 = vpop.f32.mrf.mxu0
      %v1749 = vadd.f32 %v1588, %v1748
      %v1750 = vpop.f32.mrf.mxu0
      %v1751 = vpop.f32.mrf.mxu0
      %v1752 = vadd.f32 %v1591, %v1751
      %v1753 = vpop.f32.mrf.mxu0
      %1754 = vmatprep.mubr.bf16.mxu0 0
      %1755 = vmatmul.mubr.bf16.gmra.mxu0 %v1310
      %v1756 = vpop.f32.mrf.mxu0
      %v1757 = vadd.f32 %v1596, %v1756
      %v1758 = vpop.f32.mrf.mxu0
      %v1759 = vpop.f32.mrf.mxu0
      %v1760 = vadd.f32 %v1599, %v1759
      %v1761 = vpop.f32.mrf.mxu0
      %1762 = vmatprep.mubr.bf16.mxu0 0
      %1763 = vmatmul.mubr.bf16.gmra.mxu0 %v1311
      %v1764 = vpop.f32.mrf.mxu0
      %v1765 = vadd.f32 %v1604, %v1764
      %v1766 = vpop.f32.mrf.mxu0
      %v1767 = vpop.f32.mrf.mxu0
      %v1768 = vadd.f32 %v1607, %v1767
      %v1769 = vpop.f32.mrf.mxu0
      %1770 = vmatprep.mubr.bf16.mxu0 0
      %1771 = vmatmul.mubr.bf16.gmra.mxu0 %v1312
      %v1772 = vpop.f32.mrf.mxu0
      %v1773 = vadd.f32 %v1612, %v1772
      %v1774 = vpop.f32.mrf.mxu0
      %v1775 = vpop.f32.mrf.mxu0
      %v1776 = vadd.f32 %v1615, %v1775
      %v1777 = vpop.f32.mrf.mxu0
      %1778 = vmatprep.mubr.bf16.mxu0 0
      %1779 = vmatmul.mubr.bf16.gmra.mxu0 %v1313
      %v1780 = vpop.f32.mrf.mxu0
      %v1781 = vadd.f32 %v1620, %v1780
      %v1782 = vpop.f32.mrf.mxu0
      %v1783 = vpop.f32.mrf.mxu0
      %v1784 = vadd.f32 %v1623, %v1783
      %v1785 = vpop.f32.mrf.mxu0
      %1786 = vmatprep.mubr.bf16.mxu0 0
      %1787 = vmatmul.mubr.bf16.gmra.mxu0 %v1314
      %v1788 = vpop.f32.mrf.mxu0
      %v1789 = vadd.f32 %v1628, %v1788
      %v1790 = vpop.f32.mrf.mxu0
      %v1791 = vpop.f32.mrf.mxu0
      %v1792 = vadd.f32 %v1631, %v1791
      %v1793 = vpop.f32.mrf.mxu0
      %1794 = vmatprep.mubr.bf16.mxu0 0
      %1795 = vmatmul.mubr.bf16.gmra.mxu0 %v1315
      %v1796 = vpop.f32.mrf.mxu0
      %v1797 = vadd.f32 %v1636, %v1796
      %v1798 = vpop.f32.mrf.mxu0
      %v1799 = vpop.f32.mrf.mxu0
      %v1800 = vadd.f32 %v1639, %v1799
      %v1801 = vpop.f32.mrf.mxu0
      %1802 = vmatprep.mubr.bf16.mxu0 0
      %1803 = vmatmul.mubr.bf16.gmra.mxu0 %v1316
      %v1804 = vpop.f32.mrf.mxu0
      %v1805 = vadd.f32 %v1644, %v1804
      %v1806 = vpop.f32.mrf.mxu0
      %v1807 = vpop.f32.mrf.mxu0
      %v1808 = vadd.f32 %v1647, %v1807
      %v1809 = vpop.f32.mrf.mxu0
      %1810 = vmatprep.mubr.bf16.mxu0 0
      %1811 = vmatmul.mubr.bf16.gmra.mxu0 %v1317
      %v1812 = vpop.f32.mrf.mxu0
      %v1813 = vadd.f32 %v1652, %v1812
      %v1814 = vpop.f32.mrf.mxu0
      %v1815 = vpop.f32.mrf.mxu0
      %v1816 = vadd.f32 %v1655, %v1815
      %v1817 = vpop.f32.mrf.mxu0
      %1818 = vmatprep.mubr.bf16.mxu0 0
      %1819 = vmatmul.mubr.bf16.gmra.mxu0 %v1318
      %v1820 = vpop.f32.mrf.mxu0
      %v1821 = vadd.f32 %v1660, %v1820
      %v1822 = vpop.f32.mrf.mxu0
      %v1823 = vpop.f32.mrf.mxu0
      %v1824 = vadd.f32 %v1663, %v1823
      %v1825 = vpop.f32.mrf.mxu0
      %1826 = vmatprep.mubr.bf16.mxu0 0
      %1827 = vmatmul.mubr.bf16.gmra.mxu0 %v1319
      %v1828 = vpop.f32.mrf.mxu0
      %v1829 = vadd.f32 %v1668, %v1828
      %v1830 = vpop.f32.mrf.mxu0
      %v1831 = vpop.f32.mrf.mxu0
      %v1832 = vadd.f32 %v1671, %v1831
      %v1833 = vpop.f32.mrf.mxu0
      %1834 = vdwg.mxu0
      %v1835 = vadd.f32 %v1049, %v1709
      %v1836 = vadd.f32 %v1052, %v1712
      %v1837 = vadd.f32 %v1057, %v1717
      %v1838 = vadd.f32 %v1060, %v1720
      %v1839 = vadd.f32 %v1065, %v1725
      %v1840 = vadd.f32 %v1068, %v1728
      %v1841 = vadd.f32 %v1073, %v1733
      %v1842 = vadd.f32 %v1076, %v1736
      %v1843 = vadd.f32 %v1081, %v1741
      %v1844 = vadd.f32 %v1084, %v1744
      %v1845 = vadd.f32 %v1089, %v1749
      %v1846 = vadd.f32 %v1092, %v1752
      %v1847 = vadd.f32 %v1097, %v1757
      %v1848 = vadd.f32 %v1100, %v1760
      %v1849 = vadd.f32 %v1105, %v1765
      %v1850 = vadd.f32 %v1108, %v1768
      %v1851 = vadd.f32 %v1113, %v1773
      %v1852 = vadd.f32 %v1116, %v1776
      %v1853 = vadd.f32 %v1121, %v1781
      %v1854 = vadd.f32 %v1124, %v1784
      %v1855 = vadd.f32 %v1129, %v1789
      %v1856 = vadd.f32 %v1132, %v1792
      %v1857 = vadd.f32 %v1137, %v1797
      %v1858 = vadd.f32 %v1140, %v1800
      %v1859 = vadd.f32 %v1145, %v1805
      %v1860 = vadd.f32 %v1148, %v1808
      %v1861 = vadd.f32 %v1153, %v1813
      %v1862 = vadd.f32 %v1156, %v1816
      %v1863 = vadd.f32 %v1161, %v1821
      %v1864 = vadd.f32 %v1164, %v1824
      %v1865 = vadd.f32 %v1169, %v1829
      %v1866 = vadd.f32 %v1172, %v1832
      %s1867 = scalar_lea.vmem [#allocation2], 48
      %v1868 = vld [vmem:[%s1867] sm:$0xff]
      %v1869 = vld [vmem:[%s1867 + $0x8] sm:$0xff]
      %v1870 = vld [vmem:[%s1867 + $0x18] sm:$0xff]
      %v1871 = vld [vmem:[%s1867 + $0x20] sm:$0xff]
      %v1872 = vld [vmem:[%s1867 + $0x30] sm:$0xff]
      %v1873 = vld [vmem:[%s1867 + $0x38] sm:$0xff]
      %v1874 = vld [vmem:[%s1867 + $0x48] sm:$0xff]
      %v1875 = vld [vmem:[%s1867 + $0x50] sm:$0xff]
      %v1876 = vld [vmem:[%s1867 + $0x60] sm:$0xff]
      %v1877 = vld [vmem:[%s1867 + $0x68] sm:$0xff]
      %v1878 = vld [vmem:[%s1867 + $0x78] sm:$0xff]
      %v1879 = vld [vmem:[%s1867 + $0x80] sm:$0xff]
      %v1880 = vld [vmem:[%s1867 + $0x90] sm:$0xff]
      %v1881 = vld [vmem:[%s1867 + $0x98] sm:$0xff]
      %v1882 = vld [vmem:[%s1867 + $0xa8] sm:$0xff]
      %v1883 = vld [vmem:[%s1867 + $0xb0] sm:$0xff]
      %v1884 = vld [vmem:[%s1867 + $0xc0] sm:$0xff]
      %v1885 = vld [vmem:[%s1867 + $0xc8] sm:$0xff]
      %v1886 = vld [vmem:[%s1867 + $0xd8] sm:$0xff]
      %v1887 = vld [vmem:[%s1867 + $0xe0] sm:$0xff]
      %v1888 = vld [vmem:[%s1867 + $0xf0] sm:$0xff]
      %v1889 = vld [vmem:[%s1867 + $0xf8] sm:$0xff]
      %v1890 = vld [vmem:[%s1867 + $0x108] sm:$0xff]
      %v1891 = vld [vmem:[%s1867 + $0x110] sm:$0xff]
      %v1892 = vld [vmem:[%s1867 + $0x120] sm:$0xff]
      %v1893 = vld [vmem:[%s1867 + $0x128] sm:$0xff]
      %v1894 = vld [vmem:[%s1867 + $0x138] sm:$0xff]
      %v1895 = vld [vmem:[%s1867 + $0x140] sm:$0xff]
      %v1896 = vld [vmem:[%s1867 + $0x150] sm:$0xff]
      %v1897 = vld [vmem:[%s1867 + $0x158] sm:$0xff]
      %v1898 = vld [vmem:[%s1867 + $0x168] sm:$0xff]
      %v1899 = vld [vmem:[%s1867 + $0x170] sm:$0xff]
      %v1900 = vpack.c.bf16 %v1869, %v1868
      %v1901 = vpack.c.bf16 %v1871, %v1870
      %v1902 = vpack.c.bf16 %v1873, %v1872
      %v1903 = vpack.c.bf16 %v1875, %v1874
      %v1904 = vpack.c.bf16 %v1877, %v1876
      %v1905 = vpack.c.bf16 %v1879, %v1878
      %v1906 = vpack.c.bf16 %v1881, %v1880
      %v1907 = vpack.c.bf16 %v1883, %v1882
      %v1908 = vpack.c.bf16 %v1885, %v1884
      %v1909 = vpack.c.bf16 %v1887, %v1886
      %v1910 = vpack.c.bf16 %v1889, %v1888
      %v1911 = vpack.c.bf16 %v1891, %v1890
      %v1912 = vpack.c.bf16 %v1893, %v1892
      %v1913 = vpack.c.bf16 %v1895, %v1894
      %v1914 = vpack.c.bf16 %v1897, %v1896
      %v1915 = vpack.c.bf16 %v1899, %v1898
      %v1916 = vld [vmem:[%s1867 + $0x1] sm:$0xff]
      %v1917 = vld [vmem:[%s1867 + $0x9] sm:$0xff]
      %v1918 = vld [vmem:[%s1867 + $0x19] sm:$0xff]
      %v1919 = vld [vmem:[%s1867 + $0x21] sm:$0xff]
      %v1920 = vld [vmem:[%s1867 + $0x31] sm:$0xff]
      %v1921 = vld [vmem:[%s1867 + $0x39] sm:$0xff]
      %v1922 = vld [vmem:[%s1867 + $0x49] sm:$0xff]
      %v1923 = vld [vmem:[%s1867 + $0x51] sm:$0xff]
      %v1924 = vld [vmem:[%s1867 + $0x61] sm:$0xff]
      %v1925 = vld [vmem:[%s1867 + $0x69] sm:$0xff]
      %v1926 = vld [vmem:[%s1867 + $0x79] sm:$0xff]
      %v1927 = vld [vmem:[%s1867 + $0x81] sm:$0xff]
      %v1928 = vld [vmem:[%s1867 + $0x91] sm:$0xff]
      %v1929 = vld [vmem:[%s1867 + $0x99] sm:$0xff]
      %v1930 = vld [vmem:[%s1867 + $0xa9] sm:$0xff]
      %v1931 = vld [vmem:[%s1867 + $0xb1] sm:$0xff]
      %v1932 = vld [vmem:[%s1867 + $0xc1] sm:$0xff]
      %v1933 = vld [vmem:[%s1867 + $0xc9] sm:$0xff]
      %v1934 = vld [vmem:[%s1867 + $0xd9] sm:$0xff]
      %v1935 = vld [vmem:[%s1867 + $0xe1] sm:$0xff]
      %v1936 = vld [vmem:[%s1867 + $0xf1] sm:$0xff]
      %v1937 = vld [vmem:[%s1867 + $0xf9] sm:$0xff]
      %v1938 = vld [vmem:[%s1867 + $0x109] sm:$0xff]
      %v1939 = vld [vmem:[%s1867 + $0x111] sm:$0xff]
      %v1940 = vld [vmem:[%s1867 + $0x121] sm:$0xff]
      %v1941 = vld [vmem:[%s1867 + $0x129] sm:$0xff]
      %v1942 = vld [vmem:[%s1867 + $0x139] sm:$0xff]
      %v1943 = vld [vmem:[%s1867 + $0x141] sm:$0xff]
      %v1944 = vld [vmem:[%s1867 + $0x151] sm:$0xff]
      %v1945 = vld [vmem:[%s1867 + $0x159] sm:$0xff]
      %v1946 = vld [vmem:[%s1867 + $0x169] sm:$0xff]
      %v1947 = vld [vmem:[%s1867 + $0x171] sm:$0xff]
      %v1948 = vpack.c.bf16 %v1917, %v1916
      %v1949 = vpack.c.bf16 %v1919, %v1918
      %v1950 = vpack.c.bf16 %v1921, %v1920
      %v1951 = vpack.c.bf16 %v1923, %v1922
      %v1952 = vpack.c.bf16 %v1925, %v1924
      %v1953 = vpack.c.bf16 %v1927, %v1926
      %v1954 = vpack.c.bf16 %v1929, %v1928
      %v1955 = vpack.c.bf16 %v1931, %v1930
      %v1956 = vpack.c.bf16 %v1933, %v1932
      %v1957 = vpack.c.bf16 %v1935, %v1934
      %v1958 = vpack.c.bf16 %v1937, %v1936
      %v1959 = vpack.c.bf16 %v1939, %v1938
      %v1960 = vpack.c.bf16 %v1941, %v1940
      %v1961 = vpack.c.bf16 %v1943, %v1942
      %v1962 = vpack.c.bf16 %v1945, %v1944
      %v1963 = vpack.c.bf16 %v1947, %v1946
      %v1964 = vld [vmem:[%s1867 + $0x2] sm:$0xff]
      %v1965 = vld [vmem:[%s1867 + $0xa] sm:$0xff]
      %v1966 = vld [vmem:[%s1867 + $0x1a] sm:$0xff]
      %v1967 = vld [vmem:[%s1867 + $0x22] sm:$0xff]
      %v1968 = vld [vmem:[%s1867 + $0x32] sm:$0xff]
      %v1969 = vld [vmem:[%s1867 + $0x3a] sm:$0xff]
      %v1970 = vld [vmem:[%s1867 + $0x4a] sm:$0xff]
      %v1971 = vld [vmem:[%s1867 + $0x52] sm:$0xff]
      %v1972 = vld [vmem:[%s1867 + $0x62] sm:$0xff]
      %v1973 = vld [vmem:[%s1867 + $0x6a] sm:$0xff]
      %v1974 = vld [vmem:[%s1867 + $0x7a] sm:$0xff]
      %v1975 = vld [vmem:[%s1867 + $0x82] sm:$0xff]
      %v1976 = vld [vmem:[%s1867 + $0x92] sm:$0xff]
      %v1977 = vld [vmem:[%s1867 + $0x9a] sm:$0xff]
      %v1978 = vld [vmem:[%s1867 + $0xaa] sm:$0xff]
      %v1979 = vld [vmem:[%s1867 + $0xb2] sm:$0xff]
      %v1980 = vld [vmem:[%s1867 + $0xc2] sm:$0xff]
      %v1981 = vld [vmem:[%s1867 + $0xca] sm:$0xff]
      %v1982 = vld [vmem:[%s1867 + $0xda] sm:$0xff]
      %v1983 = vld [vmem:[%s1867 + $0xe2] sm:$0xff]
      %v1984 = vld [vmem:[%s1867 + $0xf2] sm:$0xff]
      %v1985 = vld [vmem:[%s1867 + $0xfa] sm:$0xff]
      %v1986 = vld [vmem:[%s1867 + $0x10a] sm:$0xff]
      %v1987 = vld [vmem:[%s1867 + $0x112] sm:$0xff]
      %v1988 = vld [vmem:[%s1867 + $0x122] sm:$0xff]
      %v1989 = vld [vmem:[%s1867 + $0x12a] sm:$0xff]
      %v1990 = vld [vmem:[%s1867 + $0x13a] sm:$0xff]
      %v1991 = vld [vmem:[%s1867 + $0x142] sm:$0xff]
      %v1992 = vld [vmem:[%s1867 + $0x152] sm:$0xff]
      %v1993 = vld [vmem:[%s1867 + $0x15a] sm:$0xff]
      %v1994 = vld [vmem:[%s1867 + $0x16a] sm:$0xff]
      %v1995 = vld [vmem:[%s1867 + $0x172] sm:$0xff]
      %v1996 = vpack.c.bf16 %v1965, %v1964
      %v1997 = vpack.c.bf16 %v1967, %v1966
      %v1998 = vpack.c.bf16 %v1969, %v1968
      %v1999 = vpack.c.bf16 %v1971, %v1970
      %v2000 = vpack.c.bf16 %v1973, %v1972
      %v2001 = vpack.c.bf16 %v1975, %v1974
      %v2002 = vpack.c.bf16 %v1977, %v1976
      %v2003 = vpack.c.bf16 %v1979, %v1978
      %v2004 = vpack.c.bf16 %v1981, %v1980
      %v2005 = vpack.c.bf16 %v1983, %v1982
      %v2006 = vpack.c.bf16 %v1985, %v1984
      %v2007 = vpack.c.bf16 %v1987, %v1986
      %v2008 = vpack.c.bf16 %v1989, %v1988
      %v2009 = vpack.c.bf16 %v1991, %v1990
      %v2010 = vpack.c.bf16 %v1993, %v1992
      %v2011 = vpack.c.bf16 %v1995, %v1994
      %s2012 = scalar_lea.vmem %s264, 384
      %v2013 = vld [vmem:[%s2012] sm:$0xf]
      %v2014 = vld [vmem:[%s2012 + $0x4] sm:$0xf]
      %v2015 = vld [vmem:[%s2012 + $0x8] sm:$0xf]
      %v2016 = vld [vmem:[%s2012 + $0xc] sm:$0xf]
      %v2017 = vld [vmem:[%s2012 + $0x10] sm:$0xf]
      %v2018 = vld [vmem:[%s2012 + $0x14] sm:$0xf]
      %v2019 = vld [vmem:[%s2012 + $0x18] sm:$0xf]
      %v2020 = vld [vmem:[%s2012 + $0x1c] sm:$0xf]
      %v2021 = vld [vmem:[%s2012 + $0x20] sm:$0xf]
      %v2022 = vld [vmem:[%s2012 + $0x24] sm:$0xf]
      %v2023 = vld [vmem:[%s2012 + $0x28] sm:$0xf]
      %v2024 = vld [vmem:[%s2012 + $0x2c] sm:$0xf]
      %v2025 = vld [vmem:[%s2012 + $0x30] sm:$0xf]
      %v2026 = vld [vmem:[%s2012 + $0x34] sm:$0xf]
      %v2027 = vld [vmem:[%s2012 + $0x38] sm:$0xf]
      %v2028 = vld [vmem:[%s2012 + $0x3c] sm:$0xf]
      %v2029 = vld [vmem:[%s2012 + $0x40] sm:$0xf]
      %v2030 = vld [vmem:[%s2012 + $0x44] sm:$0xf]
      %v2031 = vld [vmem:[%s2012 + $0x48] sm:$0xf]
      %v2032 = vld [vmem:[%s2012 + $0x4c] sm:$0xf]
      %v2033 = vld [vmem:[%s2012 + $0x50] sm:$0xf]
      %v2034 = vld [vmem:[%s2012 + $0x54] sm:$0xf]
      %v2035 = vld [vmem:[%s2012 + $0x58] sm:$0xf]
      %v2036 = vld [vmem:[%s2012 + $0x5c] sm:$0xf]
      %v2037 = vld [vmem:[%s2012 + $0x60] sm:$0xf]
      %v2038 = vld [vmem:[%s2012 + $0x64] sm:$0xf]
      %v2039 = vld [vmem:[%s2012 + $0x68] sm:$0xf]
      %v2040 = vld [vmem:[%s2012 + $0x6c] sm:$0xf]
      %v2041 = vld [vmem:[%s2012 + $0x70] sm:$0xf]
      %v2042 = vld [vmem:[%s2012 + $0x74] sm:$0xf]
      %v2043 = vld [vmem:[%s2012 + $0x78] sm:$0xf]
      %v2044 = vld [vmem:[%s2012 + $0x7c] sm:$0xf]
      %v2045 = vld [vmem:[%s2012 + $0x80] sm:$0xf]
      %v2046 = vld [vmem:[%s2012 + $0x84] sm:$0xf]
      %v2047 = vld [vmem:[%s2012 + $0x88] sm:$0xf]
      %v2048 = vld [vmem:[%s2012 + $0x8c] sm:$0xf]
      %v2049 = vld [vmem:[%s2012 + $0x90] sm:$0xf]
      %v2050 = vld [vmem:[%s2012 + $0x94] sm:$0xf]
      %v2051 = vld [vmem:[%s2012 + $0x98] sm:$0xf]
      %v2052 = vld [vmem:[%s2012 + $0x9c] sm:$0xf]
      %v2053 = vld [vmem:[%s2012 + $0xa0] sm:$0xf]
      %v2054 = vld [vmem:[%s2012 + $0xa4] sm:$0xf]
      %v2055 = vld [vmem:[%s2012 + $0xa8] sm:$0xf]
      %v2056 = vld [vmem:[%s2012 + $0xac] sm:$0xf]
      %v2057 = vld [vmem:[%s2012 + $0xb0] sm:$0xf]
      %v2058 = vld [vmem:[%s2012 + $0xb4] sm:$0xf]
      %v2059 = vld [vmem:[%s2012 + $0xb8] sm:$0xf]
      %v2060 = vld [vmem:[%s2012 + $0xbc] sm:$0xf]
      %v2109 = vunpack.c.l.b16 %v2013
      %v2110 = vunpack.c.l.b16 %v2014
      %v2111 = vunpack.c.l.b16 %v2015
      %v2112 = vunpack.c.l.b16 %v2016
      %v2113 = vunpack.c.l.b16 %v2017
      %v2114 = vunpack.c.l.b16 %v2018
      %v2115 = vunpack.c.l.b16 %v2019
      %v2116 = vunpack.c.l.b16 %v2020
      %v2117 = vunpack.c.l.b16 %v2021
      %v2118 = vunpack.c.l.b16 %v2022
      %v2119 = vunpack.c.l.b16 %v2023
      %v2120 = vunpack.c.l.b16 %v2024
      %v2121 = vunpack.c.l.b16 %v2025
      %v2122 = vunpack.c.l.b16 %v2026
      %v2123 = vunpack.c.l.b16 %v2027
      %v2124 = vunpack.c.l.b16 %v2028
      %v2125 = vunpack.c.l.b16 %v2029
      %v2126 = vunpack.c.l.b16 %v2030
      %v2127 = vunpack.c.l.b16 %v2031
      %v2128 = vunpack.c.l.b16 %v2032
      %v2129 = vunpack.c.l.b16 %v2033
      %v2130 = vunpack.c.l.b16 %v2034
      %v2131 = vunpack.c.l.b16 %v2035
      %v2132 = vunpack.c.l.b16 %v2036
      %v2133 = vunpack.c.l.b16 %v2037
      %v2134 = vunpack.c.l.b16 %v2038
      %v2135 = vunpack.c.l.b16 %v2039
      %v2136 = vunpack.c.l.b16 %v2040
      %v2137 = vunpack.c.l.b16 %v2041
      %v2138 = vunpack.c.l.b16 %v2042
      %v2139 = vunpack.c.l.b16 %v2043
      %v2140 = vunpack.c.l.b16 %v2044
      %v2141 = vunpack.c.l.b16 %v2045
      %v2142 = vunpack.c.l.b16 %v2046
      %v2143 = vunpack.c.l.b16 %v2047
      %v2144 = vunpack.c.l.b16 %v2048
      %v2145 = vunpack.c.l.b16 %v2049
      %v2146 = vunpack.c.l.b16 %v2050
      %v2147 = vunpack.c.l.b16 %v2051
      %v2148 = vunpack.c.l.b16 %v2052
      %v2149 = vunpack.c.l.b16 %v2053
      %v2150 = vunpack.c.l.b16 %v2054
      %v2151 = vunpack.c.l.b16 %v2055
      %v2152 = vunpack.c.l.b16 %v2056
      %v2153 = vunpack.c.l.b16 %v2057
      %v2154 = vunpack.c.l.b16 %v2058
      %v2155 = vunpack.c.l.b16 %v2059
      %v2156 = vunpack.c.l.b16 %v2060
      %v2157 = vpack.c.b16 %v2110, %v2109
      %v2158 = vpack.c.b16 %v2112, %v2111
      %v2159 = vpack.c.b16 %v2114, %v2113
      %v2160 = vpack.c.b16 %v2116, %v2115
      %v2161 = vpack.c.b16 %v2118, %v2117
      %v2162 = vpack.c.b16 %v2120, %v2119
      %v2163 = vpack.c.b16 %v2122, %v2121
      %v2164 = vpack.c.b16 %v2124, %v2123
      %v2165 = vpack.c.b16 %v2126, %v2125
      %v2166 = vpack.c.b16 %v2128, %v2127
      %v2167 = vpack.c.b16 %v2130, %v2129
      %v2168 = vpack.c.b16 %v2132, %v2131
      %v2169 = vpack.c.b16 %v2134, %v2133
      %v2170 = vpack.c.b16 %v2136, %v2135
      %v2171 = vpack.c.b16 %v2138, %v2137
      %v2172 = vpack.c.b16 %v2140, %v2139
      %v2173 = vpack.c.b16 %v2142, %v2141
      %v2174 = vpack.c.b16 %v2144, %v2143
      %v2175 = vpack.c.b16 %v2146, %v2145
      %v2176 = vpack.c.b16 %v2148, %v2147
      %v2177 = vpack.c.b16 %v2150, %v2149
      %v2178 = vpack.c.b16 %v2152, %v2151
      %v2179 = vpack.c.b16 %v2154, %v2153
      %v2180 = vpack.c.b16 %v2156, %v2155
      %2205 = vmatprep.subr.bf16.mxu0 0
      %2206 = vmatpush1.bf16.msra.mxu0 %v2164
      %2207 = vmatprep.subr.bf16.mxu0 0
      %2208 = vmatpush1.bf16.msra.mxu0 %v2163
      %2209 = vmatprep.subr.bf16.mxu0 0
      %2210 = vmatpush1.bf16.msra.mxu0 %v2162
      %2211 = vmatprep.subr.bf16.mxu0 0
      %2212 = vmatpush1.bf16.msra.mxu0 %v2161
      %2213 = vmatprep.subr.bf16.mxu0 0
      %2214 = vmatpush1.bf16.msra.mxu0 %v2160
      %2215 = vmatprep.subr.bf16.mxu0 0
      %2216 = vmatpush1.bf16.msra.mxu0 %v2159
      %2217 = vmatprep.subr.bf16.mxu0 0
      %2218 = vmatpush1.bf16.msra.mxu0 %v2158
      %2219 = vmatprep.subr.bf16.mxu0 0
      %2220 = vmatpush1.bf16.msra.mxu0 %v2157
      %2221 = vmatprep.subr.bf16.mxu0 0
      %2222 = vmatpush2.bf16.msra.mxu0 %v2172
      %2223 = vmatprep.subr.bf16.mxu0 0
      %2224 = vmatpush2.bf16.msra.mxu0 %v2171
      %2225 = vmatprep.subr.bf16.mxu0 0
      %2226 = vmatpush2.bf16.msra.mxu0 %v2170
      %2227 = vmatprep.subr.bf16.mxu0 0
      %2228 = vmatpush2.bf16.msra.mxu0 %v2169
      %2229 = vmatprep.subr.bf16.mxu0 0
      %2230 = vmatpush2.bf16.msra.mxu0 %v2168
      %2231 = vmatprep.subr.bf16.mxu0 0
      %2232 = vmatpush2.bf16.msra.mxu0 %v2167
      %2233 = vmatprep.subr.bf16.mxu0 0
      %2234 = vmatpush2.bf16.msra.mxu0 %v2166
      %2235 = vmatprep.subr.bf16.mxu0 0
      %2236 = vmatpush2.bf16.msra.mxu0 %v2165
      %2237 = vmatprep.mubr.bf16.mxu0 %v1948
      %2238 = vmatmul.mubr.bf16.gmra.mxu0 %v1900
      %v2239 = vpop.f32.mrf.mxu0
      %v2240 = vadd.f32 0.0, %v2239
      %v2241 = vpop.f32.mrf.mxu0
      %v2242 = vpop.f32.mrf.mxu0
      %v2243 = vadd.f32 0.0, %v2242
      %v2244 = vpop.f32.mrf.mxu0
      %2245 = vmatprep.mubr.bf16.mxu0 %v1949
      %2246 = vmatmul.mubr.bf16.gmra.mxu0 %v1901
      %v2247 = vpop.f32.mrf.mxu0
      %v2248 = vadd.f32 0.0, %v2247
      %v2249 = vpop.f32.mrf.mxu0
      %v2250 = vpop.f32.mrf.mxu0
      %v2251 = vadd.f32 0.0, %v2250
      %v2252 = vpop.f32.mrf.mxu0
      %2253 = vmatprep.mubr.bf16.mxu0 %v1950
      %2254 = vmatmul.mubr.bf16.gmra.mxu0 %v1902
      %v2255 = vpop.f32.mrf.mxu0
      %v2256 = vadd.f32 0.0, %v2255
      %v2257 = vpop.f32.mrf.mxu0
      %v2258 = vpop.f32.mrf.mxu0
      %v2259 = vadd.f32 0.0, %v2258
      %v2260 = vpop.f32.mrf.mxu0
      %2261 = vmatprep.mubr.bf16.mxu0 %v1951
      %2262 = vmatmul.mubr.bf16.gmra.mxu0 %v1903
      %v2263 = vpop.f32.mrf.mxu0
      %v2264 = vadd.f32 0.0, %v2263
      %v2265 = vpop.f32.mrf.mxu0
      %v2266 = vpop.f32.mrf.mxu0
      %v2267 = vadd.f32 0.0, %v2266
      %v2268 = vpop.f32.mrf.mxu0
      %2269 = vmatprep.mubr.bf16.mxu0 %v1952
      %2270 = vmatmul.mubr.bf16.gmra.mxu0 %v1904
      %v2271 = vpop.f32.mrf.mxu0
      %v2272 = vadd.f32 0.0, %v2271
      %v2273 = vpop.f32.mrf.mxu0
      %v2274 = vpop.f32.mrf.mxu0
      %v2275 = vadd.f32 0.0, %v2274
      %v2276 = vpop.f32.mrf.mxu0
      %2277 = vmatprep.mubr.bf16.mxu0 %v1953
      %2278 = vmatmul.mubr.bf16.gmra.mxu0 %v1905
      %v2279 = vpop.f32.mrf.mxu0
      %v2280 = vadd.f32 0.0, %v2279
      %v2281 = vpop.f32.mrf.mxu0
      %v2282 = vpop.f32.mrf.mxu0
      %v2283 = vadd.f32 0.0, %v2282
      %v2284 = vpop.f32.mrf.mxu0
      %2285 = vmatprep.mubr.bf16.mxu0 %v1954
      %2286 = vmatmul.mubr.bf16.gmra.mxu0 %v1906
      %v2287 = vpop.f32.mrf.mxu0
      %v2288 = vadd.f32 0.0, %v2287
      %v2289 = vpop.f32.mrf.mxu0
      %v2290 = vpop.f32.mrf.mxu0
      %v2291 = vadd.f32 0.0, %v2290
      %v2292 = vpop.f32.mrf.mxu0
      %2293 = vmatprep.mubr.bf16.mxu0 %v1955
      %2294 = vmatmul.mubr.bf16.gmra.mxu0 %v1907
      %v2295 = vpop.f32.mrf.mxu0
      %v2296 = vadd.f32 0.0, %v2295
      %v2297 = vpop.f32.mrf.mxu0
      %v2298 = vpop.f32.mrf.mxu0
      %v2299 = vadd.f32 0.0, %v2298
      %v2300 = vpop.f32.mrf.mxu0
      %2301 = vmatprep.mubr.bf16.mxu0 %v1956
      %2302 = vmatmul.mubr.bf16.gmra.mxu0 %v1908
      %v2303 = vpop.f32.mrf.mxu0
      %v2304 = vadd.f32 0.0, %v2303
      %v2305 = vpop.f32.mrf.mxu0
      %v2306 = vpop.f32.mrf.mxu0
      %v2307 = vadd.f32 0.0, %v2306
      %v2308 = vpop.f32.mrf.mxu0
      %2309 = vmatprep.mubr.bf16.mxu0 %v1957
      %2310 = vmatmul.mubr.bf16.gmra.mxu0 %v1909
      %v2311 = vpop.f32.mrf.mxu0
      %v2312 = vadd.f32 0.0, %v2311
      %v2313 = vpop.f32.mrf.mxu0
      %v2314 = vpop.f32.mrf.mxu0
      %v2315 = vadd.f32 0.0, %v2314
      %v2316 = vpop.f32.mrf.mxu0
      %2317 = vmatprep.mubr.bf16.mxu0 %v1958
      %2318 = vmatmul.mubr.bf16.gmra.mxu0 %v1910
      %v2319 = vpop.f32.mrf.mxu0
      %v2320 = vadd.f32 0.0, %v2319
      %v2321 = vpop.f32.mrf.mxu0
      %v2322 = vpop.f32.mrf.mxu0
      %v2323 = vadd.f32 0.0, %v2322
      %v2324 = vpop.f32.mrf.mxu0
      %2325 = vmatprep.mubr.bf16.mxu0 %v1959
      %2326 = vmatmul.mubr.bf16.gmra.mxu0 %v1911
      %v2327 = vpop.f32.mrf.mxu0
      %v2328 = vadd.f32 0.0, %v2327
      %v2329 = vpop.f32.mrf.mxu0
      %v2330 = vpop.f32.mrf.mxu0
      %v2331 = vadd.f32 0.0, %v2330
      %v2332 = vpop.f32.mrf.mxu0
      %2333 = vmatprep.mubr.bf16.mxu0 %v1960
      %2334 = vmatmul.mubr.bf16.gmra.mxu0 %v1912
      %v2335 = vpop.f32.mrf.mxu0
      %v2336 = vadd.f32 0.0, %v2335
      %v2337 = vpop.f32.mrf.mxu0
      %v2338 = vpop.f32.mrf.mxu0
      %v2339 = vadd.f32 0.0, %v2338
      %v2340 = vpop.f32.mrf.mxu0
      %2341 = vmatprep.mubr.bf16.mxu0 %v1961
      %2342 = vmatmul.mubr.bf16.gmra.mxu0 %v1913
      %v2343 = vpop.f32.mrf.mxu0
      %v2344 = vadd.f32 0.0, %v2343
      %v2345 = vpop.f32.mrf.mxu0
      %v2346 = vpop.f32.mrf.mxu0
      %v2347 = vadd.f32 0.0, %v2346
      %v2348 = vpop.f32.mrf.mxu0
      %2349 = vmatprep.mubr.bf16.mxu0 %v1962
      %2350 = vmatmul.mubr.bf16.gmra.mxu0 %v1914
      %v2351 = vpop.f32.mrf.mxu0
      %v2352 = vadd.f32 0.0, %v2351
      %v2353 = vpop.f32.mrf.mxu0
      %v2354 = vpop.f32.mrf.mxu0
      %v2355 = vadd.f32 0.0, %v2354
      %v2356 = vpop.f32.mrf.mxu0
      %2357 = vmatprep.mubr.bf16.mxu0 %v1963
      %2358 = vmatmul.mubr.bf16.gmra.mxu0 %v1915
      %v2359 = vpop.f32.mrf.mxu0
      %v2360 = vadd.f32 0.0, %v2359
      %v2361 = vpop.f32.mrf.mxu0
      %v2362 = vpop.f32.mrf.mxu0
      %v2363 = vadd.f32 0.0, %v2362
      %v2364 = vpop.f32.mrf.mxu0
      %2365 = vdwg.mxu0
      %2366 = vmatprep.subr.bf16.mxu0 0
      %2367 = vmatpush1.bf16.msra.mxu0 %v2180
      %2368 = vmatprep.subr.bf16.mxu0 0
      %2369 = vmatpush1.bf16.msra.mxu0 %v2179
      %2370 = vmatprep.subr.bf16.mxu0 0
      %2371 = vmatpush1.bf16.msra.mxu0 %v2178
      %2372 = vmatprep.subr.bf16.mxu0 0
      %2373 = vmatpush1.bf16.msra.mxu0 %v2177
      %2374 = vmatprep.subr.bf16.mxu0 0
      %2375 = vmatpush1.bf16.msra.mxu0 %v2176
      %2376 = vmatprep.subr.bf16.mxu0 0
      %2377 = vmatpush1.bf16.msra.mxu0 %v2175
      %2378 = vmatprep.subr.bf16.mxu0 0
      %2379 = vmatpush1.bf16.msra.mxu0 %v2174
      %2380 = vmatprep.subr.bf16.mxu0 0
      %2381 = vmatpush1.bf16.msra.mxu0 %v2173
      %2382 = vmatprep.subr.bf16.mxu0 0
      %2383 = vmatpush2.bf16.msra.mxu0 0
      %2384 = vmatprep.subr.bf16.mxu0 0
      %2385 = vmatpush2.bf16.msra.mxu0 0
      %2386 = vmatprep.subr.bf16.mxu0 0
      %2387 = vmatpush2.bf16.msra.mxu0 0
      %2388 = vmatprep.subr.bf16.mxu0 0
      %2389 = vmatpush2.bf16.msra.mxu0 0
      %2390 = vmatprep.subr.bf16.mxu0 0
      %2391 = vmatpush2.bf16.msra.mxu0 0
      %2392 = vmatprep.subr.bf16.mxu0 0
      %2393 = vmatpush2.bf16.msra.mxu0 0
      %2394 = vmatprep.subr.bf16.mxu0 0
      %2395 = vmatpush2.bf16.msra.mxu0 0
      %2396 = vmatprep.subr.bf16.mxu0 0
      %2397 = vmatpush2.bf16.msra.mxu0 0
      %2398 = vmatprep.mubr.bf16.mxu0 0
      %2399 = vmatmul.mubr.bf16.gmra.mxu0 %v1996
      %v2400 = vpop.f32.mrf.mxu0
      %v2401 = vadd.f32 %v2240, %v2400
      %v2402 = vpop.f32.mrf.mxu0
      %v2403 = vpop.f32.mrf.mxu0
      %v2404 = vadd.f32 %v2243, %v2403
      %v2405 = vpop.f32.mrf.mxu0
      %2406 = vmatprep.mubr.bf16.mxu0 0
      %2407 = vmatmul.mubr.bf16.gmra.mxu0 %v1997
      %v2408 = vpop.f32.mrf.mxu0
      %v2409 = vadd.f32 %v2248, %v2408
      %v2410 = vpop.f32.mrf.mxu0
      %v2411 = vpop.f32.mrf.mxu0
      %v2412 = vadd.f32 %v2251, %v2411
      %v2413 = vpop.f32.mrf.mxu0
      %2414 = vmatprep.mubr.bf16.mxu0 0
      %2415 = vmatmul.mubr.bf16.gmra.mxu0 %v1998
      %v2416 = vpop.f32.mrf.mxu0
      %v2417 = vadd.f32 %v2256, %v2416
      %v2418 = vpop.f32.mrf.mxu0
      %v2419 = vpop.f32.mrf.mxu0
      %v2420 = vadd.f32 %v2259, %v2419
      %v2421 = vpop.f32.mrf.mxu0
      %2422 = vmatprep.mubr.bf16.mxu0 0
      %2423 = vmatmul.mubr.bf16.gmra.mxu0 %v1999
      %v2424 = vpop.f32.mrf.mxu0
      %v2425 = vadd.f32 %v2264, %v2424
      %v2426 = vpop.f32.mrf.mxu0
      %v2427 = vpop.f32.mrf.mxu0
      %v2428 = vadd.f32 %v2267, %v2427
      %v2429 = vpop.f32.mrf.mxu0
      %2430 = vmatprep.mubr.bf16.mxu0 0
      %2431 = vmatmul.mubr.bf16.gmra.mxu0 %v2000
      %v2432 = vpop.f32.mrf.mxu0
      %v2433 = vadd.f32 %v2272, %v2432
      %v2434 = vpop.f32.mrf.mxu0
      %v2435 = vpop.f32.mrf.mxu0
      %v2436 = vadd.f32 %v2275, %v2435
      %v2437 = vpop.f32.mrf.mxu0
      %2438 = vmatprep.mubr.bf16.mxu0 0
      %2439 = vmatmul.mubr.bf16.gmra.mxu0 %v2001
      %v2440 = vpop.f32.mrf.mxu0
      %v2441 = vadd.f32 %v2280, %v2440
      %v2442 = vpop.f32.mrf.mxu0
      %v2443 = vpop.f32.mrf.mxu0
      %v2444 = vadd.f32 %v2283, %v2443
      %v2445 = vpop.f32.mrf.mxu0
      %2446 = vmatprep.mubr.bf16.mxu0 0
      %2447 = vmatmul.mubr.bf16.gmra.mxu0 %v2002
      %v2448 = vpop.f32.mrf.mxu0
      %v2449 = vadd.f32 %v2288, %v2448
      %v2450 = vpop.f32.mrf.mxu0
      %v2451 = vpop.f32.mrf.mxu0
      %v2452 = vadd.f32 %v2291, %v2451
      %v2453 = vpop.f32.mrf.mxu0
      %2454 = vmatprep.mubr.bf16.mxu0 0
      %2455 = vmatmul.mubr.bf16.gmra.mxu0 %v2003
      %v2456 = vpop.f32.mrf.mxu0
      %v2457 = vadd.f32 %v2296, %v2456
      %v2458 = vpop.f32.mrf.mxu0
      %v2459 = vpop.f32.mrf.mxu0
      %v2460 = vadd.f32 %v2299, %v2459
      %v2461 = vpop.f32.mrf.mxu0
      %2462 = vmatprep.mubr.bf16.mxu0 0
      %2463 = vmatmul.mubr.bf16.gmra.mxu0 %v2004
      %v2464 = vpop.f32.mrf.mxu0
      %v2465 = vadd.f32 %v2304, %v2464
      %v2466 = vpop.f32.mrf.mxu0
      %v2467 = vpop.f32.mrf.mxu0
      %v2468 = vadd.f32 %v2307, %v2467
      %v2469 = vpop.f32.mrf.mxu0
      %2470 = vmatprep.mubr.bf16.mxu0 0
      %2471 = vmatmul.mubr.bf16.gmra.mxu0 %v2005
      %v2472 = vpop.f32.mrf.mxu0
      %v2473 = vadd.f32 %v2312, %v2472
      %v2474 = vpop.f32.mrf.mxu0
      %v2475 = vpop.f32.mrf.mxu0
      %v2476 = vadd.f32 %v2315, %v2475
      %v2477 = vpop.f32.mrf.mxu0
      %2478 = vmatprep.mubr.bf16.mxu0 0
      %2479 = vmatmul.mubr.bf16.gmra.mxu0 %v2006
      %v2480 = vpop.f32.mrf.mxu0
      %v2481 = vadd.f32 %v2320, %v2480
      %v2482 = vpop.f32.mrf.mxu0
      %v2483 = vpop.f32.mrf.mxu0
      %v2484 = vadd.f32 %v2323, %v2483
      %v2485 = vpop.f32.mrf.mxu0
      %2486 = vmatprep.mubr.bf16.mxu0 0
      %2487 = vmatmul.mubr.bf16.gmra.mxu0 %v2007
      %v2488 = vpop.f32.mrf.mxu0
      %v2489 = vadd.f32 %v2328, %v2488
      %v2490 = vpop.f32.mrf.mxu0
      %v2491 = vpop.f32.mrf.mxu0
      %v2492 = vadd.f32 %v2331, %v2491
      %v2493 = vpop.f32.mrf.mxu0
      %2494 = vmatprep.mubr.bf16.mxu0 0
      %2495 = vmatmul.mubr.bf16.gmra.mxu0 %v2008
      %v2496 = vpop.f32.mrf.mxu0
      %v2497 = vadd.f32 %v2336, %v2496
      %v2498 = vpop.f32.mrf.mxu0
      %v2499 = vpop.f32.mrf.mxu0
      %v2500 = vadd.f32 %v2339, %v2499
      %v2501 = vpop.f32.mrf.mxu0
      %2502 = vmatprep.mubr.bf16.mxu0 0
      %2503 = vmatmul.mubr.bf16.gmra.mxu0 %v2009
      %v2504 = vpop.f32.mrf.mxu0
      %v2505 = vadd.f32 %v2344, %v2504
      %v2506 = vpop.f32.mrf.mxu0
      %v2507 = vpop.f32.mrf.mxu0
      %v2508 = vadd.f32 %v2347, %v2507
      %v2509 = vpop.f32.mrf.mxu0
      %2510 = vmatprep.mubr.bf16.mxu0 0
      %2511 = vmatmul.mubr.bf16.gmra.mxu0 %v2010
      %v2512 = vpop.f32.mrf.mxu0
      %v2513 = vadd.f32 %v2352, %v2512
      %v2514 = vpop.f32.mrf.mxu0
      %v2515 = vpop.f32.mrf.mxu0
      %v2516 = vadd.f32 %v2355, %v2515
      %v2517 = vpop.f32.mrf.mxu0
      %2518 = vmatprep.mubr.bf16.mxu0 0
      %2519 = vmatmul.mubr.bf16.gmra.mxu0 %v2011
      %v2520 = vpop.f32.mrf.mxu0
      %v2521 = vadd.f32 %v2360, %v2520
      %v2522 = vpop.f32.mrf.mxu0
      %v2523 = vpop.f32.mrf.mxu0
      %v2524 = vadd.f32 %v2363, %v2523
      %v2525 = vpop.f32.mrf.mxu0
      %2526 = vdwg.mxu0
      %v2527 = vadd.f32 %v1835, %v2401
      %v2528 = vadd.f32 %v1836, %v2404
      %v2529 = vadd.f32 %v1837, %v2409
      %v2530 = vadd.f32 %v1838, %v2412
      %v2531 = vadd.f32 %v1839, %v2417
      %v2532 = vadd.f32 %v1840, %v2420
      %v2533 = vadd.f32 %v1841, %v2425
      %v2534 = vadd.f32 %v1842, %v2428
      %v2535 = vadd.f32 %v1843, %v2433
      %v2536 = vadd.f32 %v1844, %v2436
      %v2537 = vadd.f32 %v1845, %v2441
      %v2538 = vadd.f32 %v1846, %v2444
      %v2539 = vadd.f32 %v1847, %v2449
      %v2540 = vadd.f32 %v1848, %v2452
      %v2541 = vadd.f32 %v1849, %v2457
      %v2542 = vadd.f32 %v1850, %v2460
      %v2543 = vadd.f32 %v1851, %v2465
      %v2544 = vadd.f32 %v1852, %v2468
      %v2545 = vadd.f32 %v1853, %v2473
      %v2546 = vadd.f32 %v1854, %v2476
      %v2547 = vadd.f32 %v1855, %v2481
      %v2548 = vadd.f32 %v1856, %v2484
      %v2549 = vadd.f32 %v1857, %v2489
      %v2550 = vadd.f32 %v1858, %v2492
      %v2551 = vadd.f32 %v1859, %v2497
      %v2552 = vadd.f32 %v1860, %v2500
      %v2553 = vadd.f32 %v1861, %v2505
      %v2554 = vadd.f32 %v1862, %v2508
      %v2555 = vadd.f32 %v1863, %v2513
      %v2556 = vadd.f32 %v1864, %v2516
      %v2557 = vadd.f32 %v1865, %v2521
      %v2558 = vadd.f32 %v1866, %v2524
      %v2559 = vpack.c.bf16 %v2528, %v2527
      %v2560 = vpack.c.bf16 %v2530, %v2529
      %v2561 = vpack.c.bf16 %v2532, %v2531
      %v2562 = vpack.c.bf16 %v2534, %v2533
      %v2563 = vpack.c.bf16 %v2536, %v2535
      %v2564 = vpack.c.bf16 %v2538, %v2537
      %v2565 = vpack.c.bf16 %v2540, %v2539
      %v2566 = vpack.c.bf16 %v2542, %v2541
      %v2567 = vpack.c.bf16 %v2544, %v2543
      %v2568 = vpack.c.bf16 %v2546, %v2545
      %v2569 = vpack.c.bf16 %v2548, %v2547
      %v2570 = vpack.c.bf16 %v2550, %v2549
      %v2571 = vpack.c.bf16 %v2552, %v2551
      %v2572 = vpack.c.bf16 %v2554, %v2553
      %v2573 = vpack.c.bf16 %v2556, %v2555
      %v2574 = vpack.c.bf16 %v2558, %v2557
      %v2591 = vunpack.c.l.b16 %v2559
      %v2592 = vunpack.c.h.b16 %v2559
      %v2593 = vunpack.c.l.b16 %v2560
      %v2594 = vunpack.c.h.b16 %v2560
      %v2595 = vunpack.c.l.b16 %v2561
      %v2596 = vunpack.c.h.b16 %v2561
      %v2597 = vunpack.c.l.b16 %v2562
      %v2598 = vunpack.c.h.b16 %v2562
      %v2599 = vunpack.c.l.b16 %v2563
      %v2600 = vunpack.c.h.b16 %v2563
      %v2601 = vunpack.c.l.b16 %v2564
      %v2602 = vunpack.c.h.b16 %v2564
      %v2603 = vunpack.c.l.b16 %v2565
      %v2604 = vunpack.c.h.b16 %v2565
      %v2605 = vunpack.c.l.b16 %v2566
      %v2606 = vunpack.c.h.b16 %v2566
      %v2607 = vunpack.c.l.b16 %v2567
      %v2608 = vunpack.c.h.b16 %v2567
      %v2609 = vunpack.c.l.b16 %v2568
      %v2610 = vunpack.c.h.b16 %v2568
      %v2611 = vunpack.c.l.b16 %v2569
      %v2612 = vunpack.c.h.b16 %v2569
      %v2613 = vunpack.c.l.b16 %v2570
      %v2614 = vunpack.c.h.b16 %v2570
      %v2615 = vunpack.c.l.b16 %v2571
      %v2616 = vunpack.c.h.b16 %v2571
      %v2617 = vunpack.c.l.b16 %v2572
      %v2618 = vunpack.c.h.b16 %v2572
      %v2619 = vunpack.c.l.b16 %v2573
      %v2620 = vunpack.c.h.b16 %v2573
      %v2621 = vunpack.c.l.b16 %v2574
      %v2622 = vunpack.c.h.b16 %v2574
      %v2623 = vpack.c.b16 %v2591, %v2591
      %v2624 = vpack.c.b16 %v2592, %v2592
      %v2625 = vpack.c.b16 %v2593, %v2593
      %v2626 = vpack.c.b16 %v2594, %v2594
      %v2627 = vpack.c.b16 %v2595, %v2595
      %v2628 = vpack.c.b16 %v2596, %v2596
      %v2629 = vpack.c.b16 %v2597, %v2597
      %v2630 = vpack.c.b16 %v2598, %v2598
      %v2631 = vpack.c.b16 %v2599, %v2599
      %v2632 = vpack.c.b16 %v2600, %v2600
      %v2633 = vpack.c.b16 %v2601, %v2601
      %v2634 = vpack.c.b16 %v2602, %v2602
      %v2635 = vpack.c.b16 %v2603, %v2603
      %v2636 = vpack.c.b16 %v2604, %v2604
      %v2637 = vpack.c.b16 %v2605, %v2605
      %v2638 = vpack.c.b16 %v2606, %v2606
      %v2639 = vpack.c.b16 %v2607, %v2607
      %v2640 = vpack.c.b16 %v2608, %v2608
      %v2641 = vpack.c.b16 %v2609, %v2609
      %v2642 = vpack.c.b16 %v2610, %v2610
      %v2643 = vpack.c.b16 %v2611, %v2611
      %v2644 = vpack.c.b16 %v2612, %v2612
      %v2645 = vpack.c.b16 %v2613, %v2613
      %v2646 = vpack.c.b16 %v2614, %v2614
      %v2647 = vpack.c.b16 %v2615, %v2615
      %v2648 = vpack.c.b16 %v2616, %v2616
      %v2649 = vpack.c.b16 %v2617, %v2617
      %v2650 = vpack.c.b16 %v2618, %v2618
      %v2651 = vpack.c.b16 %v2619, %v2619
      %v2652 = vpack.c.b16 %v2620, %v2620
      %v2653 = vpack.c.b16 %v2621, %v2621
      %v2654 = vpack.c.b16 %v2622, %v2622
      %2687 = vst [vmem:[%s275] sm:$0xf] %v2623
      %2688 = vst [vmem:[%s275 + $0x4] sm:$0xf] %v2624
      %2689 = vst [vmem:[%s275 + $0x8] sm:$0xf] %v2625
      %2690 = vst [vmem:[%s275 + $0xc] sm:$0xf] %v2626
      %2691 = vst [vmem:[%s275 + $0x10] sm:$0xf] %v2627
      %2692 = vst [vmem:[%s275 + $0x14] sm:$0xf] %v2628
      %2693 = vst [vmem:[%s275 + $0x18] sm:$0xf] %v2629
      %2694 = vst [vmem:[%s275 + $0x1c] sm:$0xf] %v2630
      %2695 = vst [vmem:[%s275 + $0x20] sm:$0xf] %v2631
      %2696 = vst [vmem:[%s275 + $0x24] sm:$0xf] %v2632
      %2697 = vst [vmem:[%s275 + $0x28] sm:$0xf] %v2633
      %2698 = vst [vmem:[%s275 + $0x2c] sm:$0xf] %v2634
      %2699 = vst [vmem:[%s275 + $0x30] sm:$0xf] %v2635
      %2700 = vst [vmem:[%s275 + $0x34] sm:$0xf] %v2636
      %2701 = vst [vmem:[%s275 + $0x38] sm:$0xf] %v2637
      %2702 = vst [vmem:[%s275 + $0x3c] sm:$0xf] %v2638
      %2703 = vst [vmem:[%s275 + $0x40] sm:$0xf] %v2639
      %2704 = vst [vmem:[%s275 + $0x44] sm:$0xf] %v2640
      %2705 = vst [vmem:[%s275 + $0x48] sm:$0xf] %v2641
      %2706 = vst [vmem:[%s275 + $0x4c] sm:$0xf] %v2642
      %2707 = vst [vmem:[%s275 + $0x50] sm:$0xf] %v2643
      %2708 = vst [vmem:[%s275 + $0x54] sm:$0xf] %v2644
      %2709 = vst [vmem:[%s275 + $0x58] sm:$0xf] %v2645
      %2710 = vst [vmem:[%s275 + $0x5c] sm:$0xf] %v2646
      %2711 = vst [vmem:[%s275 + $0x60] sm:$0xf] %v2647
      %2712 = vst [vmem:[%s275 + $0x64] sm:$0xf] %v2648
      %2713 = vst [vmem:[%s275 + $0x68] sm:$0xf] %v2649
      %2714 = vst [vmem:[%s275 + $0x6c] sm:$0xf] %v2650
      %2715 = vst [vmem:[%s275 + $0x70] sm:$0xf] %v2651
      %2716 = vst [vmem:[%s275 + $0x74] sm:$0xf] %v2652
      %2717 = vst [vmem:[%s275 + $0x78] sm:$0xf] %v2653
      %2718 = vst [vmem:[%s275 + $0x7c] sm:$0xf] %v2654
      %p2719 = scmp.lt.s32.totalorder %s20, 1
      %s2720 = scalar_select %p2719, %s20, 1
      %p2721 = scmp.lt.s32.totalorder %s21, 0
      %s2722 = scalar_select %p2721, %s21, 0
      %s2723 = smul.addr %s2720, 32
      %s2724 = sadd.s32 %s2722, %s2723
      %s2725 = smul.addr %s2724, 4
      %s2726 = scalar_lea.vmem %s5, %s2725
      // Predicated region
      $region45: #{wide_basic_forward.2} parent=39 // pred_check
        %p2727 = pneg %p168
      $region46: #{wide_basic_forward.2} parent=39 // pred_check_branch
        %2729 = sbr.rel (%p2727) target = $region48
      $region47: #{wide_basic_forward.2} parent=39 // pred_region
        _
      $region48: #{wide_basic_forward.2} parent=39 // pred_fallthru
        _
    $region40: #{wide_basic_forward.2} parent=5 // pred_fallthru
      _
    %p2730 = scmp.le.s32.totalorder 2, %s11
    // Predicated region
    $region49: #{wide_basic_forward.2} parent=5 // pred_check
      %p2731 = pneg %p2730
    $region50: #{wide_basic_forward.2} parent=5 // pred_check_branch
      %2733 = sbr.rel (%p2731) target = $region52
    $region51: #{wide_basic_forward.2} parent=5 // pred_region
      %s2734 = ssub.s32 %s11, 2
      // Predicated region
      $region53: #{wide_basic_forward.2} parent=51 // pred_check
        %p2735 = pneg %p174
      $region54: #{wide_basic_forward.2} parent=51 // pred_check_branch
        %2737 = sbr.rel (%p2735) target = $region56
      $region55: #{wide_basic_forward.2} parent=51 // pred_region
        %p2738 = scmp.lt.s32.totalorder %s22, 1
        %s2739 = scalar_select %p2738, %s22, 1
        %p2740 = scmp.lt.s32.totalorder %s23, 0
        %s2741 = scalar_select %p2740, %s23, 0
        %s2742 = smul.addr %s2739, 32
        %s2743 = sadd.s32 %s2741, %s2742
        %s2744 = smul.addr %s2743, 4
        %s2745 = scalar_lea.vmem %s5, %s2744
      $region56: #{wide_basic_forward.2} parent=51 // pred_fallthru
        _
    $region52: #{wide_basic_forward.2} parent=5 // pred_fallthru
      _
  $region6: #{wide_basic_forward.2} parent=0 // loop_footer
    %s15 = sadd.s32 1, %s11
  $region7: #{wide_basic_forward.2} parent=0 // loop_footer_branch
    %10 = sbr.rel target = $region3
  $region8: #{wide_basic_forward.2} parent=0 // loop_exit
    _

</llo_original>
